<compile_context>
chip_gen: v7x
topology: tpu7x:2x2x1
jax: 0.10.0
libtpu: 0.0.40
codegen_flags: <defaults>
</compile_context>

<pallas_src>
import functools
import math

import jax
import jax.numpy as jnp
import numpy as np
from jax.experimental import pallas as pl
from jax.experimental.pallas import tpu as pltpu

# ---------------- small synthetic config ----------------
TEXT_NUM_EMBEDS = 32
TEXT_DIM = 64                    # D (real channels)
CONV_LAYERS = 2
CONV_MULT = 2                    # Dint = D * CONV_MULT = 128 (already lane-dense)
PRECOMPUTE_MAX_POS = 4096

LANE_DIM = 128                   # Dp: channel axis padded to a full lane width
VOCAB_PAD = 40                   # 33 -> next multiple of 8 (sublane tiling)


# ---------------- kernel-safe math helpers ----------------
def _erf_approx(x):
    # Abramowitz & Stegun 7.1.26 rational approximation (max abs err ~1.5e-7).
    # Built only from ops with guaranteed Mosaic lowering; the divide is offloaded
    # to the EUP via pl.reciprocal so it does not occupy VALU slots.
    a1, a2, a3, a4, a5 = 0.254829592, -0.284496736, 1.421413741, -1.453152027, 1.061405429
    p = 0.3275911
    s = jnp.where(x >= 0.0, 1.0, -1.0)
    z = jnp.abs(x)
    t = pl.reciprocal(1.0 + p * z, approx=True)
    poly = ((((a5 * t + a4) * t + a3) * t + a2) * t + a1) * t
    return s * (1.0 - poly * jnp.exp(-z * z))


def _gelu_exact(x):
    # matches torch.nn.GELU() (erf form) to ~1e-6
    return 0.5 * x * (1.0 + _erf_approx(x * (1.0 / math.sqrt(2.0))))


# ---------------- fused Pallas kernel ----------------
def _fused_text_embed_kernel(ids_ref, pos_ref, tbl_ref, wdw_ref, vecd_ref,
                             w1_ref, veci_ref, w2_ref, o_ref, *, d_real):
    N, Dp = pos_ref.shape
    Vp = tbl_ref.shape[0]
    L = wdw_ref.shape[0]

    # ---- token-embedding gather: one-hot (N, Vp) @ table (Vp, Dp) on the MXU ----
    ids = ids_ref[0]                                               # (N, 1) int32
    viota = jax.lax.broadcasted_iota(jnp.int32, (N, Vp), 1)
    onehot = (viota == ids).astype(jnp.float32)                    # exact row-select
    x = jnp.dot(onehot, tbl_ref[...], preferred_element_type=jnp.float32)
    x = x + pos_ref[...]                                           # positional embedding

    # lane mask over the real channels (lanes >= d_real are zero padding)
    lane = jax.lax.broadcasted_iota(jnp.int32, (1, Dp), 1)
    cmask = (lane < d_real).astype(jnp.float32)
    inv_d = 1.0 / d_real

    # iota row/col indices for the constant depthwise shift matrices (hoisted)
    n_i = jax.lax.broadcasted_iota(jnp.int32, (N, N), 0)           # output row
    m_i = jax.lax.broadcasted_iota(jnp.int32, (N, N), 1)           # input row

    for l in range(L):                                             # static unroll (L=2)
        w_dw = wdw_ref[l]                                          # (7, Dp)
        vec_d = vecd_ref[l]                                        # (4, Dp): b_dw, ln_g, ln_b, b2
        vec_i = veci_ref[l]                                        # (3, Dint): b1, grn_g, grn_b

        # depthwise Conv1d k=7 pad=3: shift-matrix matmuls, no concatenate and no
        # misaligned sublane slices; out-of-range taps hit all-zero matrix rows.
        conv = jnp.broadcast_to(vec_d[0:1, :], (N, Dp))            # bias b_dw
        for k in range(7):
            sk = (m_i == n_i + (k - 3)).astype(jnp.float32)        # (N, N) constant band
            shifted = jnp.dot(sk, x, preferred_element_type=jnp.float32)
            conv = conv + shifted * w_dw[k:k + 1, :]

        # LayerNorm over the d_real live channels (eps = 1e-6); pad lanes of conv are 0
        mean = jnp.sum(conv, axis=-1, keepdims=True) * inv_d
        diff = conv - mean
        var = jnp.sum(diff * diff * cmask, axis=-1, keepdims=True) * inv_d
        h = diff * jax.lax.rsqrt(var + 1e-6)
        h = h * vec_d[1:2, :] + vec_d[2:3, :]                      # pad lanes -> exactly 0

        # pwconv1 (Dp -> Dint): bf16 on the MXU, f32 accumulate; exact GELU
        h1 = jnp.dot(h.astype(jnp.bfloat16), w1_ref[l],
                     preferred_element_type=jnp.float32) + vec_i[0:1, :]
        h1 = _gelu_exact(h1)

        # GRN: L2 norm over the sequence axis, normalized by its channel mean
        gx = jnp.sqrt(jnp.sum(h1 * h1, axis=0, keepdims=True))     # (1, Dint)
        nx = gx * pl.reciprocal(jnp.mean(gx, axis=-1, keepdims=True) + 1e-6,
                                approx=True)
        h1 = vec_i[1:2, :] * (h1 * nx) + vec_i[2:3, :] + h1

        # pwconv2 (Dint -> Dp): bf16 MXU + residual
        h2 = jnp.dot(h1.astype(jnp.bfloat16), w2_ref[l],
                     preferred_element_type=jnp.float32) + vec_d[3:4, :]
        x = x + h2

    o_ref[0] = x


# ---------------- parameter / buffer setup (glue) ----------------
def precompute_freqs_cis(dim, end, theta=10000.0, theta_rescale_factor=1.0):
    theta = theta * theta_rescale_factor ** (dim / (dim - 2))
    freqs = 1.0 / (theta ** (jnp.arange(0, dim, 2)[: dim // 2].astype(jnp.float32) / dim))
    t = jnp.arange(end, dtype=jnp.float32)
    freqs = jnp.outer(t, freqs)
    return jnp.concatenate([jnp.cos(freqs), jnp.sin(freqs)], axis=-1)   # (end, dim)


def pack_params(params):
    """Pad channels to LANE_DIM, pack small vectors, stack layers, pre-cast MXU weights."""
    D, Dp, Dint = TEXT_DIM, LANE_DIM, TEXT_DIM * CONV_MULT
    assert Dint == LANE_DIM, "kernel assumes the hidden dim is exactly one lane width"
    pad_d = Dp - D

    def pad_lanes(a):  # zero-pad the channel (last) axis D -> Dp
        return jnp.pad(a, [(0, 0)] * (a.ndim - 1) + [(0, pad_d)])

    tbl = pad_lanes(params["embed"])                                       # (33, Dp)
    tbl = jnp.pad(tbl, ((0, VOCAB_PAD - tbl.shape[0]), (0, 0)))            # (Vp, Dp)
    freqs = pad_lanes(params["freqs_cis"])                                 # (max_pos, Dp)

    wdw, vecd, w1, veci, w2 = [], [], [], [], []
    for p in params["blocks"]:
        wdw.append(pad_lanes(p["w_dw"]))                                   # (7, Dp)
        # NOTE: ln_g is zero-padded (not one-padded) so padded lanes stay exactly 0.
        vecd.append(jnp.concatenate(
            [pad_lanes(p["b_dw"]), pad_lanes(p["ln_g"]),
             pad_lanes(p["ln_b"]), pad_lanes(p["b2"])], axis=0))           # (4, Dp)
        w1.append(jnp.pad(p["w1"], ((0, pad_d), (0, 0))).astype(jnp.bfloat16))  # (Dp, Dint)
        veci.append(jnp.concatenate([p["b1"], p["grn_g"], p["grn_b"]], axis=0)) # (3, Dint)
        w2.append(jnp.pad(p["w2"], ((0, 0), (0, pad_d))).astype(jnp.bfloat16))  # (Dint, Dp)

    return {"tbl": tbl, "freqs": freqs,
            "wdw": jnp.stack(wdw), "vecd": jnp.stack(vecd),
            "w1": jnp.stack(w1), "veci": jnp.stack(veci), "w2": jnp.stack(w2)}


def init_params(key):
    D, Dint = TEXT_DIM, TEXT_DIM * CONV_MULT
    keys = iter(jax.random.split(key, 8 * CONV_LAYERS + 2))
    params = {
        "embed": jax.random.normal(next(keys), (TEXT_NUM_EMBEDS + 1, D), jnp.float32) * 0.1,
        "freqs_cis": precompute_freqs_cis(D, PRECOMPUTE_MAX_POS),
        "blocks": [],
    }
    for _ in range(CONV_LAYERS):
        params["blocks"].append({
            # torch dwconv weight is (D, 1, 7); stored here transposed as (7, D)
            "w_dw": jax.random.normal(next(keys), (7, D), jnp.float32) * 0.1,
            "b_dw": jax.random.normal(next(keys), (1, D), jnp.float32) * 0.1,
            "ln_g": jnp.ones((1, D), jnp.float32),
            "ln_b": jnp.zeros((1, D), jnp.float32),
            # torch Linear weight is (Dint, D); stored here transposed as (D, Dint)
            "w1": jax.random.normal(next(keys), (D, Dint), jnp.float32) * 0.05,
            "b1": jax.random.normal(next(keys), (1, Dint), jnp.float32) * 0.05,
            # torch inits GRN gamma/beta to zeros; random here to exercise the path
            "grn_g": jax.random.normal(next(keys), (1, Dint), jnp.float32) * 0.1,
            "grn_b": jax.random.normal(next(keys), (1, Dint), jnp.float32) * 0.1,
            "w2": jax.random.normal(next(keys), (Dint, D), jnp.float32) * 0.05,
            "b2": jax.random.normal(next(keys), (1, D), jnp.float32) * 0.05,
        })
    params["packed"] = pack_params(params)
    return params


# ---------------- forward (fused Pallas path) ----------------
def text_embedding_forward(text, seq_len, params, drop_text=False):
    packed = params["packed"]
    # token-id shift / crop / pad / drop (cheap integer glue, matches torch exactly)
    text = text + 1                                      # shift so 0 is the filler token
    text = text[:, :seq_len]
    B, nt = text.shape
    text = jnp.pad(text, ((0, 0), (0, seq_len - nt)), constant_values=0)
    if drop_text:
        text = jnp.zeros_like(text)
    ids = text.astype(jnp.int32)[:, :, None]             # (B, N, 1)

    # positional rows (batch_start == 0 for every row -> shared (N, Dp) slab)
    pos_idx = jnp.minimum(jnp.arange(seq_len), PRECOMPUTE_MAX_POS - 1)
    pos = packed["freqs"][pos_idx]                        # (N, Dp)

    N, Dp = seq_len, LANE_DIM
    Dint = TEXT_DIM * CONV_MULT
    L = CONV_LAYERS
    Vp = packed["tbl"].shape[0]
    assert N % 8 == 0, "seq_len must be a multiple of 8 for (8,128) tiling"

    kernel = functools.partial(_fused_text_embed_kernel, d_real=TEXT_DIM)
    out = pl.pallas_call(
        kernel,
        out_shape=jax.ShapeDtypeStruct((B, N, Dp), jnp.float32),
        grid=(B,),
        in_specs=[
            pl.BlockSpec((1, N, 1), lambda b: (b, 0, 0)),         # token ids
            pl.BlockSpec((N, Dp), lambda b: (0, 0)),              # positional embedding
            pl.BlockSpec((Vp, Dp), lambda b: (0, 0)),             # embedding table
            pl.BlockSpec((L, 7, Dp), lambda b: (0, 0, 0)),        # depthwise weights
            pl.BlockSpec((L, 4, Dp), lambda b: (0, 0, 0)),        # b_dw, ln_g, ln_b, b2
            pl.BlockSpec((L, Dp, Dint), lambda b: (0, 0, 0)),     # w1 (bf16)
            pl.BlockSpec((L, 3, Dint), lambda b: (0, 0, 0)),      # b1, grn_g, grn_b
            pl.BlockSpec((L, Dint, Dp), lambda b: (0, 0, 0)),     # w2 (bf16)
        ],
        out_specs=pl.BlockSpec((1, N, Dp), lambda b: (b, 0, 0)),  # lane-dense output
        compiler_params=pltpu.CompilerParams(dimension_semantics=("parallel",)),
    )(ids, pos, packed["tbl"], packed["wdw"], packed["vecd"],
      packed["w1"], packed["veci"], packed["w2"])
    return out[..., :TEXT_DIM]                            # strip the lane padding (glue)


# ---------------- pure-JAX reference ----------------
def reference_forward(text, seq_len, params, drop_text=False):
    text = text + 1
    text = text[:, :seq_len]
    _, nt = text.shape
    text = jnp.pad(text, ((0, 0), (0, seq_len - nt)), constant_values=0)
    if drop_text:
        text = jnp.zeros_like(text)
    x = params["embed"][text]
    pos_idx = jnp.minimum(jnp.arange(seq_len), PRECOMPUTE_MAX_POS - 1)
    x = x + params["freqs_cis"][pos_idx][None]
    for p in params["blocks"]:
        res = x
        xp = jnp.pad(x, ((0, 0), (3, 3), (0, 0)))
        conv = jnp.broadcast_to(p["b_dw"][None], x.shape)
        for k in range(7):
            conv = conv + xp[:, k:k + seq_len, :] * p["w_dw"][k][None, None, :]
        mean = jnp.mean(conv, axis=-1, keepdims=True)
        var = jnp.mean((conv - mean) ** 2, axis=-1, keepdims=True)
        h = (conv - mean) / jnp.sqrt(var + 1e-6)
        h = h * p["ln_g"][None] + p["ln_b"][None]
        h = jnp.einsum("bnd,de->bne", h, p["w1"], precision="highest") + p["b1"][None]
        h = jax.nn.gelu(h, approximate=False)
        gx = jnp.sqrt(jnp.sum(h * h, axis=1, keepdims=True))
        nx = gx / (jnp.mean(gx, axis=-1, keepdims=True) + 1e-6)
        h = p["grn_g"][None] * (h * nx) + p["grn_b"][None] + h
        h = jnp.einsum("bne,ed->bnd", h, p["w2"], precision="highest") + p["b2"][None]
        x = res + h
    return x


if __name__ == "__main__":
    key = jax.random.PRNGKey(0)
    pkey, tkey = jax.random.split(key)
    params = init_params(pkey)

    B, NT, SEQ_LEN = 2, 12, 16
    text = jax.random.randint(tkey, (B, NT), 0, TEXT_NUM_EMBEDS, dtype=jnp.int32)

    out = text_embedding_forward(text, SEQ_LEN, params, drop_text=False)
    out = jax.block_until_ready(out)
    assert out.shape == (B, SEQ_LEN, TEXT_DIM)

    ref = reference_forward(text, SEQ_LEN, params, drop_text=False)
    np.testing.assert_allclose(np.asarray(out), np.asarray(ref), rtol=2e-2, atol=2e-2)

    print("KERNEL_OK")
</pallas_src>

<mosaic_0001>
module attributes {stable_mosaic.version = 11 : i64} {
  func.func @_fused_text_embed_kernel(%arg0: i32, %arg1: memref<1x16x1xi32, #tpu.memory_space<vmem>>, %arg2: memref<16x128xf32, #tpu.memory_space<vmem>>, %arg3: memref<40x128xf32, #tpu.memory_space<vmem>>, %arg4: memref<2x7x128xf32, #tpu.memory_space<vmem>>, %arg5: memref<2x4x128xf32, #tpu.memory_space<vmem>>, %arg6: memref<2x128x128xbf16, #tpu.memory_space<vmem>>, %arg7: memref<2x3x128xf32, #tpu.memory_space<vmem>>, %arg8: memref<2x128x128xbf16, #tpu.memory_space<vmem>>, %arg9: memref<1x16x128xf32, #tpu.memory_space<vmem>>) attributes {dimension_semantics = [#tpu.dimension_semantics<parallel>], iteration_bounds = array<i64: 2>, scalar_prefetch = 0 : i64, scratch_operands = 0 : i64, tpu.core_type = #tpu.core_type<tc>, window_params = [{transform_indices = @transform_0, window_bounds = array<i64: 1, 16, 1>}, {pipeline_mode = #tpu.pipeline_mode<synchronous>, transform_indices = @transform_1, window_bounds = array<i64: 16, 128>}, {pipeline_mode = #tpu.pipeline_mode<synchronous>, transform_indices = @transform_2, window_bounds = array<i64: 40, 128>}, {pipeline_mode = #tpu.pipeline_mode<synchronous>, transform_indices = @transform_3, window_bounds = array<i64: 2, 7, 128>}, {pipeline_mode = #tpu.pipeline_mode<synchronous>, transform_indices = @transform_4, window_bounds = array<i64: 2, 4, 128>}, {pipeline_mode = #tpu.pipeline_mode<synchronous>, transform_indices = @transform_5, window_bounds = array<i64: 2, 128, 128>}, {pipeline_mode = #tpu.pipeline_mode<synchronous>, transform_indices = @transform_6, window_bounds = array<i64: 2, 3, 128>}, {pipeline_mode = #tpu.pipeline_mode<synchronous>, transform_indices = @transform_7, window_bounds = array<i64: 2, 128, 128>}, {transform_indices = @transform_8, window_bounds = array<i64: 1, 16, 128>}]} {
    %c0 = arith.constant 0 : index
    %c0_0 = arith.constant 0 : index
    %c0_1 = arith.constant 0 : index
    %0 = vector.load %arg1[%c0, %c0_0, %c0_1] : memref<1x16x1xi32, #tpu.memory_space<vmem>>, vector<1x16x1xi32>
    %1 = vector.shape_cast %0 : vector<1x16x1xi32> to vector<16x1xi32>
    %2 = tpu.iota {dimensions = array<i32: 1>} : vector<16x40xi32>
    %3 = vector.broadcast %1 : vector<16x1xi32> to vector<16x40xi32>
    %4 = arith.cmpi eq, %2, %3 : vector<16x40xi32>
    %5 = arith.extui %4 : vector<16x40xi1> to vector<16x40xi32>
    %6 = arith.sitofp %5 : vector<16x40xi32> to vector<16x40xf32>
    %c0_2 = arith.constant 0 : index
    %c0_3 = arith.constant 0 : index
    %7 = vector.load %arg3[%c0_2, %c0_3] : memref<40x128xf32, #tpu.memory_space<vmem>>, vector<40x128xf32>
    %cst = arith.constant dense<0.000000e+00> : vector<16x128xf32>
    %8 = tpu.matmul %6, %7, %cst {dimension_numbers = #tpu.dot_dimension_numbers<[1], [0], [0], [1], [0, 0, 1, 1], [], []>} : vector<16x40xf32>, vector<40x128xf32>, vector<16x128xf32> -> vector<16x128xf32>
    %c0_4 = arith.constant 0 : index
    %c0_5 = arith.constant 0 : index
    %9 = vector.load %arg2[%c0_4, %c0_5] : memref<16x128xf32, #tpu.memory_space<vmem>>, vector<16x128xf32>
    %10 = arith.addf %8, %9 : vector<16x128xf32>
    %11 = tpu.iota {dimensions = array<i32: 1>} : vector<1x128xi32>
    %c64_i32 = arith.constant 64 : i32
    %12 = vector.broadcast %c64_i32 : i32 to vector<1x128xi32>
    %13 = arith.cmpi slt, %11, %12 : vector<1x128xi32>
    %14 = arith.extui %13 : vector<1x128xi1> to vector<1x128xi32>
    %15 = arith.sitofp %14 : vector<1x128xi32> to vector<1x128xf32>
    %16 = tpu.iota {dimensions = array<i32: 0>} : vector<16x16xi32>
    %17 = tpu.iota {dimensions = array<i32: 1>} : vector<16x16xi32>
    %c0_6 = arith.constant 0 : index
    %c0_7 = arith.constant 0 : index
    %c0_8 = arith.constant 0 : index
    %18 = vector.load %arg4[%c0_6, %c0_7, %c0_8] : memref<2x7x128xf32, #tpu.memory_space<vmem>>, vector<1x7x128xf32>
    %19 = vector.shape_cast %18 : vector<1x7x128xf32> to vector<7x128xf32>
    %c0_9 = arith.constant 0 : index
    %c0_10 = arith.constant 0 : index
    %c0_11 = arith.constant 0 : index
    %20 = vector.load %arg5[%c0_9, %c0_10, %c0_11] : memref<2x4x128xf32, #tpu.memory_space<vmem>>, vector<1x4x128xf32>
    %21 = vector.shape_cast %20 : vector<1x4x128xf32> to vector<4x128xf32>
    %c0_12 = arith.constant 0 : index
    %c0_13 = arith.constant 0 : index
    %c0_14 = arith.constant 0 : index
    %22 = vector.load %arg7[%c0_12, %c0_13, %c0_14] : memref<2x3x128xf32, #tpu.memory_space<vmem>>, vector<1x3x128xf32>
    %23 = vector.shape_cast %22 : vector<1x3x128xf32> to vector<3x128xf32>
    %24 = vector.extract_strided_slice %21 {offsets = [0, 0], sizes = [1, 128], strides = [1, 1]} : vector<4x128xf32> to vector<1x128xf32>
    %25 = vector.shape_cast %24 : vector<1x128xf32> to vector<1x128xf32>
    %26 = vector.broadcast %25 : vector<1x128xf32> to vector<16x128xf32>
    %c-3_i32 = arith.constant -3 : i32
    %27 = vector.broadcast %c-3_i32 : i32 to vector<16x16xi32>
    %28 = arith.addi %16, %27 : vector<16x16xi32>
    %29 = arith.cmpi eq, %17, %28 : vector<16x16xi32>
    %30 = arith.extui %29 : vector<16x16xi1> to vector<16x16xi32>
    %31 = arith.sitofp %30 : vector<16x16xi32> to vector<16x16xf32>
    %cst_15 = arith.constant dense<0.000000e+00> : vector<16x128xf32>
    %32 = tpu.matmul %31, %10, %cst_15 {dimension_numbers = #tpu.dot_dimension_numbers<[1], [0], [0], [1], [0, 0, 1, 1], [], []>} : vector<16x16xf32>, vector<16x128xf32>, vector<16x128xf32> -> vector<16x128xf32>
    %33 = vector.extract_strided_slice %19 {offsets = [0, 0], sizes = [1, 128], strides = [1, 1]} : vector<7x128xf32> to vector<1x128xf32>
    %34 = vector.broadcast %33 : vector<1x128xf32> to vector<16x128xf32>
    %35 = arith.mulf %32, %34 : vector<16x128xf32>
    %36 = arith.addf %26, %35 : vector<16x128xf32>
    %c-2_i32 = arith.constant -2 : i32
    %37 = vector.broadcast %c-2_i32 : i32 to vector<16x16xi32>
    %38 = arith.addi %16, %37 : vector<16x16xi32>
    %39 = arith.cmpi eq, %17, %38 : vector<16x16xi32>
    %40 = arith.extui %39 : vector<16x16xi1> to vector<16x16xi32>
    %41 = arith.sitofp %40 : vector<16x16xi32> to vector<16x16xf32>
    %cst_16 = arith.constant dense<0.000000e+00> : vector<16x128xf32>
    %42 = tpu.matmul %41, %10, %cst_16 {dimension_numbers = #tpu.dot_dimension_numbers<[1], [0], [0], [1], [0, 0, 1, 1], [], []>} : vector<16x16xf32>, vector<16x128xf32>, vector<16x128xf32> -> vector<16x128xf32>
    %43 = vector.extract_strided_slice %19 {offsets = [1, 0], sizes = [1, 128], strides = [1, 1]} : vector<7x128xf32> to vector<1x128xf32>
    %44 = vector.broadcast %43 : vector<1x128xf32> to vector<16x128xf32>
    %45 = arith.mulf %42, %44 : vector<16x128xf32>
    %46 = arith.addf %36, %45 : vector<16x128xf32>
    %c-1_i32 = arith.constant -1 : i32
    %47 = vector.broadcast %c-1_i32 : i32 to vector<16x16xi32>
    %48 = arith.addi %16, %47 : vector<16x16xi32>
    %49 = arith.cmpi eq, %17, %48 : vector<16x16xi32>
    %50 = arith.extui %49 : vector<16x16xi1> to vector<16x16xi32>
    %51 = arith.sitofp %50 : vector<16x16xi32> to vector<16x16xf32>
    %cst_17 = arith.constant dense<0.000000e+00> : vector<16x128xf32>
    %52 = tpu.matmul %51, %10, %cst_17 {dimension_numbers = #tpu.dot_dimension_numbers<[1], [0], [0], [1], [0, 0, 1, 1], [], []>} : vector<16x16xf32>, vector<16x128xf32>, vector<16x128xf32> -> vector<16x128xf32>
    %53 = vector.extract_strided_slice %19 {offsets = [2, 0], sizes = [1, 128], strides = [1, 1]} : vector<7x128xf32> to vector<1x128xf32>
    %54 = vector.broadcast %53 : vector<1x128xf32> to vector<16x128xf32>
    %55 = arith.mulf %52, %54 : vector<16x128xf32>
    %56 = arith.addf %46, %55 : vector<16x128xf32>
    %c0_i32 = arith.constant 0 : i32
    %57 = vector.broadcast %c0_i32 : i32 to vector<16x16xi32>
    %58 = arith.addi %16, %57 : vector<16x16xi32>
    %59 = arith.cmpi eq, %17, %58 : vector<16x16xi32>
    %60 = arith.extui %59 : vector<16x16xi1> to vector<16x16xi32>
    %61 = arith.sitofp %60 : vector<16x16xi32> to vector<16x16xf32>
    %cst_18 = arith.constant dense<0.000000e+00> : vector<16x128xf32>
    %62 = tpu.matmul %61, %10, %cst_18 {dimension_numbers = #tpu.dot_dimension_numbers<[1], [0], [0], [1], [0, 0, 1, 1], [], []>} : vector<16x16xf32>, vector<16x128xf32>, vector<16x128xf32> -> vector<16x128xf32>
    %63 = vector.extract_strided_slice %19 {offsets = [3, 0], sizes = [1, 128], strides = [1, 1]} : vector<7x128xf32> to vector<1x128xf32>
    %64 = vector.broadcast %63 : vector<1x128xf32> to vector<16x128xf32>
    %65 = arith.mulf %62, %64 : vector<16x128xf32>
    %66 = arith.addf %56, %65 : vector<16x128xf32>
    %c1_i32 = arith.constant 1 : i32
    %67 = vector.broadcast %c1_i32 : i32 to vector<16x16xi32>
    %68 = arith.addi %16, %67 : vector<16x16xi32>
    %69 = arith.cmpi eq, %17, %68 : vector<16x16xi32>
    %70 = arith.extui %69 : vector<16x16xi1> to vector<16x16xi32>
    %71 = arith.sitofp %70 : vector<16x16xi32> to vector<16x16xf32>
    %cst_19 = arith.constant dense<0.000000e+00> : vector<16x128xf32>
    %72 = tpu.matmul %71, %10, %cst_19 {dimension_numbers = #tpu.dot_dimension_numbers<[1], [0], [0], [1], [0, 0, 1, 1], [], []>} : vector<16x16xf32>, vector<16x128xf32>, vector<16x128xf32> -> vector<16x128xf32>
    %73 = vector.extract_strided_slice %19 {offsets = [4, 0], sizes = [1, 128], strides = [1, 1]} : vector<7x128xf32> to vector<1x128xf32>
    %74 = vector.broadcast %73 : vector<1x128xf32> to vector<16x128xf32>
    %75 = arith.mulf %72, %74 : vector<16x128xf32>
    %76 = arith.addf %66, %75 : vector<16x128xf32>
    %c2_i32 = arith.constant 2 : i32
    %77 = vector.broadcast %c2_i32 : i32 to vector<16x16xi32>
    %78 = arith.addi %16, %77 : vector<16x16xi32>
    %79 = arith.cmpi eq, %17, %78 : vector<16x16xi32>
    %80 = arith.extui %79 : vector<16x16xi1> to vector<16x16xi32>
    %81 = arith.sitofp %80 : vector<16x16xi32> to vector<16x16xf32>
    %cst_20 = arith.constant dense<0.000000e+00> : vector<16x128xf32>
    %82 = tpu.matmul %81, %10, %cst_20 {dimension_numbers = #tpu.dot_dimension_numbers<[1], [0], [0], [1], [0, 0, 1, 1], [], []>} : vector<16x16xf32>, vector<16x128xf32>, vector<16x128xf32> -> vector<16x128xf32>
    %83 = vector.extract_strided_slice %19 {offsets = [5, 0], sizes = [1, 128], strides = [1, 1]} : vector<7x128xf32> to vector<1x128xf32>
    %84 = vector.broadcast %83 : vector<1x128xf32> to vector<16x128xf32>
    %85 = arith.mulf %82, %84 : vector<16x128xf32>
    %86 = arith.addf %76, %85 : vector<16x128xf32>
    %c3_i32 = arith.constant 3 : i32
    %87 = vector.broadcast %c3_i32 : i32 to vector<16x16xi32>
    %88 = arith.addi %16, %87 : vector<16x16xi32>
    %89 = arith.cmpi eq, %17, %88 : vector<16x16xi32>
    %90 = arith.extui %89 : vector<16x16xi1> to vector<16x16xi32>
    %91 = arith.sitofp %90 : vector<16x16xi32> to vector<16x16xf32>
    %cst_21 = arith.constant dense<0.000000e+00> : vector<16x128xf32>
    %92 = tpu.matmul %91, %10, %cst_21 {dimension_numbers = #tpu.dot_dimension_numbers<[1], [0], [0], [1], [0, 0, 1, 1], [], []>} : vector<16x16xf32>, vector<16x128xf32>, vector<16x128xf32> -> vector<16x128xf32>
    %93 = vector.extract_strided_slice %19 {offsets = [6, 0], sizes = [1, 128], strides = [1, 1]} : vector<7x128xf32> to vector<1x128xf32>
    %94 = vector.broadcast %93 : vector<1x128xf32> to vector<16x128xf32>
    %95 = arith.mulf %92, %94 : vector<16x128xf32>
    %96 = arith.addf %86, %95 : vector<16x128xf32>
    %cst_22 = arith.constant dense<0.000000e+00> : vector<16xf32>
    %97 = vector.multi_reduction <add>, %96, %cst_22 [1] : vector<16x128xf32> to vector<16xf32>
    %98 = vector.shape_cast %97 : vector<16xf32> to vector<16x1xf32>
    %cst_23 = arith.constant 1.562500e-02 : f32
    %99 = vector.broadcast %cst_23 : f32 to vector<16x1xf32>
    %100 = arith.mulf %98, %99 : vector<16x1xf32>
    %101 = vector.broadcast %100 : vector<16x1xf32> to vector<16x128xf32>
    %102 = arith.subf %96, %101 : vector<16x128xf32>
    %103 = arith.mulf %102, %102 : vector<16x128xf32>
    %104 = vector.broadcast %15 : vector<1x128xf32> to vector<16x128xf32>
    %105 = arith.mulf %103, %104 : vector<16x128xf32>
    %cst_24 = arith.constant dense<0.000000e+00> : vector<16xf32>
    %106 = vector.multi_reduction <add>, %105, %cst_24 [1] : vector<16x128xf32> to vector<16xf32>
    %107 = vector.shape_cast %106 : vector<16xf32> to vector<16x1xf32>
    %cst_25 = arith.constant 1.562500e-02 : f32
    %108 = vector.broadcast %cst_25 : f32 to vector<16x1xf32>
    %109 = arith.mulf %107, %108 : vector<16x1xf32>
    %cst_26 = arith.constant 9.99999997E-7 : f32
    %110 = vector.broadcast %cst_26 : f32 to vector<16x1xf32>
    %111 = arith.addf %109, %110 : vector<16x1xf32>
    %112 = math.rsqrt %111 : vector<16x1xf32>
    %113 = vector.broadcast %112 : vector<16x1xf32> to vector<16x128xf32>
    %114 = arith.mulf %102, %113 : vector<16x128xf32>
    %115 = vector.extract_strided_slice %21 {offsets = [1, 0], sizes = [1, 128], strides = [1, 1]} : vector<4x128xf32> to vector<1x128xf32>
    %116 = vector.broadcast %115 : vector<1x128xf32> to vector<16x128xf32>
    %117 = arith.mulf %114, %116 : vector<16x128xf32>
    %118 = vector.extract_strided_slice %21 {offsets = [2, 0], sizes = [1, 128], strides = [1, 1]} : vector<4x128xf32> to vector<1x128xf32>
    %119 = vector.broadcast %118 : vector<1x128xf32> to vector<16x128xf32>
    %120 = arith.addf %117, %119 : vector<16x128xf32>
    %121 = arith.truncf %120 : vector<16x128xf32> to vector<16x128xbf16>
    %c0_27 = arith.constant 0 : index
    %c0_28 = arith.constant 0 : index
    %c0_29 = arith.constant 0 : index
    %122 = vector.load %arg6[%c0_27, %c0_28, %c0_29] : memref<2x128x128xbf16, #tpu.memory_space<vmem>>, vector<1x128x128xbf16>
    %123 = vector.shape_cast %122 : vector<1x128x128xbf16> to vector<128x128xbf16>
    %cst_30 = arith.constant dense<0.000000e+00> : vector<16x128xf32>
    %124 = tpu.matmul %121, %123, %cst_30 {dimension_numbers = #tpu.dot_dimension_numbers<[1], [0], [0], [1], [0, 0, 1, 1], [], []>} : vector<16x128xbf16>, vector<128x128xbf16>, vector<16x128xf32> -> vector<16x128xf32>
    %125 = vector.extract_strided_slice %23 {offsets = [0, 0], sizes = [1, 128], strides = [1, 1]} : vector<3x128xf32> to vector<1x128xf32>
    %126 = vector.broadcast %125 : vector<1x128xf32> to vector<16x128xf32>
    %127 = arith.addf %124, %126 : vector<16x128xf32>
    %cst_31 = arith.constant 5.000000e-01 : f32
    %128 = vector.broadcast %cst_31 : f32 to vector<16x128xf32>
    %129 = arith.mulf %128, %127 : vector<16x128xf32>
    %cst_32 = arith.constant 0.707106769 : f32
    %130 = vector.broadcast %cst_32 : f32 to vector<16x128xf32>
    %131 = arith.mulf %127, %130 : vector<16x128xf32>
    %cst_33 = arith.constant 0.000000e+00 : f32
    %132 = vector.broadcast %cst_33 : f32 to vector<16x128xf32>
    %133 = arith.cmpf oge, %131, %132 : vector<16x128xf32>
    %cst_34 = arith.constant 1.000000e+00 : f32
    %cst_35 = arith.constant -1.000000e+00 : f32
    %134 = vector.broadcast %cst_34 : f32 to vector<16x128xf32>
    %135 = vector.broadcast %cst_35 : f32 to vector<16x128xf32>
    %136 = arith.select %133, %134, %135 : vector<16x128xi1>, vector<16x128xf32>
    %137 = math.absf %131 : vector<16x128xf32>
    %cst_36 = arith.constant 0.327591091 : f32
    %138 = vector.broadcast %cst_36 : f32 to vector<16x128xf32>
    %139 = arith.mulf %138, %137 : vector<16x128xf32>
    %cst_37 = arith.constant 1.000000e+00 : f32
    %140 = vector.broadcast %cst_37 : f32 to vector<16x128xf32>
    %141 = arith.addf %140, %139 : vector<16x128xf32>
    %142 = tpu.reciprocal %141 {approx = true} : vector<16x128xf32> -> vector<16x128xf32>
    %cst_38 = arith.constant 1.06140542 : f32
    %143 = vector.broadcast %cst_38 : f32 to vector<16x128xf32>
    %144 = arith.mulf %143, %142 : vector<16x128xf32>
    %cst_39 = arith.constant -1.45315206 : f32
    %145 = vector.broadcast %cst_39 : f32 to vector<16x128xf32>
    %146 = arith.addf %144, %145 : vector<16x128xf32>
    %147 = arith.mulf %146, %142 : vector<16x128xf32>
    %cst_40 = arith.constant 1.42141378 : f32
    %148 = vector.broadcast %cst_40 : f32 to vector<16x128xf32>
    %149 = arith.addf %147, %148 : vector<16x128xf32>
    %150 = arith.mulf %149, %142 : vector<16x128xf32>
    %cst_41 = arith.constant -0.284496725 : f32
    %151 = vector.broadcast %cst_41 : f32 to vector<16x128xf32>
    %152 = arith.addf %150, %151 : vector<16x128xf32>
    %153 = arith.mulf %152, %142 : vector<16x128xf32>
    %cst_42 = arith.constant 0.254829586 : f32
    %154 = vector.broadcast %cst_42 : f32 to vector<16x128xf32>
    %155 = arith.addf %153, %154 : vector<16x128xf32>
    %156 = arith.mulf %155, %142 : vector<16x128xf32>
    %cst_43 = arith.constant 0.000000e+00 : f32
    %157 = vector.broadcast %cst_43 : f32 to vector<16x128xf32>
    %158 = arith.subf %157, %137 : vector<16x128xf32>
    %159 = arith.mulf %158, %137 : vector<16x128xf32>
    %160 = math.exp %159 : vector<16x128xf32>
    %161 = arith.mulf %156, %160 : vector<16x128xf32>
    %cst_44 = arith.constant 1.000000e+00 : f32
    %162 = vector.broadcast %cst_44 : f32 to vector<16x128xf32>
    %163 = arith.subf %162, %161 : vector<16x128xf32>
    %164 = arith.mulf %136, %163 : vector<16x128xf32>
    %cst_45 = arith.constant 1.000000e+00 : f32
    %165 = vector.broadcast %cst_45 : f32 to vector<16x128xf32>
    %166 = arith.addf %165, %164 : vector<16x128xf32>
    %167 = arith.mulf %129, %166 : vector<16x128xf32>
    %168 = arith.mulf %167, %167 : vector<16x128xf32>
    %cst_46 = arith.constant dense<0.000000e+00> : vector<128xf32>
    %169 = vector.multi_reduction <add>, %168, %cst_46 [0] : vector<16x128xf32> to vector<128xf32>
    %170 = vector.shape_cast %169 : vector<128xf32> to vector<1x128xf32>
    %171 = math.sqrt %170 : vector<1x128xf32>
    %cst_47 = arith.constant dense<0.000000e+00> : vector<1xf32>
    %172 = vector.multi_reduction <add>, %171, %cst_47 [1] : vector<1x128xf32> to vector<1xf32>
    %173 = vector.shape_cast %172 : vector<1xf32> to vector<1x1xf32>
    %cst_48 = arith.constant 1.280000e+02 : f32
    %174 = vector.broadcast %cst_48 : f32 to vector<1x1xf32>
    %175 = arith.divf %173, %174 : vector<1x1xf32>
    %cst_49 = arith.constant 9.99999997E-7 : f32
    %176 = vector.broadcast %cst_49 : f32 to vector<1x1xf32>
    %177 = arith.addf %175, %176 : vector<1x1xf32>
    %178 = tpu.reciprocal %177 {approx = true} : vector<1x1xf32> -> vector<1x1xf32>
    %179 = vector.broadcast %178 : vector<1x1xf32> to vector<1x128xf32>
    %180 = arith.mulf %171, %179 : vector<1x128xf32>
    %181 = vector.extract_strided_slice %23 {offsets = [1, 0], sizes = [1, 128], strides = [1, 1]} : vector<3x128xf32> to vector<1x128xf32>
    %182 = vector.broadcast %180 : vector<1x128xf32> to vector<16x128xf32>
    %183 = arith.mulf %167, %182 : vector<16x128xf32>
    %184 = vector.broadcast %181 : vector<1x128xf32> to vector<16x128xf32>
    %185 = arith.mulf %184, %183 : vector<16x128xf32>
    %186 = vector.extract_strided_slice %23 {offsets = [2, 0], sizes = [1, 128], strides = [1, 1]} : vector<3x128xf32> to vector<1x128xf32>
    %187 = vector.broadcast %186 : vector<1x128xf32> to vector<16x128xf32>
    %188 = arith.addf %185, %187 : vector<16x128xf32>
    %189 = arith.addf %188, %167 : vector<16x128xf32>
    %190 = arith.truncf %189 : vector<16x128xf32> to vector<16x128xbf16>
    %c0_50 = arith.constant 0 : index
    %c0_51 = arith.constant 0 : index
    %c0_52 = arith.constant 0 : index
    %191 = vector.load %arg8[%c0_50, %c0_51, %c0_52] : memref<2x128x128xbf16, #tpu.memory_space<vmem>>, vector<1x128x128xbf16>
    %192 = vector.shape_cast %191 : vector<1x128x128xbf16> to vector<128x128xbf16>
    %cst_53 = arith.constant dense<0.000000e+00> : vector<16x128xf32>
    %193 = tpu.matmul %190, %192, %cst_53 {dimension_numbers = #tpu.dot_dimension_numbers<[1], [0], [0], [1], [0, 0, 1, 1], [], []>} : vector<16x128xbf16>, vector<128x128xbf16>, vector<16x128xf32> -> vector<16x128xf32>
    %194 = vector.extract_strided_slice %21 {offsets = [3, 0], sizes = [1, 128], strides = [1, 1]} : vector<4x128xf32> to vector<1x128xf32>
    %195 = vector.broadcast %194 : vector<1x128xf32> to vector<16x128xf32>
    %196 = arith.addf %193, %195 : vector<16x128xf32>
    %197 = arith.addf %10, %196 : vector<16x128xf32>
    %c1 = arith.constant 1 : index
    %c0_54 = arith.constant 0 : index
    %c0_55 = arith.constant 0 : index
    %198 = vector.load %arg4[%c1, %c0_54, %c0_55] : memref<2x7x128xf32, #tpu.memory_space<vmem>>, vector<1x7x128xf32>
    %199 = vector.shape_cast %198 : vector<1x7x128xf32> to vector<7x128xf32>
    %c1_56 = arith.constant 1 : index
    %c0_57 = arith.constant 0 : index
    %c0_58 = arith.constant 0 : index
    %200 = vector.load %arg5[%c1_56, %c0_57, %c0_58] : memref<2x4x128xf32, #tpu.memory_space<vmem>>, vector<1x4x128xf32>
    %201 = vector.shape_cast %200 : vector<1x4x128xf32> to vector<4x128xf32>
    %c1_59 = arith.constant 1 : index
    %c0_60 = arith.constant 0 : index
    %c0_61 = arith.constant 0 : index
    %202 = vector.load %arg7[%c1_59, %c0_60, %c0_61] : memref<2x3x128xf32, #tpu.memory_space<vmem>>, vector<1x3x128xf32>
    %203 = vector.shape_cast %202 : vector<1x3x128xf32> to vector<3x128xf32>
    %204 = vector.extract_strided_slice %201 {offsets = [0, 0], sizes = [1, 128], strides = [1, 1]} : vector<4x128xf32> to vector<1x128xf32>
    %205 = vector.shape_cast %204 : vector<1x128xf32> to vector<1x128xf32>
    %206 = vector.broadcast %205 : vector<1x128xf32> to vector<16x128xf32>
    %c-3_i32_62 = arith.constant -3 : i32
    %207 = vector.broadcast %c-3_i32_62 : i32 to vector<16x16xi32>
    %208 = arith.addi %16, %207 : vector<16x16xi32>
    %209 = arith.cmpi eq, %17, %208 : vector<16x16xi32>
    %210 = arith.extui %209 : vector<16x16xi1> to vector<16x16xi32>
    %211 = arith.sitofp %210 : vector<16x16xi32> to vector<16x16xf32>
    %cst_63 = arith.constant dense<0.000000e+00> : vector<16x128xf32>
    %212 = tpu.matmul %211, %197, %cst_63 {dimension_numbers = #tpu.dot_dimension_numbers<[1], [0], [0], [1], [0, 0, 1, 1], [], []>} : vector<16x16xf32>, vector<16x128xf32>, vector<16x128xf32> -> vector<16x128xf32>
    %213 = vector.extract_strided_slice %199 {offsets = [0, 0], sizes = [1, 128], strides = [1, 1]} : vector<7x128xf32> to vector<1x128xf32>
    %214 = vector.broadcast %213 : vector<1x128xf32> to vector<16x128xf32>
    %215 = arith.mulf %212, %214 : vector<16x128xf32>
    %216 = arith.addf %206, %215 : vector<16x128xf32>
    %c-2_i32_64 = arith.constant -2 : i32
    %217 = vector.broadcast %c-2_i32_64 : i32 to vector<16x16xi32>
    %218 = arith.addi %16, %217 : vector<16x16xi32>
    %219 = arith.cmpi eq, %17, %218 : vector<16x16xi32>
    %220 = arith.extui %219 : vector<16x16xi1> to vector<16x16xi32>
    %221 = arith.sitofp %220 : vector<16x16xi32> to vector<16x16xf32>
    %cst_65 = arith.constant dense<0.000000e+00> : vector<16x128xf32>
    %222 = tpu.matmul %221, %197, %cst_65 {dimension_numbers = #tpu.dot_dimension_numbers<[1], [0], [0], [1], [0, 0, 1, 1], [], []>} : vector<16x16xf32>, vector<16x128xf32>, vector<16x128xf32> -> vector<16x128xf32>
    %223 = vector.extract_strided_slice %199 {offsets = [1, 0], sizes = [1, 128], strides = [1, 1]} : vector<7x128xf32> to vector<1x128xf32>
    %224 = vector.broadcast %223 : vector<1x128xf32> to vector<16x128xf32>
    %225 = arith.mulf %222, %224 : vector<16x128xf32>
    %226 = arith.addf %216, %225 : vector<16x128xf32>
    %c-1_i32_66 = arith.constant -1 : i32
    %227 = vector.broadcast %c-1_i32_66 : i32 to vector<16x16xi32>
    %228 = arith.addi %16, %227 : vector<16x16xi32>
    %229 = arith.cmpi eq, %17, %228 : vector<16x16xi32>
    %230 = arith.extui %229 : vector<16x16xi1> to vector<16x16xi32>
    %231 = arith.sitofp %230 : vector<16x16xi32> to vector<16x16xf32>
    %cst_67 = arith.constant dense<0.000000e+00> : vector<16x128xf32>
    %232 = tpu.matmul %231, %197, %cst_67 {dimension_numbers = #tpu.dot_dimension_numbers<[1], [0], [0], [1], [0, 0, 1, 1], [], []>} : vector<16x16xf32>, vector<16x128xf32>, vector<16x128xf32> -> vector<16x128xf32>
    %233 = vector.extract_strided_slice %199 {offsets = [2, 0], sizes = [1, 128], strides = [1, 1]} : vector<7x128xf32> to vector<1x128xf32>
    %234 = vector.broadcast %233 : vector<1x128xf32> to vector<16x128xf32>
    %235 = arith.mulf %232, %234 : vector<16x128xf32>
    %236 = arith.addf %226, %235 : vector<16x128xf32>
    %c0_i32_68 = arith.constant 0 : i32
    %237 = vector.broadcast %c0_i32_68 : i32 to vector<16x16xi32>
    %238 = arith.addi %16, %237 : vector<16x16xi32>
    %239 = arith.cmpi eq, %17, %238 : vector<16x16xi32>
    %240 = arith.extui %239 : vector<16x16xi1> to vector<16x16xi32>
    %241 = arith.sitofp %240 : vector<16x16xi32> to vector<16x16xf32>
    %cst_69 = arith.constant dense<0.000000e+00> : vector<16x128xf32>
    %242 = tpu.matmul %241, %197, %cst_69 {dimension_numbers = #tpu.dot_dimension_numbers<[1], [0], [0], [1], [0, 0, 1, 1], [], []>} : vector<16x16xf32>, vector<16x128xf32>, vector<16x128xf32> -> vector<16x128xf32>
    %243 = vector.extract_strided_slice %199 {offsets = [3, 0], sizes = [1, 128], strides = [1, 1]} : vector<7x128xf32> to vector<1x128xf32>
    %244 = vector.broadcast %243 : vector<1x128xf32> to vector<16x128xf32>
    %245 = arith.mulf %242, %244 : vector<16x128xf32>
    %246 = arith.addf %236, %245 : vector<16x128xf32>
    %c1_i32_70 = arith.constant 1 : i32
    %247 = vector.broadcast %c1_i32_70 : i32 to vector<16x16xi32>
    %248 = arith.addi %16, %247 : vector<16x16xi32>
    %249 = arith.cmpi eq, %17, %248 : vector<16x16xi32>
    %250 = arith.extui %249 : vector<16x16xi1> to vector<16x16xi32>
    %251 = arith.sitofp %250 : vector<16x16xi32> to vector<16x16xf32>
    %cst_71 = arith.constant dense<0.000000e+00> : vector<16x128xf32>
    %252 = tpu.matmul %251, %197, %cst_71 {dimension_numbers = #tpu.dot_dimension_numbers<[1], [0], [0], [1], [0, 0, 1, 1], [], []>} : vector<16x16xf32>, vector<16x128xf32>, vector<16x128xf32> -> vector<16x128xf32>
    %253 = vector.extract_strided_slice %199 {offsets = [4, 0], sizes = [1, 128], strides = [1, 1]} : vector<7x128xf32> to vector<1x128xf32>
    %254 = vector.broadcast %253 : vector<1x128xf32> to vector<16x128xf32>
    %255 = arith.mulf %252, %254 : vector<16x128xf32>
    %256 = arith.addf %246, %255 : vector<16x128xf32>
    %c2_i32_72 = arith.constant 2 : i32
    %257 = vector.broadcast %c2_i32_72 : i32 to vector<16x16xi32>
    %258 = arith.addi %16, %257 : vector<16x16xi32>
    %259 = arith.cmpi eq, %17, %258 : vector<16x16xi32>
    %260 = arith.extui %259 : vector<16x16xi1> to vector<16x16xi32>
    %261 = arith.sitofp %260 : vector<16x16xi32> to vector<16x16xf32>
    %cst_73 = arith.constant dense<0.000000e+00> : vector<16x128xf32>
    %262 = tpu.matmul %261, %197, %cst_73 {dimension_numbers = #tpu.dot_dimension_numbers<[1], [0], [0], [1], [0, 0, 1, 1], [], []>} : vector<16x16xf32>, vector<16x128xf32>, vector<16x128xf32> -> vector<16x128xf32>
    %263 = vector.extract_strided_slice %199 {offsets = [5, 0], sizes = [1, 128], strides = [1, 1]} : vector<7x128xf32> to vector<1x128xf32>
    %264 = vector.broadcast %263 : vector<1x128xf32> to vector<16x128xf32>
    %265 = arith.mulf %262, %264 : vector<16x128xf32>
    %266 = arith.addf %256, %265 : vector<16x128xf32>
    %c3_i32_74 = arith.constant 3 : i32
    %267 = vector.broadcast %c3_i32_74 : i32 to vector<16x16xi32>
    %268 = arith.addi %16, %267 : vector<16x16xi32>
    %269 = arith.cmpi eq, %17, %268 : vector<16x16xi32>
    %270 = arith.extui %269 : vector<16x16xi1> to vector<16x16xi32>
    %271 = arith.sitofp %270 : vector<16x16xi32> to vector<16x16xf32>
    %cst_75 = arith.constant dense<0.000000e+00> : vector<16x128xf32>
    %272 = tpu.matmul %271, %197, %cst_75 {dimension_numbers = #tpu.dot_dimension_numbers<[1], [0], [0], [1], [0, 0, 1, 1], [], []>} : vector<16x16xf32>, vector<16x128xf32>, vector<16x128xf32> -> vector<16x128xf32>
    %273 = vector.extract_strided_slice %199 {offsets = [6, 0], sizes = [1, 128], strides = [1, 1]} : vector<7x128xf32> to vector<1x128xf32>
    %274 = vector.broadcast %273 : vector<1x128xf32> to vector<16x128xf32>
    %275 = arith.mulf %272, %274 : vector<16x128xf32>
    %276 = arith.addf %266, %275 : vector<16x128xf32>
    %cst_76 = arith.constant dense<0.000000e+00> : vector<16xf32>
    %277 = vector.multi_reduction <add>, %276, %cst_76 [1] : vector<16x128xf32> to vector<16xf32>
    %278 = vector.shape_cast %277 : vector<16xf32> to vector<16x1xf32>
    %cst_77 = arith.constant 1.562500e-02 : f32
    %279 = vector.broadcast %cst_77 : f32 to vector<16x1xf32>
    %280 = arith.mulf %278, %279 : vector<16x1xf32>
    %281 = vector.broadcast %280 : vector<16x1xf32> to vector<16x128xf32>
    %282 = arith.subf %276, %281 : vector<16x128xf32>
    %283 = arith.mulf %282, %282 : vector<16x128xf32>
    %284 = vector.broadcast %15 : vector<1x128xf32> to vector<16x128xf32>
    %285 = arith.mulf %283, %284 : vector<16x128xf32>
    %cst_78 = arith.constant dense<0.000000e+00> : vector<16xf32>
    %286 = vector.multi_reduction <add>, %285, %cst_78 [1] : vector<16x128xf32> to vector<16xf32>
    %287 = vector.shape_cast %286 : vector<16xf32> to vector<16x1xf32>
    %cst_79 = arith.constant 1.562500e-02 : f32
    %288 = vector.broadcast %cst_79 : f32 to vector<16x1xf32>
    %289 = arith.mulf %287, %288 : vector<16x1xf32>
    %cst_80 = arith.constant 9.99999997E-7 : f32
    %290 = vector.broadcast %cst_80 : f32 to vector<16x1xf32>
    %291 = arith.addf %289, %290 : vector<16x1xf32>
    %292 = math.rsqrt %291 : vector<16x1xf32>
    %293 = vector.broadcast %292 : vector<16x1xf32> to vector<16x128xf32>
    %294 = arith.mulf %282, %293 : vector<16x128xf32>
    %295 = vector.extract_strided_slice %201 {offsets = [1, 0], sizes = [1, 128], strides = [1, 1]} : vector<4x128xf32> to vector<1x128xf32>
    %296 = vector.broadcast %295 : vector<1x128xf32> to vector<16x128xf32>
    %297 = arith.mulf %294, %296 : vector<16x128xf32>
    %298 = vector.extract_strided_slice %201 {offsets = [2, 0], sizes = [1, 128], strides = [1, 1]} : vector<4x128xf32> to vector<1x128xf32>
    %299 = vector.broadcast %298 : vector<1x128xf32> to vector<16x128xf32>
    %300 = arith.addf %297, %299 : vector<16x128xf32>
    %301 = arith.truncf %300 : vector<16x128xf32> to vector<16x128xbf16>
    %c1_81 = arith.constant 1 : index
    %c0_82 = arith.constant 0 : index
    %c0_83 = arith.constant 0 : index
    %302 = vector.load %arg6[%c1_81, %c0_82, %c0_83] : memref<2x128x128xbf16, #tpu.memory_space<vmem>>, vector<1x128x128xbf16>
    %303 = vector.shape_cast %302 : vector<1x128x128xbf16> to vector<128x128xbf16>
    %cst_84 = arith.constant dense<0.000000e+00> : vector<16x128xf32>
    %304 = tpu.matmul %301, %303, %cst_84 {dimension_numbers = #tpu.dot_dimension_numbers<[1], [0], [0], [1], [0, 0, 1, 1], [], []>} : vector<16x128xbf16>, vector<128x128xbf16>, vector<16x128xf32> -> vector<16x128xf32>
    %305 = vector.extract_strided_slice %203 {offsets = [0, 0], sizes = [1, 128], strides = [1, 1]} : vector<3x128xf32> to vector<1x128xf32>
    %306 = vector.broadcast %305 : vector<1x128xf32> to vector<16x128xf32>
    %307 = arith.addf %304, %306 : vector<16x128xf32>
    %cst_85 = arith.constant 5.000000e-01 : f32
    %308 = vector.broadcast %cst_85 : f32 to vector<16x128xf32>
    %309 = arith.mulf %308, %307 : vector<16x128xf32>
    %cst_86 = arith.constant 0.707106769 : f32
    %310 = vector.broadcast %cst_86 : f32 to vector<16x128xf32>
    %311 = arith.mulf %307, %310 : vector<16x128xf32>
    %cst_87 = arith.constant 0.000000e+00 : f32
    %312 = vector.broadcast %cst_87 : f32 to vector<16x128xf32>
    %313 = arith.cmpf oge, %311, %312 : vector<16x128xf32>
    %cst_88 = arith.constant 1.000000e+00 : f32
    %cst_89 = arith.constant -1.000000e+00 : f32
    %314 = vector.broadcast %cst_88 : f32 to vector<16x128xf32>
    %315 = vector.broadcast %cst_89 : f32 to vector<16x128xf32>
    %316 = arith.select %313, %314, %315 : vector<16x128xi1>, vector<16x128xf32>
    %317 = math.absf %311 : vector<16x128xf32>
    %cst_90 = arith.constant 0.327591091 : f32
    %318 = vector.broadcast %cst_90 : f32 to vector<16x128xf32>
    %319 = arith.mulf %318, %317 : vector<16x128xf32>
    %cst_91 = arith.constant 1.000000e+00 : f32
    %320 = vector.broadcast %cst_91 : f32 to vector<16x128xf32>
    %321 = arith.addf %320, %319 : vector<16x128xf32>
    %322 = tpu.reciprocal %321 {approx = true} : vector<16x128xf32> -> vector<16x128xf32>
    %cst_92 = arith.constant 1.06140542 : f32
    %323 = vector.broadcast %cst_92 : f32 to vector<16x128xf32>
    %324 = arith.mulf %323, %322 : vector<16x128xf32>
    %cst_93 = arith.constant -1.45315206 : f32
    %325 = vector.broadcast %cst_93 : f32 to vector<16x128xf32>
    %326 = arith.addf %324, %325 : vector<16x128xf32>
    %327 = arith.mulf %326, %322 : vector<16x128xf32>
    %cst_94 = arith.constant 1.42141378 : f32
    %328 = vector.broadcast %cst_94 : f32 to vector<16x128xf32>
    %329 = arith.addf %327, %328 : vector<16x128xf32>
    %330 = arith.mulf %329, %322 : vector<16x128xf32>
    %cst_95 = arith.constant -0.284496725 : f32
    %331 = vector.broadcast %cst_95 : f32 to vector<16x128xf32>
    %332 = arith.addf %330, %331 : vector<16x128xf32>
    %333 = arith.mulf %332, %322 : vector<16x128xf32>
    %cst_96 = arith.constant 0.254829586 : f32
    %334 = vector.broadcast %cst_96 : f32 to vector<16x128xf32>
    %335 = arith.addf %333, %334 : vector<16x128xf32>
    %336 = arith.mulf %335, %322 : vector<16x128xf32>
    %cst_97 = arith.constant 0.000000e+00 : f32
    %337 = vector.broadcast %cst_97 : f32 to vector<16x128xf32>
    %338 = arith.subf %337, %317 : vector<16x128xf32>
    %339 = arith.mulf %338, %317 : vector<16x128xf32>
    %340 = math.exp %339 : vector<16x128xf32>
    %341 = arith.mulf %336, %340 : vector<16x128xf32>
    %cst_98 = arith.constant 1.000000e+00 : f32
    %342 = vector.broadcast %cst_98 : f32 to vector<16x128xf32>
    %343 = arith.subf %342, %341 : vector<16x128xf32>
    %344 = arith.mulf %316, %343 : vector<16x128xf32>
    %cst_99 = arith.constant 1.000000e+00 : f32
    %345 = vector.broadcast %cst_99 : f32 to vector<16x128xf32>
    %346 = arith.addf %345, %344 : vector<16x128xf32>
    %347 = arith.mulf %309, %346 : vector<16x128xf32>
    %348 = arith.mulf %347, %347 : vector<16x128xf32>
    %cst_100 = arith.constant dense<0.000000e+00> : vector<128xf32>
    %349 = vector.multi_reduction <add>, %348, %cst_100 [0] : vector<16x128xf32> to vector<128xf32>
    %350 = vector.shape_cast %349 : vector<128xf32> to vector<1x128xf32>
    %351 = math.sqrt %350 : vector<1x128xf32>
    %cst_101 = arith.constant dense<0.000000e+00> : vector<1xf32>
    %352 = vector.multi_reduction <add>, %351, %cst_101 [1] : vector<1x128xf32> to vector<1xf32>
    %353 = vector.shape_cast %352 : vector<1xf32> to vector<1x1xf32>
    %cst_102 = arith.constant 1.280000e+02 : f32
    %354 = vector.broadcast %cst_102 : f32 to vector<1x1xf32>
    %355 = arith.divf %353, %354 : vector<1x1xf32>
    %cst_103 = arith.constant 9.99999997E-7 : f32
    %356 = vector.broadcast %cst_103 : f32 to vector<1x1xf32>
    %357 = arith.addf %355, %356 : vector<1x1xf32>
    %358 = tpu.reciprocal %357 {approx = true} : vector<1x1xf32> -> vector<1x1xf32>
    %359 = vector.broadcast %358 : vector<1x1xf32> to vector<1x128xf32>
    %360 = arith.mulf %351, %359 : vector<1x128xf32>
    %361 = vector.extract_strided_slice %203 {offsets = [1, 0], sizes = [1, 128], strides = [1, 1]} : vector<3x128xf32> to vector<1x128xf32>
    %362 = vector.broadcast %360 : vector<1x128xf32> to vector<16x128xf32>
    %363 = arith.mulf %347, %362 : vector<16x128xf32>
    %364 = vector.broadcast %361 : vector<1x128xf32> to vector<16x128xf32>
    %365 = arith.mulf %364, %363 : vector<16x128xf32>
    %366 = vector.extract_strided_slice %203 {offsets = [2, 0], sizes = [1, 128], strides = [1, 1]} : vector<3x128xf32> to vector<1x128xf32>
    %367 = vector.broadcast %366 : vector<1x128xf32> to vector<16x128xf32>
    %368 = arith.addf %365, %367 : vector<16x128xf32>
    %369 = arith.addf %368, %347 : vector<16x128xf32>
    %370 = arith.truncf %369 : vector<16x128xf32> to vector<16x128xbf16>
    %c1_104 = arith.constant 1 : index
    %c0_105 = arith.constant 0 : index
    %c0_106 = arith.constant 0 : index
    %371 = vector.load %arg8[%c1_104, %c0_105, %c0_106] : memref<2x128x128xbf16, #tpu.memory_space<vmem>>, vector<1x128x128xbf16>
    %372 = vector.shape_cast %371 : vector<1x128x128xbf16> to vector<128x128xbf16>
    %cst_107 = arith.constant dense<0.000000e+00> : vector<16x128xf32>
    %373 = tpu.matmul %370, %372, %cst_107 {dimension_numbers = #tpu.dot_dimension_numbers<[1], [0], [0], [1], [0, 0, 1, 1], [], []>} : vector<16x128xbf16>, vector<128x128xbf16>, vector<16x128xf32> -> vector<16x128xf32>
    %374 = vector.extract_strided_slice %201 {offsets = [3, 0], sizes = [1, 128], strides = [1, 1]} : vector<4x128xf32> to vector<1x128xf32>
    %375 = vector.broadcast %374 : vector<1x128xf32> to vector<16x128xf32>
    %376 = arith.addf %373, %375 : vector<16x128xf32>
    %377 = arith.addf %197, %376 : vector<16x128xf32>
    %c0_108 = arith.constant 0 : index
    %c0_109 = arith.constant 0 : index
    %c0_110 = arith.constant 0 : index
    %378 = vector.load %arg9[%c0_108, %c0_109, %c0_110] : memref<1x16x128xf32, #tpu.memory_space<vmem>>, vector<1x16x128xf32>
    %379 = vector.shape_cast %378 : vector<1x16x128xf32> to vector<16x128xf32>
    %380 = vector.shape_cast %377 : vector<16x128xf32> to vector<1x16x128xf32>
    tpu.vector_store %arg9[%c0_108, %c0_109, %c0_110], %380 {strides = array<i32>} : memref<1x16x128xf32, #tpu.memory_space<vmem>>, vector<1x16x128xf32>,
    return
  }
  func.func @transform_0(%arg0: i32) -> (i32, i32, i32) {
    %c0_i32 = arith.constant 0 : i32
    %c0_i32_0 = arith.constant 0 : i32
    %c0_i32_1 = arith.constant 0 : i32
    return %arg0, %c0_i32, %c0_i32_0 : i32, i32, i32
  }
  func.func @transform_1(%arg0: i32) -> (i32, i32) {
    %c0_i32 = arith.constant 0 : i32
    %c0_i32_0 = arith.constant 0 : i32
    %c0_i32_1 = arith.constant 0 : i32
    return %c0_i32, %c0_i32_0 : i32, i32
  }
  func.func @transform_2(%arg0: i32) -> (i32, i32) {
    %c0_i32 = arith.constant 0 : i32
    %c0_i32_0 = arith.constant 0 : i32
    %c0_i32_1 = arith.constant 0 : i32
    return %c0_i32, %c0_i32_0 : i32, i32
  }
  func.func @transform_3(%arg0: i32) -> (i32, i32, i32) {
    %c0_i32 = arith.constant 0 : i32
    %c0_i32_0 = arith.constant 0 : i32
    %c0_i32_1 = arith.constant 0 : i32
    %c0_i32_2 = arith.constant 0 : i32
    return %c0_i32, %c0_i32_0, %c0_i32_1 : i32, i32, i32
  }
  func.func @transform_4(%arg0: i32) -> (i32, i32, i32) {
    %c0_i32 = arith.constant 0 : i32
    %c0_i32_0 = arith.constant 0 : i32
    %c0_i32_1 = arith.constant 0 : i32
    %c0_i32_2 = arith.constant 0 : i32
    return %c0_i32, %c0_i32_0, %c0_i32_1 : i32, i32, i32
  }
  func.func @transform_5(%arg0: i32) -> (i32, i32, i32) {
    %c0_i32 = arith.constant 0 : i32
    %c0_i32_0 = arith.constant 0 : i32
    %c0_i32_1 = arith.constant 0 : i32
    %c0_i32_2 = arith.constant 0 : i32
    return %c0_i32, %c0_i32_0, %c0_i32_1 : i32, i32, i32
  }
  func.func @transform_6(%arg0: i32) -> (i32, i32, i32) {
    %c0_i32 = arith.constant 0 : i32
    %c0_i32_0 = arith.constant 0 : i32
    %c0_i32_1 = arith.constant 0 : i32
    %c0_i32_2 = arith.constant 0 : i32
    return %c0_i32, %c0_i32_0, %c0_i32_1 : i32, i32, i32
  }
  func.func @transform_7(%arg0: i32) -> (i32, i32, i32) {
    %c0_i32 = arith.constant 0 : i32
    %c0_i32_0 = arith.constant 0 : i32
    %c0_i32_1 = arith.constant 0 : i32
    %c0_i32_2 = arith.constant 0 : i32
    return %c0_i32, %c0_i32_0, %c0_i32_1 : i32, i32, i32
  }
  func.func @transform_8(%arg0: i32) -> (i32, i32, i32) {
    %c0_i32 = arith.constant 0 : i32
    %c0_i32_0 = arith.constant 0 : i32
    %c0_i32_1 = arith.constant 0 : i32
    return %arg0, %c0_i32, %c0_i32_0 : i32, i32, i32
  }
}

</mosaic_0001>

<llo_original>
// kernel: tpu_custom_call.1
$region0: #{tpu_custom_call.1}
  #allocation0 [shape = 'u32[]', space=smem, size = 0x4, offset = 0x4, fixed_abs, tag = 'smem constant byte address 0x4 - core index']
  #allocation1 [shape = 'u32[144,128]{1,0:T(1,128)}', space=vmem, size = 0x12000, scoped, tag = 'internal scratch']
  %s0 = inlined_call_operand.vmem [shape: s32[2,16,1], index: 0, kind: input, shape index: {}]
  %s1 = inlined_call_operand.vmem [shape: f32[16,128], index: 1, kind: input, shape index: {}]
  %s2 = inlined_call_operand.vmem [shape: f32[40,128], index: 2, kind: input, shape index: {}]
  %s3 = inlined_call_operand.vmem [shape: f32[2,7,128], index: 3, kind: input, shape index: {}]
  %s4 = inlined_call_operand.vmem [shape: f32[2,4,128], index: 4, kind: input, shape index: {}]
  %s5 = inlined_call_operand.hbm [shape: bf16[2,128,128], index: 5, kind: input, shape index: {}]
  %s6 = inlined_call_operand.vmem [shape: f32[2,3,128], index: 6, kind: input, shape index: {}]
  %s7 = inlined_call_operand.hbm [shape: bf16[2,128,128], index: 7, kind: input, shape index: {}]
  %s8 = inlined_call_operand.hbm [shape: f32[2,16,128], index: 8, kind: output, shape index: {}]
  %s9 = sld [smem:[#allocation0]]
  $region73: #{tpu_custom_call.1} parent=0
    _
  %s11 = ssub.s32 1, %s9
  %s12 = scalar_select 0, %s11, %s9
  $region1: #{tpu_custom_call.1} parent=0
    #allocation2 [shape = 'u8[65536]{0}', space=vmem, size = 0x10000, scoped, tag = 'input window, operand 5, single buffered']
    #allocation3 [shape = 's32[2]{0}', space=sflag, size = 0x8, scoped, tag = 'scoped memory for tpu_custom_call.1']
    #allocation4 [shape = 's32[2]{0}', space=sflag, size = 0x8, scoped, tag = 'scoped memory for tpu_custom_call.1']
    #allocation5 [shape = 'u8[65536]{0}', space=vmem, size = 0x10000, scoped, tag = 'input window, operand 7, single buffered']
    #allocation6 [shape = 's32[1]{0}', space=sflag, size = 0x4, scoped, tag = 'scoped memory for tpu_custom_call.1']
    #allocation7 [shape = 'u8[16384]{0}', space=vmem, size = 0x4000, scoped, tag = 'output window, operand 0']
    %13 = vsyncpa [#allocation3], 0
    %14 = vsyncpa [#allocation6], 0
    %15 = vsyncpa [#allocation4], 0
    %s16 = scalar_lea.sflag [#allocation4], 1
    %17 = vsyncpa %s16, 0
    loop: start=0, step=1, limit=4
    $region2: #{tpu_custom_call.1} parent=1 // loop_pre_header
      _
    $region3: #{tpu_custom_call.1} parent=1 // loop_header
      %s19 = sphi 0, %s23
      %p20 = scmp.ge.s32.totalorder %s19, 4
      %s29 = sphi 0, %s31
      %s32 = sphi 0, %s29
      %s33 = sphi 0, %s32
      %s49 = sphi 0, %s33
      %s53 = sphi 0, %s53
      %s55 = sphi 0, %s53
      %s56 = sphi 0, %s55
      %s70 = sphi 0, %s56
      %s74 = sphi 0, %s74
      %s76 = sphi 0, %s74
      %s77 = sphi 0, %s76
      %s91 = sphi 0, %s77
      %s95 = sphi 0, %s95
      %s97 = sphi 0, %s95
      %s98 = sphi 0, %s97
      %s112 = sphi 0, %s98
      %s116 = sphi 0, %s116
      %s118 = sphi 0, %s116
      %s119 = sphi 0, %s118
      %s133 = sphi 0, %s119
      %s137 = sphi 0, %s137
      %s139 = sphi 0, %s137
      %s140 = sphi 0, %s139
      %s154 = sphi 0, %s140
      %s158 = sphi 0, %s158
      %s160 = sphi 0, %s158
      %s161 = sphi 0, %s160
      %s175 = sphi 0, %s161
      %s179 = sphi 0, %s179
      %s181 = sphi 0, %s179
      %s182 = sphi 0, %s181
      %s196 = sphi 0, %s182
      %s202 = sphi 0, %s204
      %s205 = sphi 0, %s202
      %s206 = sphi 0, %s205
      %s222 = sphi 0, %s206
    $region4: #{tpu_custom_call.1} parent=1 // loop_header_branch
      %22 = sbr.rel (%p20) target = $region8
    $region5: #{tpu_custom_call.1} parent=1 // loop_body
      %s24 = ssub.s32 %s19, 1
      %s25 = ssub.s32 %s19, 2
      %s26 = sadd.s32 %s19, 1
      %s27 = ssub.s32 %s19, %s26
      %p28 = scmp.eq.s32.totalorder %s27, 0
      %s30 = sadd.s32 %s29, 1
      %s31 = scalar_select %p28, %s29, %s30
      %p34 = pneg %p28
      %p35 = scmp.eq.s32.totalorder %s19, 1
      %p36 = por %p34, %p35
      %p37 = scmp.ne.s32.totalorder %s29, %s32
      %p38 = scmp.eq.s32.totalorder %s19, 0
      %p39 = por %p37, %p38
      %p40 = scmp.ne.s32.totalorder %s29, %s32
      %p41 = scmp.eq.s32.totalorder %s24, 1
      %p42 = por %p40, %p41
      %p43 = scmp.ne.s32.totalorder %s32, %s33
      %p44 = scmp.eq.s32.totalorder %s24, 0
      %p45 = por %p43, %p44
      %p46 = scmp.ne.s32.totalorder %s32, %s33
      %p47 = scmp.eq.s32.totalorder %s25, 1
      %p48 = por %p46, %p47
      %p50 = scmp.ne.s32.totalorder %s33, %s49
      %p51 = scmp.eq.s32.totalorder %s25, 0
      %p52 = por %p50, %p51
      %s54 = sadd.s32 %s53, 1
      %p57 = scmp.eq.s32.totalorder %s19, 1
      %p58 = scmp.ne.s32.totalorder %s53, %s55
      %p59 = scmp.eq.s32.totalorder %s19, 0
      %p60 = por %p58, %p59
      %p61 = scmp.ne.s32.totalorder %s53, %s55
      %p62 = scmp.eq.s32.totalorder %s24, 1
      %p63 = por %p61, %p62
      %p64 = scmp.ne.s32.totalorder %s55, %s56
      %p65 = scmp.eq.s32.totalorder %s24, 0
      %p66 = por %p64, %p65
      %p67 = scmp.ne.s32.totalorder %s55, %s56
      %p68 = scmp.eq.s32.totalorder %s25, 1
      %p69 = por %p67, %p68
      %p71 = scmp.ne.s32.totalorder %s56, %s70
      %p72 = scmp.eq.s32.totalorder %s25, 0
      %p73 = por %p71, %p72
      %s75 = sadd.s32 %s74, 1
      %p78 = scmp.eq.s32.totalorder %s19, 1
      %p79 = scmp.ne.s32.totalorder %s74, %s76
      %p80 = scmp.eq.s32.totalorder %s19, 0
      %p81 = por %p79, %p80
      %p82 = scmp.ne.s32.totalorder %s74, %s76
      %p83 = scmp.eq.s32.totalorder %s24, 1
      %p84 = por %p82, %p83
      %p85 = scmp.ne.s32.totalorder %s76, %s77
      %p86 = scmp.eq.s32.totalorder %s24, 0
      %p87 = por %p85, %p86
      %p88 = scmp.ne.s32.totalorder %s76, %s77
      %p89 = scmp.eq.s32.totalorder %s25, 1
      %p90 = por %p88, %p89
      %p92 = scmp.ne.s32.totalorder %s77, %s91
      %p93 = scmp.eq.s32.totalorder %s25, 0
      %p94 = por %p92, %p93
      %s96 = sadd.s32 %s95, 1
      %p99 = scmp.eq.s32.totalorder %s19, 1
      %p100 = scmp.ne.s32.totalorder %s95, %s97
      %p101 = scmp.eq.s32.totalorder %s19, 0
      %p102 = por %p100, %p101
      %p103 = scmp.ne.s32.totalorder %s95, %s97
      %p104 = scmp.eq.s32.totalorder %s24, 1
      %p105 = por %p103, %p104
      %p106 = scmp.ne.s32.totalorder %s97, %s98
      %p107 = scmp.eq.s32.totalorder %s24, 0
      %p108 = por %p106, %p107
      %p109 = scmp.ne.s32.totalorder %s97, %s98
      %p110 = scmp.eq.s32.totalorder %s25, 1
      %p111 = por %p109, %p110
      %p113 = scmp.ne.s32.totalorder %s98, %s112
      %p114 = scmp.eq.s32.totalorder %s25, 0
      %p115 = por %p113, %p114
      %s117 = sadd.s32 %s116, 1
      %p120 = scmp.eq.s32.totalorder %s19, 1
      %p121 = scmp.ne.s32.totalorder %s116, %s118
      %p122 = scmp.eq.s32.totalorder %s19, 0
      %p123 = por %p121, %p122
      %p124 = scmp.ne.s32.totalorder %s116, %s118
      %p125 = scmp.eq.s32.totalorder %s24, 1
      %p126 = por %p124, %p125
      %p127 = scmp.ne.s32.totalorder %s118, %s119
      %p128 = scmp.eq.s32.totalorder %s24, 0
      %p129 = por %p127, %p128
      %p130 = scmp.ne.s32.totalorder %s118, %s119
      %p131 = scmp.eq.s32.totalorder %s25, 1
      %p132 = por %p130, %p131
      %p134 = scmp.ne.s32.totalorder %s119, %s133
      %p135 = scmp.eq.s32.totalorder %s25, 0
      %p136 = por %p134, %p135
      %s138 = sadd.s32 %s137, 1
      %p141 = scmp.eq.s32.totalorder %s19, 1
      %p142 = scmp.ne.s32.totalorder %s137, %s139
      %p143 = scmp.eq.s32.totalorder %s19, 0
      %p144 = por %p142, %p143
      %p145 = scmp.ne.s32.totalorder %s137, %s139
      %p146 = scmp.eq.s32.totalorder %s24, 1
      %p147 = por %p145, %p146
      %p148 = scmp.ne.s32.totalorder %s139, %s140
      %p149 = scmp.eq.s32.totalorder %s24, 0
      %p150 = por %p148, %p149
      %p151 = scmp.ne.s32.totalorder %s139, %s140
      %p152 = scmp.eq.s32.totalorder %s25, 1
      %p153 = por %p151, %p152
      %p155 = scmp.ne.s32.totalorder %s140, %s154
      %p156 = scmp.eq.s32.totalorder %s25, 0
      %p157 = por %p155, %p156
      %s159 = sadd.s32 %s158, 1
      %p162 = scmp.eq.s32.totalorder %s19, 1
      %p163 = scmp.ne.s32.totalorder %s158, %s160
      %p164 = scmp.eq.s32.totalorder %s19, 0
      %p165 = por %p163, %p164
      %p166 = scmp.ne.s32.totalorder %s158, %s160
      %p167 = scmp.eq.s32.totalorder %s24, 1
      %p168 = por %p166, %p167
      %p169 = scmp.ne.s32.totalorder %s160, %s161
      %p170 = scmp.eq.s32.totalorder %s24, 0
      %p171 = por %p169, %p170
      %p172 = scmp.ne.s32.totalorder %s160, %s161
      %p173 = scmp.eq.s32.totalorder %s25, 1
      %p174 = por %p172, %p173
      %p176 = scmp.ne.s32.totalorder %s161, %s175
      %p177 = scmp.eq.s32.totalorder %s25, 0
      %p178 = por %p176, %p177
      %s180 = sadd.s32 %s179, 1
      %p183 = scmp.eq.s32.totalorder %s19, 1
      %p184 = scmp.ne.s32.totalorder %s179, %s181
      %p185 = scmp.eq.s32.totalorder %s19, 0
      %p186 = por %p184, %p185
      %p187 = scmp.ne.s32.totalorder %s179, %s181
      %p188 = scmp.eq.s32.totalorder %s24, 1
      %p189 = por %p187, %p188
      %p190 = scmp.ne.s32.totalorder %s181, %s182
      %p191 = scmp.eq.s32.totalorder %s24, 0
      %p192 = por %p190, %p191
      %p193 = scmp.ne.s32.totalorder %s181, %s182
      %p194 = scmp.eq.s32.totalorder %s25, 1
      %p195 = por %p193, %p194
      %p197 = scmp.ne.s32.totalorder %s182, %s196
      %p198 = scmp.eq.s32.totalorder %s25, 0
      %p199 = por %p197, %p198
      %s200 = ssub.s32 %s19, %s26
      %p201 = scmp.eq.s32.totalorder %s200, 0
      %s203 = sadd.s32 %s202, 1
      %s204 = scalar_select %p201, %s202, %s203
      %p207 = pneg %p201
      %p208 = scmp.eq.s32.totalorder %s19, 1
      %p209 = por %p207, %p208
      %p210 = scmp.ne.s32.totalorder %s202, %s205
      %p211 = scmp.eq.s32.totalorder %s19, 0
      %p212 = por %p210, %p211
      %p213 = scmp.ne.s32.totalorder %s202, %s205
      %p214 = scmp.eq.s32.totalorder %s24, 1
      %p215 = por %p213, %p214
      %p216 = scmp.ne.s32.totalorder %s205, %s206
      %p217 = scmp.eq.s32.totalorder %s24, 0
      %p218 = por %p216, %p217
      %p219 = scmp.ne.s32.totalorder %s205, %s206
      %p220 = scmp.eq.s32.totalorder %s25, 1
      %p221 = por %p219, %p220
      %p223 = scmp.ne.s32.totalorder %s206, %s222
      %p224 = scmp.eq.s32.totalorder %s25, 0
      %p225 = por %p223, %p224
      %p226 = scmp.le.s32.totalorder 1, %s19
      %p227 = scmp.lt.s32.totalorder %s19, 3
      %p228 = pnand %p226, %p227
      %p229 = pneg %p228
      // Predicated region
      $region9: #{tpu_custom_call.1} parent=5 // pred_check
        _
      $region10: #{tpu_custom_call.1} parent=5 // pred_check_branch
        %231 = sbr.rel (%p228) target = $region12
      $region11: #{tpu_custom_call.1} parent=5 // pred_region
        %s232 = ssub.s32 %s19, 1
        // Predicated region
        $region13: #{tpu_custom_call.1} parent=11 // pred_check
          %p233 = pneg %p66
        $region14: #{tpu_custom_call.1} parent=11 // pred_check_branch
          %235 = sbr.rel (%p233) target = $region16
        $region15: #{tpu_custom_call.1} parent=11 // pred_region
          _
        $region16: #{tpu_custom_call.1} parent=11 // pred_fallthru
          _
        // Predicated region
        $region17: #{tpu_custom_call.1} parent=11 // pred_check
          %p236 = pneg %p87
        $region18: #{tpu_custom_call.1} parent=11 // pred_check_branch
          %238 = sbr.rel (%p236) target = $region20
        $region19: #{tpu_custom_call.1} parent=11 // pred_region
          _
        $region20: #{tpu_custom_call.1} parent=11 // pred_fallthru
          _
        // Predicated region
        $region21: #{tpu_custom_call.1} parent=11 // pred_check
          %p239 = pneg %p108
        $region22: #{tpu_custom_call.1} parent=11 // pred_check_branch
          %241 = sbr.rel (%p239) target = $region24
        $region23: #{tpu_custom_call.1} parent=11 // pred_region
          _
        $region24: #{tpu_custom_call.1} parent=11 // pred_fallthru
          _
        // Predicated region
        $region25: #{tpu_custom_call.1} parent=11 // pred_check
          %p242 = pneg %p129
        $region26: #{tpu_custom_call.1} parent=11 // pred_check_branch
          %244 = sbr.rel (%p242) target = $region28
        $region27: #{tpu_custom_call.1} parent=11 // pred_region
          _
        $region28: #{tpu_custom_call.1} parent=11 // pred_fallthru
          _
        // Predicated region
        $region29: #{tpu_custom_call.1} parent=11 // pred_check
          %p245 = pneg %p150
        $region30: #{tpu_custom_call.1} parent=11 // pred_check_branch
          %247 = sbr.rel (%p245) target = $region32
        $region31: #{tpu_custom_call.1} parent=11 // pred_region
          %s249 = ssub.s32 2048, 2048
          %250 = vsyncadd [#allocation3], %s249
          %s251 = sshll.u32 [#allocation2], 4
          %s252 = int_to_ptr.vmem [resolvable:$true] %s251
          %257 = dma.hbm_to_vmem [thread:$0]  %s5, 2048, %s252, [#allocation3], 64, 64, 4
        $region32: #{tpu_custom_call.1} parent=11 // pred_fallthru
          _
        // Predicated region
        $region33: #{tpu_custom_call.1} parent=11 // pred_check
          %p258 = pneg %p171
        $region34: #{tpu_custom_call.1} parent=11 // pred_check_branch
          %260 = sbr.rel (%p258) target = $region36
        $region35: #{tpu_custom_call.1} parent=11 // pred_region
          _
        $region36: #{tpu_custom_call.1} parent=11 // pred_fallthru
          _
        // Predicated region
        $region37: #{tpu_custom_call.1} parent=11 // pred_check
          %p261 = pneg %p192
        $region38: #{tpu_custom_call.1} parent=11 // pred_check_branch
          %263 = sbr.rel (%p261) target = $region40
        $region39: #{tpu_custom_call.1} parent=11 // pred_region
          %s265 = ssub.s32 2048, 2048
          %266 = vsyncadd [#allocation6], %s265
          %s267 = sshll.u32 [#allocation5], 4
          %s268 = int_to_ptr.vmem [resolvable:$true] %s267
          %273 = dma.hbm_to_vmem [thread:$0]  %s7, 2048, %s268, [#allocation6], 64, 64, 4
        $region40: #{tpu_custom_call.1} parent=11 // pred_fallthru
          _
      $region12: #{tpu_custom_call.1} parent=5 // pred_fallthru
        _
      %p274 = scmp.lt.s32.totalorder %s19, 2
      // Predicated region
      $region41: #{tpu_custom_call.1} parent=5 // pred_check
        %p275 = pneg %p274
      $region42: #{tpu_custom_call.1} parent=5 // pred_check_branch
        %277 = sbr.rel (%p275) target = $region44
      $region43: #{tpu_custom_call.1} parent=5 // pred_region
        // Predicated region
        $region45: #{tpu_custom_call.1} parent=43 // pred_check
          %p278 = pneg %p39
        $region46: #{tpu_custom_call.1} parent=43 // pred_check_branch
          %280 = sbr.rel (%p278) target = $region48
        $region47: #{tpu_custom_call.1} parent=43 // pred_region
          %p281 = scmp.lt.s32.totalorder %s19, 1
          %s282 = scalar_select %p281, %s19, 1
          %s283 = smul.addr %s282, 2
          %s284 = smul.addr %s283, 8
          %s285 = scalar_lea.vmem %s0, %s284
        $region48: #{tpu_custom_call.1} parent=43 // pred_fallthru
          _
      $region44: #{tpu_custom_call.1} parent=5 // pred_fallthru
        _
      %p286 = scmp.le.s32.totalorder 1, %s19
      %p287 = scmp.lt.s32.totalorder %s19, 3
      %p288 = pnand %p286, %p287
      %p289 = pneg %p288
      // Predicated region
      $region49: #{tpu_custom_call.1} parent=5 // pred_check
        _
      $region50: #{tpu_custom_call.1} parent=5 // pred_check_branch
        %291 = sbr.rel (%p288) target = $region52
      $region51: #{tpu_custom_call.1} parent=5 // pred_region
        %s292 = ssub.s32 %s19, 1
        // Predicated region
        $region53: #{tpu_custom_call.1} parent=51 // pred_check
          %p293 = pneg %p150
        $region54: #{tpu_custom_call.1} parent=51 // pred_check_branch
          %295 = sbr.rel (%p293) target = $region56
        $region55: #{tpu_custom_call.1} parent=51 // pred_region
          %296 = dma.done [#allocation3], 2048
        $region56: #{tpu_custom_call.1} parent=51 // pred_fallthru
          _
        // Predicated region
        $region57: #{tpu_custom_call.1} parent=51 // pred_check
          %p297 = pneg %p192
        $region58: #{tpu_custom_call.1} parent=51 // pred_check_branch
          %299 = sbr.rel (%p297) target = $region60
        $region59: #{tpu_custom_call.1} parent=51 // pred_region
          %300 = dma.done [#allocation6], 2048
        $region60: #{tpu_custom_call.1} parent=51 // pred_fallthru
          _
        %p301 = scmp.lt.s32.totalorder %s24, 1
        %s302 = scalar_select %p301, %s24, 1
        %s303 = smul.addr %s302, 2
        %s304 = smul.addr %s303, 8
        %s305 = scalar_lea.vmem %s0, %s304
        %p306 = pneg %p45
        %p307 = pneg %p42
        %p308 = pneg %p66
        %p309 = pneg %p63
        %p310 = pneg %p87
        %p311 = pneg %p84
        %p312 = pneg %p108
        %p313 = pneg %p105
        %p314 = pneg %p129
        %p315 = pneg %p126
        %p316 = pneg %p150
        %p317 = pneg %p147
        %p318 = pneg %p171
        %p319 = pneg %p168
        %p320 = pneg %p192
        %p321 = pneg %p189
        %p322 = pneg %p218
        %p323 = pneg %p215
        %s324 = sand.u32 %s205, 1
        %s325 = scalar_lea.sflag [#allocation4], %s324
        %s326 = sand.u32 %s205, 1
        %s327 = smul.addr %s326, 16
        %s328 = scalar_lea.vmem [#allocation7], %s327
        %p329 = scmp.lt.s32.totalorder %s24, 1
        %s330 = scalar_select %p329, %s24, 1
        %s331 = smul.addr %s330, 2
        %s332 = smul.addr %s331, 8
        %s333 = scalar_lea.vmem %s0, %s332
        %v335 = vld [vmem:[%s333] sm:$0xff]
        %v336 = vld [vmem:[%s333 + $0x8] sm:$0xff]
        %v337 = vlaneseq
        %v338 = vand.u32 %v337, 127
        %339 = vset.pattern.permute.xlu0 0
        %340 = vperm.xlu0 %339, %v335
        %v341 = vpop.permute.xlu0 %340
        %342 = vset.pattern.permute.xlu0 0
        %343 = vperm.xlu0 %342, %v336
        %v344 = vpop.permute.xlu0 %343
        %vm345 = vcmp.eq.s32.totalorder %v338, %v341
        %vm346 = vcmp.eq.s32.totalorder %v338, %v344
        %v347 = vsel %vm345, 1, 0
        %v348 = vsel %vm346, 1, 0
        %v349 = vcvt.s32.f32 %v347
        %v350 = vcvt.s32.f32 %v348
        %v351 = vld [vmem:[%s2] sm:$0xff]
        %v352 = vld [vmem:[%s2 + $0x8] sm:$0xff]
        %v353 = vld [vmem:[%s2 + $0x10] sm:$0xff]
        %v354 = vld [vmem:[%s2 + $0x18] sm:$0xff]
        %v355 = vld [vmem:[%s2 + $0x20] sm:$0xff]
        %v356 = vld [vmem:[%s1] sm:$0xff]
        %v357 = vld [vmem:[%s1 + $0x8] sm:$0xff]
        %vm358 = vcmask 326656
        %v360 = vsel %vm358, %v349, 0
        %v363 = vsel %vm358, %v350, 0
        %365 = vmatprep.subr.mxu0 0.0
        %366 = vmatpush1.msra.mxu0 %v351
        %367 = vmatprep.subr.mxu0 0.0
        %368 = vmatpush1.msra.mxu0 %v352
        %369 = vmatprep.subr.mxu0 0.0
        %370 = vmatpush1.msra.mxu0 %v353
        %371 = vmatprep.subr.mxu0 0.0
        %372 = vmatpush1.msra.mxu0 %v354
        %373 = vmatprep.subr.mxu0 0.0
        %374 = vmatpush1.msra.mxu0 %v355
        %375 = vmatprep.subr.mxu0 0.0
        %376 = vmatpush1.msra.mxu0 0.0
        %377 = vmatprep.subr.mxu0 0.0
        %378 = vmatpush1.msra.mxu0 0.0
        %379 = vmatprep.subr.mxu0 0.0
        %380 = vmatpush1.msra.mxu0 0.0
        %381 = vmatprep.subr.mxu0 0.0
        %382 = vmatpush1.msra.mxu0 0.0
        %383 = vmatprep.subr.mxu0 0.0
        %384 = vmatpush1.msra.mxu0 0.0
        %385 = vmatprep.subr.mxu0 0.0
        %386 = vmatpush1.msra.mxu0 0.0
        %387 = vmatprep.subr.mxu0 0.0
        %388 = vmatpush1.msra.mxu0 0.0
        %389 = vmatprep.subr.mxu0 0.0
        %390 = vmatpush1.msra.mxu0 0.0
        %391 = vmatprep.subr.mxu0 0.0
        %392 = vmatpush1.msra.mxu0 0.0
        %393 = vmatprep.subr.mxu0 0.0
        %394 = vmatpush1.msra.mxu0 0.0
        %395 = vmatprep.subr.mxu0 0.0
        %396 = vmatpush1.msra.mxu0 0.0
        %397 = vmatprep.subr.mxu0 0.0
        %398 = vmatpush1.msra.mxu0 0.0
        %399 = vmatprep.subr.mxu0 0.0
        %400 = vmatpush1.msra.mxu0 0.0
        %401 = vmatprep.subr.mxu0 0.0
        %402 = vmatpush1.msra.mxu0 0.0
        %403 = vmatprep.subr.mxu0 0.0
        %404 = vmatpush1.msra.mxu0 0.0
        %405 = vmatprep.subr.mxu0 0.0
        %406 = vmatpush1.msra.mxu0 0.0
        %407 = vmatprep.subr.mxu0 0.0
        %408 = vmatpush1.msra.mxu0 0.0
        %409 = vmatprep.subr.mxu0 0.0
        %410 = vmatpush1.msra.mxu0 0.0
        %411 = vmatprep.subr.mxu0 0.0
        %412 = vmatpush1.msra.mxu0 0.0
        %413 = vmatprep.subr.mxu0 0.0
        %414 = vmatpush1.msra.mxu0 0.0
        %415 = vmatprep.subr.mxu0 0.0
        %416 = vmatpush1.msra.mxu0 0.0
        %417 = vmatprep.subr.mxu0 0.0
        %418 = vmatpush1.msra.mxu0 0.0
        %419 = vmatprep.subr.mxu0 0.0
        %420 = vmatpush1.msra.mxu0 0.0
        %421 = vmatprep.subr.mxu0 0.0
        %422 = vmatpush1.msra.mxu0 0.0
        %423 = vmatprep.subr.mxu0 0.0
        %424 = vmatpush1.msra.mxu0 0.0
        %425 = vmatprep.subr.mxu0 0.0
        %426 = vmatpush1.msra.mxu0 0.0
        %427 = vmatprep.subr.mxu0 0.0
        %428 = vmatpush1.msra.mxu0 0.0
        %429 = vmatprep.mubr.f32.mxu0 0.0
        %430 = vmatmul.mubr.f32.gmra.mrb[0].mxu0 %v360
        %v431 = vpop.f32.mrb[0].mxu0
        %v432 = vadd.f32 %v356, %v431
        %v433 = vpop.f32.mrb[0].mxu0
        %434 = vmatprep.mubr.f32.mxu0 0.0
        %435 = vmatmul.mubr.f32.gmra.mrb[0].mxu0 %v363
        %v436 = vpop.f32.mrb[0].mxu0
        %v437 = vadd.f32 %v357, %v436
        %v438 = vpop.f32.mrb[0].mxu0
        %439 = vdwg.mxu0
        %vm440 = vcmp.lt.s32.totalorder %v338, 64
        %v441 = vsel %vm440, 1, 0
        %v442 = vcvt.s32.f32 %v441
        %v443 = vlaneseq
        %v444 = vshrl.u32 %v443, 7
        %v445 = vadd.s32 %v444, 8
        %v446 = vld [vmem:[%s3] sm:$0x7f]
        %v447 = vld [vmem:[%s4] sm:$0xf]
        %v448 = vld [vmem:[%s6] sm:$0x7]
        %v449 = vlaneseq
        %v450 = vshrl.u32 %v449, 7
        %v451 = vsub.s32 0, %v450
        %v452 = vrot.slane %v447, %v451
        %v453 = vadd.s32 %v444, 4294967293
        %v454 = vadd.s32 %v445, 4294967293
        %vm455 = vcmp.eq.s32.totalorder %v338, %v453
        %vm456 = vcmp.eq.s32.totalorder %v338, %v454
        %v457 = vsel %vm455, 1, 0
        %v458 = vsel %vm456, 1, 0
        %v459 = vcvt.s32.f32 %v457
        %v460 = vcvt.s32.f32 %v458
        %vm461 = vcmask 130048
        %v463 = vsel %vm461, %v459, 0
        %v466 = vsel %vm461, %v460, 0
        %468 = vmatprep.subr.mxu0 0.0
        %469 = vmatpush1.msra.mxu0 %v432
        %470 = vmatprep.subr.mxu0 0.0
        %471 = vmatpush1.msra.mxu0 %v437
        %472 = vmatprep.subr.mxu0 0.0
        %473 = vmatpush1.msra.mxu0 0.0
        %474 = vmatprep.subr.mxu0 0.0
        %475 = vmatpush1.msra.mxu0 0.0
        %476 = vmatprep.subr.mxu0 0.0
        %477 = vmatpush1.msra.mxu0 0.0
        %478 = vmatprep.subr.mxu0 0.0
        %479 = vmatpush1.msra.mxu0 0.0
        %480 = vmatprep.subr.mxu0 0.0
        %481 = vmatpush1.msra.mxu0 0.0
        %482 = vmatprep.subr.mxu0 0.0
        %483 = vmatpush1.msra.mxu0 0.0
        %484 = vmatprep.subr.mxu0 0.0
        %485 = vmatpush1.msra.mxu0 0.0
        %486 = vmatprep.subr.mxu0 0.0
        %487 = vmatpush1.msra.mxu0 0.0
        %488 = vmatprep.subr.mxu0 0.0
        %489 = vmatpush1.msra.mxu0 0.0
        %490 = vmatprep.subr.mxu0 0.0
        %491 = vmatpush1.msra.mxu0 0.0
        %492 = vmatprep.subr.mxu0 0.0
        %493 = vmatpush1.msra.mxu0 0.0
        %494 = vmatprep.subr.mxu0 0.0
        %495 = vmatpush1.msra.mxu0 0.0
        %496 = vmatprep.subr.mxu0 0.0
        %497 = vmatpush1.msra.mxu0 0.0
        %498 = vmatprep.subr.mxu0 0.0
        %499 = vmatpush1.msra.mxu0 0.0
        %500 = vmatprep.subr.mxu0 0.0
        %501 = vmatpush1.msra.mxu0 0.0
        %502 = vmatprep.subr.mxu0 0.0
        %503 = vmatpush1.msra.mxu0 0.0
        %504 = vmatprep.subr.mxu0 0.0
        %505 = vmatpush1.msra.mxu0 0.0
        %506 = vmatprep.subr.mxu0 0.0
        %507 = vmatpush1.msra.mxu0 0.0
        %508 = vmatprep.subr.mxu0 0.0
        %509 = vmatpush1.msra.mxu0 0.0
        %510 = vmatprep.subr.mxu0 0.0
        %511 = vmatpush1.msra.mxu0 0.0
        %512 = vmatprep.subr.mxu0 0.0
        %513 = vmatpush1.msra.mxu0 0.0
        %514 = vmatprep.subr.mxu0 0.0
        %515 = vmatpush1.msra.mxu0 0.0
        %516 = vmatprep.subr.mxu0 0.0
        %517 = vmatpush1.msra.mxu0 0.0
        %518 = vmatprep.subr.mxu0 0.0
        %519 = vmatpush1.msra.mxu0 0.0
        %520 = vmatprep.subr.mxu0 0.0
        %521 = vmatpush1.msra.mxu0 0.0
        %522 = vmatprep.subr.mxu0 0.0
        %523 = vmatpush1.msra.mxu0 0.0
        %524 = vmatprep.subr.mxu0 0.0
        %525 = vmatpush1.msra.mxu0 0.0
        %526 = vmatprep.subr.mxu0 0.0
        %527 = vmatpush1.msra.mxu0 0.0
        %528 = vmatprep.subr.mxu0 0.0
        %529 = vmatpush1.msra.mxu0 0.0
        %530 = vmatprep.subr.mxu0 0.0
        %531 = vmatpush1.msra.mxu0 0.0
        %532 = vmatprep.mubr.f32.mxu0 0.0
        %533 = vmatmul.mubr.f32.gmra.mrb[0].mxu0 %v463
        %v534 = vpop.f32.mrb[0].mxu0
        %v535 = vadd.f32 0.0, %v534
        %v536 = vpop.f32.mrb[0].mxu0
        %537 = vmatprep.mubr.f32.mxu0 0.0
        %538 = vmatmul.mubr.f32.gmra.mrb[0].mxu0 %v466
        %v539 = vpop.f32.mrb[0].mxu0
        %v540 = vadd.f32 0.0, %v539
        %v541 = vpop.f32.mrb[0].mxu0
        %542 = vdwg.mxu0
        %v543 = vlaneseq
        %v544 = vshrl.u32 %v543, 7
        %v545 = vsub.s32 0, %v544
        %v546 = vrot.slane %v446, %v545
        %v547 = vmul.f32 %v535, %v546
        %v548 = vmul.f32 %v540, %v546
        %v549 = vadd.f32 %v452, %v547
        %v550 = vadd.f32 %v452, %v548
        %v551 = vadd.s32 %v444, 4294967294
        %v552 = vadd.s32 %v445, 4294967294
        %vm553 = vcmp.eq.s32.totalorder %v338, %v551
        %vm554 = vcmp.eq.s32.totalorder %v338, %v552
        %v555 = vsel %vm553, 1, 0
        %v556 = vsel %vm554, 1, 0
        %v557 = vcvt.s32.f32 %v555
        %v558 = vcvt.s32.f32 %v556
        %v560 = vsel %vm461, %v557, 0
        %v563 = vsel %vm461, %v558, 0
        %565 = vmatprep.subr.mxu0 0.0
        %566 = vmatpush1.msra.mxu0 %v432
        %567 = vmatprep.subr.mxu0 0.0
        %568 = vmatpush1.msra.mxu0 %v437
        %569 = vmatprep.subr.mxu0 0.0
        %570 = vmatpush1.msra.mxu0 0.0
        %571 = vmatprep.subr.mxu0 0.0
        %572 = vmatpush1.msra.mxu0 0.0
        %573 = vmatprep.subr.mxu0 0.0
        %574 = vmatpush1.msra.mxu0 0.0
        %575 = vmatprep.subr.mxu0 0.0
        %576 = vmatpush1.msra.mxu0 0.0
        %577 = vmatprep.subr.mxu0 0.0
        %578 = vmatpush1.msra.mxu0 0.0
        %579 = vmatprep.subr.mxu0 0.0
        %580 = vmatpush1.msra.mxu0 0.0
        %581 = vmatprep.subr.mxu0 0.0
        %582 = vmatpush1.msra.mxu0 0.0
        %583 = vmatprep.subr.mxu0 0.0
        %584 = vmatpush1.msra.mxu0 0.0
        %585 = vmatprep.subr.mxu0 0.0
        %586 = vmatpush1.msra.mxu0 0.0
        %587 = vmatprep.subr.mxu0 0.0
        %588 = vmatpush1.msra.mxu0 0.0
        %589 = vmatprep.subr.mxu0 0.0
        %590 = vmatpush1.msra.mxu0 0.0
        %591 = vmatprep.subr.mxu0 0.0
        %592 = vmatpush1.msra.mxu0 0.0
        %593 = vmatprep.subr.mxu0 0.0
        %594 = vmatpush1.msra.mxu0 0.0
        %595 = vmatprep.subr.mxu0 0.0
        %596 = vmatpush1.msra.mxu0 0.0
        %597 = vmatprep.subr.mxu0 0.0
        %598 = vmatpush1.msra.mxu0 0.0
        %599 = vmatprep.subr.mxu0 0.0
        %600 = vmatpush1.msra.mxu0 0.0
        %601 = vmatprep.subr.mxu0 0.0
        %602 = vmatpush1.msra.mxu0 0.0
        %603 = vmatprep.subr.mxu0 0.0
        %604 = vmatpush1.msra.mxu0 0.0
        %605 = vmatprep.subr.mxu0 0.0
        %606 = vmatpush1.msra.mxu0 0.0
        %607 = vmatprep.subr.mxu0 0.0
        %608 = vmatpush1.msra.mxu0 0.0
        %609 = vmatprep.subr.mxu0 0.0
        %610 = vmatpush1.msra.mxu0 0.0
        %611 = vmatprep.subr.mxu0 0.0
        %612 = vmatpush1.msra.mxu0 0.0
        %613 = vmatprep.subr.mxu0 0.0
        %614 = vmatpush1.msra.mxu0 0.0
        %615 = vmatprep.subr.mxu0 0.0
        %616 = vmatpush1.msra.mxu0 0.0
        %617 = vmatprep.subr.mxu0 0.0
        %618 = vmatpush1.msra.mxu0 0.0
        %619 = vmatprep.subr.mxu0 0.0
        %620 = vmatpush1.msra.mxu0 0.0
        %621 = vmatprep.subr.mxu0 0.0
        %622 = vmatpush1.msra.mxu0 0.0
        %623 = vmatprep.subr.mxu0 0.0
        %624 = vmatpush1.msra.mxu0 0.0
        %625 = vmatprep.subr.mxu0 0.0
        %626 = vmatpush1.msra.mxu0 0.0
        %627 = vmatprep.subr.mxu0 0.0
        %628 = vmatpush1.msra.mxu0 0.0
        %629 = vmatprep.mubr.f32.mxu0 0.0
        %630 = vmatmul.mubr.f32.gmra.mrb[0].mxu0 %v560
        %v631 = vpop.f32.mrb[0].mxu0
        %v632 = vadd.f32 0.0, %v631
        %v633 = vpop.f32.mrb[0].mxu0
        %634 = vmatprep.mubr.f32.mxu0 0.0
        %635 = vmatmul.mubr.f32.gmra.mrb[0].mxu0 %v563
        %v636 = vpop.f32.mrb[0].mxu0
        %v637 = vadd.f32 0.0, %v636
        %v638 = vpop.f32.mrb[0].mxu0
        %639 = vdwg.mxu0
        %v640 = vlaneseq
        %v641 = vshrl.u32 %v640, 7
        %v642 = vsub.s32 1, %v641
        %v643 = vrot.slane %v446, %v642
        %v644 = vmul.f32 %v632, %v643
        %v645 = vmul.f32 %v637, %v643
        %v646 = vadd.f32 %v549, %v644
        %v647 = vadd.f32 %v550, %v645
        %v648 = vadd.s32 %v444, 4294967295
        %v649 = vadd.s32 %v445, 4294967295
        %vm650 = vcmp.eq.s32.totalorder %v338, %v648
        %vm651 = vcmp.eq.s32.totalorder %v338, %v649
        %v652 = vsel %vm650, 1, 0
        %v653 = vsel %vm651, 1, 0
        %v654 = vcvt.s32.f32 %v652
        %v655 = vcvt.s32.f32 %v653
        %v657 = vsel %vm461, %v654, 0
        %v660 = vsel %vm461, %v655, 0
        %662 = vmatprep.subr.mxu0 0.0
        %663 = vmatpush1.msra.mxu0 %v432
        %664 = vmatprep.subr.mxu0 0.0
        %665 = vmatpush1.msra.mxu0 %v437
        %666 = vmatprep.subr.mxu0 0.0
        %667 = vmatpush1.msra.mxu0 0.0
        %668 = vmatprep.subr.mxu0 0.0
        %669 = vmatpush1.msra.mxu0 0.0
        %670 = vmatprep.subr.mxu0 0.0
        %671 = vmatpush1.msra.mxu0 0.0
        %672 = vmatprep.subr.mxu0 0.0
        %673 = vmatpush1.msra.mxu0 0.0
        %674 = vmatprep.subr.mxu0 0.0
        %675 = vmatpush1.msra.mxu0 0.0
        %676 = vmatprep.subr.mxu0 0.0
        %677 = vmatpush1.msra.mxu0 0.0
        %678 = vmatprep.subr.mxu0 0.0
        %679 = vmatpush1.msra.mxu0 0.0
        %680 = vmatprep.subr.mxu0 0.0
        %681 = vmatpush1.msra.mxu0 0.0
        %682 = vmatprep.subr.mxu0 0.0
        %683 = vmatpush1.msra.mxu0 0.0
        %684 = vmatprep.subr.mxu0 0.0
        %685 = vmatpush1.msra.mxu0 0.0
        %686 = vmatprep.subr.mxu0 0.0
        %687 = vmatpush1.msra.mxu0 0.0
        %688 = vmatprep.subr.mxu0 0.0
        %689 = vmatpush1.msra.mxu0 0.0
        %690 = vmatprep.subr.mxu0 0.0
        %691 = vmatpush1.msra.mxu0 0.0
        %692 = vmatprep.subr.mxu0 0.0
        %693 = vmatpush1.msra.mxu0 0.0
        %694 = vmatprep.subr.mxu0 0.0
        %695 = vmatpush1.msra.mxu0 0.0
        %696 = vmatprep.subr.mxu0 0.0
        %697 = vmatpush1.msra.mxu0 0.0
        %698 = vmatprep.subr.mxu0 0.0
        %699 = vmatpush1.msra.mxu0 0.0
        %700 = vmatprep.subr.mxu0 0.0
        %701 = vmatpush1.msra.mxu0 0.0
        %702 = vmatprep.subr.mxu0 0.0
        %703 = vmatpush1.msra.mxu0 0.0
        %704 = vmatprep.subr.mxu0 0.0
        %705 = vmatpush1.msra.mxu0 0.0
        %706 = vmatprep.subr.mxu0 0.0
        %707 = vmatpush1.msra.mxu0 0.0
        %708 = vmatprep.subr.mxu0 0.0
        %709 = vmatpush1.msra.mxu0 0.0
        %710 = vmatprep.subr.mxu0 0.0
        %711 = vmatpush1.msra.mxu0 0.0
        %712 = vmatprep.subr.mxu0 0.0
        %713 = vmatpush1.msra.mxu0 0.0
        %714 = vmatprep.subr.mxu0 0.0
        %715 = vmatpush1.msra.mxu0 0.0
        %716 = vmatprep.subr.mxu0 0.0
        %717 = vmatpush1.msra.mxu0 0.0
        %718 = vmatprep.subr.mxu0 0.0
        %719 = vmatpush1.msra.mxu0 0.0
        %720 = vmatprep.subr.mxu0 0.0
        %721 = vmatpush1.msra.mxu0 0.0
        %722 = vmatprep.subr.mxu0 0.0
        %723 = vmatpush1.msra.mxu0 0.0
        %724 = vmatprep.subr.mxu0 0.0
        %725 = vmatpush1.msra.mxu0 0.0
        %726 = vmatprep.mubr.f32.mxu0 0.0
        %727 = vmatmul.mubr.f32.gmra.mrb[0].mxu0 %v657
        %v728 = vpop.f32.mrb[0].mxu0
        %v729 = vadd.f32 0.0, %v728
        %v730 = vpop.f32.mrb[0].mxu0
        %731 = vmatprep.mubr.f32.mxu0 0.0
        %732 = vmatmul.mubr.f32.gmra.mrb[0].mxu0 %v660
        %v733 = vpop.f32.mrb[0].mxu0
        %v734 = vadd.f32 0.0, %v733
        %v735 = vpop.f32.mrb[0].mxu0
        %736 = vdwg.mxu0
        %v737 = vlaneseq
        %v738 = vshrl.u32 %v737, 7
        %v739 = vsub.s32 2, %v738
        %v740 = vrot.slane %v446, %v739
        %v741 = vmul.f32 %v729, %v740
        %v742 = vmul.f32 %v734, %v740
        %v743 = vadd.f32 %v646, %v741
        %v744 = vadd.f32 %v647, %v742
        %vm745 = vcmp.eq.s32.totalorder %v338, %v444
        %vm746 = vcmp.eq.s32.totalorder %v338, %v445
        %v747 = vsel %vm745, 1, 0
        %v748 = vsel %vm746, 1, 0
        %v749 = vcvt.s32.f32 %v747
        %v750 = vcvt.s32.f32 %v748
        %v752 = vsel %vm461, %v749, 0
        %v755 = vsel %vm461, %v750, 0
        %757 = vmatprep.subr.mxu0 0.0
        %758 = vmatpush1.msra.mxu0 %v432
        %759 = vmatprep.subr.mxu0 0.0
        %760 = vmatpush1.msra.mxu0 %v437
        %761 = vmatprep.subr.mxu0 0.0
        %762 = vmatpush1.msra.mxu0 0.0
        %763 = vmatprep.subr.mxu0 0.0
        %764 = vmatpush1.msra.mxu0 0.0
        %765 = vmatprep.subr.mxu0 0.0
        %766 = vmatpush1.msra.mxu0 0.0
        %767 = vmatprep.subr.mxu0 0.0
        %768 = vmatpush1.msra.mxu0 0.0
        %769 = vmatprep.subr.mxu0 0.0
        %770 = vmatpush1.msra.mxu0 0.0
        %771 = vmatprep.subr.mxu0 0.0
        %772 = vmatpush1.msra.mxu0 0.0
        %773 = vmatprep.subr.mxu0 0.0
        %774 = vmatpush1.msra.mxu0 0.0
        %775 = vmatprep.subr.mxu0 0.0
        %776 = vmatpush1.msra.mxu0 0.0
        %777 = vmatprep.subr.mxu0 0.0
        %778 = vmatpush1.msra.mxu0 0.0
        %779 = vmatprep.subr.mxu0 0.0
        %780 = vmatpush1.msra.mxu0 0.0
        %781 = vmatprep.subr.mxu0 0.0
        %782 = vmatpush1.msra.mxu0 0.0
        %783 = vmatprep.subr.mxu0 0.0
        %784 = vmatpush1.msra.mxu0 0.0
        %785 = vmatprep.subr.mxu0 0.0
        %786 = vmatpush1.msra.mxu0 0.0
        %787 = vmatprep.subr.mxu0 0.0
        %788 = vmatpush1.msra.mxu0 0.0
        %789 = vmatprep.subr.mxu0 0.0
        %790 = vmatpush1.msra.mxu0 0.0
        %791 = vmatprep.subr.mxu0 0.0
        %792 = vmatpush1.msra.mxu0 0.0
        %793 = vmatprep.subr.mxu0 0.0
        %794 = vmatpush1.msra.mxu0 0.0
        %795 = vmatprep.subr.mxu0 0.0
        %796 = vmatpush1.msra.mxu0 0.0
        %797 = vmatprep.subr.mxu0 0.0
        %798 = vmatpush1.msra.mxu0 0.0
        %799 = vmatprep.subr.mxu0 0.0
        %800 = vmatpush1.msra.mxu0 0.0
        %801 = vmatprep.subr.mxu0 0.0
        %802 = vmatpush1.msra.mxu0 0.0
        %803 = vmatprep.subr.mxu0 0.0
        %804 = vmatpush1.msra.mxu0 0.0
        %805 = vmatprep.subr.mxu0 0.0
        %806 = vmatpush1.msra.mxu0 0.0
        %807 = vmatprep.subr.mxu0 0.0
        %808 = vmatpush1.msra.mxu0 0.0
        %809 = vmatprep.subr.mxu0 0.0
        %810 = vmatpush1.msra.mxu0 0.0
        %811 = vmatprep.subr.mxu0 0.0
        %812 = vmatpush1.msra.mxu0 0.0
        %813 = vmatprep.subr.mxu0 0.0
        %814 = vmatpush1.msra.mxu0 0.0
        %815 = vmatprep.subr.mxu0 0.0
        %816 = vmatpush1.msra.mxu0 0.0
        %817 = vmatprep.subr.mxu0 0.0
        %818 = vmatpush1.msra.mxu0 0.0
        %819 = vmatprep.subr.mxu0 0.0
        %820 = vmatpush1.msra.mxu0 0.0
        %821 = vmatprep.mubr.f32.mxu0 0.0
        %822 = vmatmul.mubr.f32.gmra.mrb[0].mxu0 %v752
        %v823 = vpop.f32.mrb[0].mxu0
        %v824 = vadd.f32 0.0, %v823
        %v825 = vpop.f32.mrb[0].mxu0
        %826 = vmatprep.mubr.f32.mxu0 0.0
        %827 = vmatmul.mubr.f32.gmra.mrb[0].mxu0 %v755
        %v828 = vpop.f32.mrb[0].mxu0
        %v829 = vadd.f32 0.0, %v828
        %v830 = vpop.f32.mrb[0].mxu0
        %831 = vdwg.mxu0
        %v832 = vlaneseq
        %v833 = vshrl.u32 %v832, 7
        %v834 = vsub.s32 3, %v833
        %v835 = vrot.slane %v446, %v834
        %v836 = vmul.f32 %v824, %v835
        %v837 = vmul.f32 %v829, %v835
        %v838 = vadd.f32 %v743, %v836
        %v839 = vadd.f32 %v744, %v837
        %v840 = vadd.s32 %v444, 1
        %v841 = vadd.s32 %v445, 1
        %vm842 = vcmp.eq.s32.totalorder %v338, %v840
        %vm843 = vcmp.eq.s32.totalorder %v338, %v841
        %v844 = vsel %vm842, 1, 0
        %v845 = vsel %vm843, 1, 0
        %v846 = vcvt.s32.f32 %v844
        %v847 = vcvt.s32.f32 %v845
        %v849 = vsel %vm461, %v846, 0
        %v852 = vsel %vm461, %v847, 0
        %854 = vmatprep.subr.mxu0 0.0
        %855 = vmatpush1.msra.mxu0 %v432
        %856 = vmatprep.subr.mxu0 0.0
        %857 = vmatpush1.msra.mxu0 %v437
        %858 = vmatprep.subr.mxu0 0.0
        %859 = vmatpush1.msra.mxu0 0.0
        %860 = vmatprep.subr.mxu0 0.0
        %861 = vmatpush1.msra.mxu0 0.0
        %862 = vmatprep.subr.mxu0 0.0
        %863 = vmatpush1.msra.mxu0 0.0
        %864 = vmatprep.subr.mxu0 0.0
        %865 = vmatpush1.msra.mxu0 0.0
        %866 = vmatprep.subr.mxu0 0.0
        %867 = vmatpush1.msra.mxu0 0.0
        %868 = vmatprep.subr.mxu0 0.0
        %869 = vmatpush1.msra.mxu0 0.0
        %870 = vmatprep.subr.mxu0 0.0
        %871 = vmatpush1.msra.mxu0 0.0
        %872 = vmatprep.subr.mxu0 0.0
        %873 = vmatpush1.msra.mxu0 0.0
        %874 = vmatprep.subr.mxu0 0.0
        %875 = vmatpush1.msra.mxu0 0.0
        %876 = vmatprep.subr.mxu0 0.0
        %877 = vmatpush1.msra.mxu0 0.0
        %878 = vmatprep.subr.mxu0 0.0
        %879 = vmatpush1.msra.mxu0 0.0
        %880 = vmatprep.subr.mxu0 0.0
        %881 = vmatpush1.msra.mxu0 0.0
        %882 = vmatprep.subr.mxu0 0.0
        %883 = vmatpush1.msra.mxu0 0.0
        %884 = vmatprep.subr.mxu0 0.0
        %885 = vmatpush1.msra.mxu0 0.0
        %886 = vmatprep.subr.mxu0 0.0
        %887 = vmatpush1.msra.mxu0 0.0
        %888 = vmatprep.subr.mxu0 0.0
        %889 = vmatpush1.msra.mxu0 0.0
        %890 = vmatprep.subr.mxu0 0.0
        %891 = vmatpush1.msra.mxu0 0.0
        %892 = vmatprep.subr.mxu0 0.0
        %893 = vmatpush1.msra.mxu0 0.0
        %894 = vmatprep.subr.mxu0 0.0
        %895 = vmatpush1.msra.mxu0 0.0
        %896 = vmatprep.subr.mxu0 0.0
        %897 = vmatpush1.msra.mxu0 0.0
        %898 = vmatprep.subr.mxu0 0.0
        %899 = vmatpush1.msra.mxu0 0.0
        %900 = vmatprep.subr.mxu0 0.0
        %901 = vmatpush1.msra.mxu0 0.0
        %902 = vmatprep.subr.mxu0 0.0
        %903 = vmatpush1.msra.mxu0 0.0
        %904 = vmatprep.subr.mxu0 0.0
        %905 = vmatpush1.msra.mxu0 0.0
        %906 = vmatprep.subr.mxu0 0.0
        %907 = vmatpush1.msra.mxu0 0.0
        %908 = vmatprep.subr.mxu0 0.0
        %909 = vmatpush1.msra.mxu0 0.0
        %910 = vmatprep.subr.mxu0 0.0
        %911 = vmatpush1.msra.mxu0 0.0
        %912 = vmatprep.subr.mxu0 0.0
        %913 = vmatpush1.msra.mxu0 0.0
        %914 = vmatprep.subr.mxu0 0.0
        %915 = vmatpush1.msra.mxu0 0.0
        %916 = vmatprep.subr.mxu0 0.0
        %917 = vmatpush1.msra.mxu0 0.0
        %918 = vmatprep.mubr.f32.mxu0 0.0
        %919 = vmatmul.mubr.f32.gmra.mrb[0].mxu0 %v849
        %v920 = vpop.f32.mrb[0].mxu0
        %v921 = vadd.f32 0.0, %v920
        %v922 = vpop.f32.mrb[0].mxu0
        %923 = vmatprep.mubr.f32.mxu0 0.0
        %924 = vmatmul.mubr.f32.gmra.mrb[0].mxu0 %v852
        %v925 = vpop.f32.mrb[0].mxu0
        %v926 = vadd.f32 0.0, %v925
        %v927 = vpop.f32.mrb[0].mxu0
        %928 = vdwg.mxu0
        %v929 = vlaneseq
        %v930 = vshrl.u32 %v929, 7
        %v931 = vsub.s32 4, %v930
        %v932 = vrot.slane %v446, %v931
        %v933 = vmul.f32 %v921, %v932
        %v934 = vmul.f32 %v926, %v932
        %v935 = vadd.f32 %v838, %v933
        %v936 = vadd.f32 %v839, %v934
        %v937 = vadd.s32 %v444, 2
        %v938 = vadd.s32 %v445, 2
        %vm939 = vcmp.eq.s32.totalorder %v338, %v937
        %vm940 = vcmp.eq.s32.totalorder %v338, %v938
        %v941 = vsel %vm939, 1, 0
        %v942 = vsel %vm940, 1, 0
        %v943 = vcvt.s32.f32 %v941
        %v944 = vcvt.s32.f32 %v942
        %v946 = vsel %vm461, %v943, 0
        %v949 = vsel %vm461, %v944, 0
        %951 = vmatprep.subr.mxu0 0.0
        %952 = vmatpush1.msra.mxu0 %v432
        %953 = vmatprep.subr.mxu0 0.0
        %954 = vmatpush1.msra.mxu0 %v437
        %955 = vmatprep.subr.mxu0 0.0
        %956 = vmatpush1.msra.mxu0 0.0
        %957 = vmatprep.subr.mxu0 0.0
        %958 = vmatpush1.msra.mxu0 0.0
        %959 = vmatprep.subr.mxu0 0.0
        %960 = vmatpush1.msra.mxu0 0.0
        %961 = vmatprep.subr.mxu0 0.0
        %962 = vmatpush1.msra.mxu0 0.0
        %963 = vmatprep.subr.mxu0 0.0
        %964 = vmatpush1.msra.mxu0 0.0
        %965 = vmatprep.subr.mxu0 0.0
        %966 = vmatpush1.msra.mxu0 0.0
        %967 = vmatprep.subr.mxu0 0.0
        %968 = vmatpush1.msra.mxu0 0.0
        %969 = vmatprep.subr.mxu0 0.0
        %970 = vmatpush1.msra.mxu0 0.0
        %971 = vmatprep.subr.mxu0 0.0
        %972 = vmatpush1.msra.mxu0 0.0
        %973 = vmatprep.subr.mxu0 0.0
        %974 = vmatpush1.msra.mxu0 0.0
        %975 = vmatprep.subr.mxu0 0.0
        %976 = vmatpush1.msra.mxu0 0.0
        %977 = vmatprep.subr.mxu0 0.0
        %978 = vmatpush1.msra.mxu0 0.0
        %979 = vmatprep.subr.mxu0 0.0
        %980 = vmatpush1.msra.mxu0 0.0
        %981 = vmatprep.subr.mxu0 0.0
        %982 = vmatpush1.msra.mxu0 0.0
        %983 = vmatprep.subr.mxu0 0.0
        %984 = vmatpush1.msra.mxu0 0.0
        %985 = vmatprep.subr.mxu0 0.0
        %986 = vmatpush1.msra.mxu0 0.0
        %987 = vmatprep.subr.mxu0 0.0
        %988 = vmatpush1.msra.mxu0 0.0
        %989 = vmatprep.subr.mxu0 0.0
        %990 = vmatpush1.msra.mxu0 0.0
        %991 = vmatprep.subr.mxu0 0.0
        %992 = vmatpush1.msra.mxu0 0.0
        %993 = vmatprep.subr.mxu0 0.0
        %994 = vmatpush1.msra.mxu0 0.0
        %995 = vmatprep.subr.mxu0 0.0
        %996 = vmatpush1.msra.mxu0 0.0
        %997 = vmatprep.subr.mxu0 0.0
        %998 = vmatpush1.msra.mxu0 0.0
        %999 = vmatprep.subr.mxu0 0.0
        %1000 = vmatpush1.msra.mxu0 0.0
        %1001 = vmatprep.subr.mxu0 0.0
        %1002 = vmatpush1.msra.mxu0 0.0
        %1003 = vmatprep.subr.mxu0 0.0
        %1004 = vmatpush1.msra.mxu0 0.0
        %1005 = vmatprep.subr.mxu0 0.0
        %1006 = vmatpush1.msra.mxu0 0.0
        %1007 = vmatprep.subr.mxu0 0.0
        %1008 = vmatpush1.msra.mxu0 0.0
        %1009 = vmatprep.subr.mxu0 0.0
        %1010 = vmatpush1.msra.mxu0 0.0
        %1011 = vmatprep.subr.mxu0 0.0
        %1012 = vmatpush1.msra.mxu0 0.0
        %1013 = vmatprep.subr.mxu0 0.0
        %1014 = vmatpush1.msra.mxu0 0.0
        %1015 = vmatprep.mubr.f32.mxu0 0.0
        %1016 = vmatmul.mubr.f32.gmra.mrb[0].mxu0 %v946
        %v1017 = vpop.f32.mrb[0].mxu0
        %v1018 = vadd.f32 0.0, %v1017
        %v1019 = vpop.f32.mrb[0].mxu0
        %1020 = vmatprep.mubr.f32.mxu0 0.0
        %1021 = vmatmul.mubr.f32.gmra.mrb[0].mxu0 %v949
        %v1022 = vpop.f32.mrb[0].mxu0
        %v1023 = vadd.f32 0.0, %v1022
        %v1024 = vpop.f32.mrb[0].mxu0
        %1025 = vdwg.mxu0
        %v1026 = vlaneseq
        %v1027 = vshrl.u32 %v1026, 7
        %v1028 = vsub.s32 5, %v1027
        %v1029 = vrot.slane %v446, %v1028
        %v1030 = vmul.f32 %v1018, %v1029
        %v1031 = vmul.f32 %v1023, %v1029
        %v1032 = vadd.f32 %v935, %v1030
        %v1033 = vadd.f32 %v936, %v1031
        %v1034 = vadd.s32 %v444, 3
        %v1035 = vadd.s32 %v445, 3
        %vm1036 = vcmp.eq.s32.totalorder %v338, %v1034
        %vm1037 = vcmp.eq.s32.totalorder %v338, %v1035
        %v1038 = vsel %vm1036, 1, 0
        %v1039 = vsel %vm1037, 1, 0
        %v1040 = vcvt.s32.f32 %v1038
        %v1041 = vcvt.s32.f32 %v1039
        %v1043 = vsel %vm461, %v1040, 0
        %v1046 = vsel %vm461, %v1041, 0
        %1048 = vmatprep.subr.mxu0 0.0
        %1049 = vmatpush1.msra.mxu0 %v432
        %1050 = vmatprep.subr.mxu0 0.0
        %1051 = vmatpush1.msra.mxu0 %v437
        %1052 = vmatprep.subr.mxu0 0.0
        %1053 = vmatpush1.msra.mxu0 0.0
        %1054 = vmatprep.subr.mxu0 0.0
        %1055 = vmatpush1.msra.mxu0 0.0
        %1056 = vmatprep.subr.mxu0 0.0
        %1057 = vmatpush1.msra.mxu0 0.0
        %1058 = vmatprep.subr.mxu0 0.0
        %1059 = vmatpush1.msra.mxu0 0.0
        %1060 = vmatprep.subr.mxu0 0.0
        %1061 = vmatpush1.msra.mxu0 0.0
        %1062 = vmatprep.subr.mxu0 0.0
        %1063 = vmatpush1.msra.mxu0 0.0
        %1064 = vmatprep.subr.mxu0 0.0
        %1065 = vmatpush1.msra.mxu0 0.0
        %1066 = vmatprep.subr.mxu0 0.0
        %1067 = vmatpush1.msra.mxu0 0.0
        %1068 = vmatprep.subr.mxu0 0.0
        %1069 = vmatpush1.msra.mxu0 0.0
        %1070 = vmatprep.subr.mxu0 0.0
        %1071 = vmatpush1.msra.mxu0 0.0
        %1072 = vmatprep.subr.mxu0 0.0
        %1073 = vmatpush1.msra.mxu0 0.0
        %1074 = vmatprep.subr.mxu0 0.0
        %1075 = vmatpush1.msra.mxu0 0.0
        %1076 = vmatprep.subr.mxu0 0.0
        %1077 = vmatpush1.msra.mxu0 0.0
        %1078 = vmatprep.subr.mxu0 0.0
        %1079 = vmatpush1.msra.mxu0 0.0
        %1080 = vmatprep.subr.mxu0 0.0
        %1081 = vmatpush1.msra.mxu0 0.0
        %1082 = vmatprep.subr.mxu0 0.0
        %1083 = vmatpush1.msra.mxu0 0.0
        %1084 = vmatprep.subr.mxu0 0.0
        %1085 = vmatpush1.msra.mxu0 0.0
        %1086 = vmatprep.subr.mxu0 0.0
        %1087 = vmatpush1.msra.mxu0 0.0
        %1088 = vmatprep.subr.mxu0 0.0
        %1089 = vmatpush1.msra.mxu0 0.0
        %1090 = vmatprep.subr.mxu0 0.0
        %1091 = vmatpush1.msra.mxu0 0.0
        %1092 = vmatprep.subr.mxu0 0.0
        %1093 = vmatpush1.msra.mxu0 0.0
        %1094 = vmatprep.subr.mxu0 0.0
        %1095 = vmatpush1.msra.mxu0 0.0
        %1096 = vmatprep.subr.mxu0 0.0
        %1097 = vmatpush1.msra.mxu0 0.0
        %1098 = vmatprep.subr.mxu0 0.0
        %1099 = vmatpush1.msra.mxu0 0.0
        %1100 = vmatprep.subr.mxu0 0.0
        %1101 = vmatpush1.msra.mxu0 0.0
        %1102 = vmatprep.subr.mxu0 0.0
        %1103 = vmatpush1.msra.mxu0 0.0
        %1104 = vmatprep.subr.mxu0 0.0
        %1105 = vmatpush1.msra.mxu0 0.0
        %1106 = vmatprep.subr.mxu0 0.0
        %1107 = vmatpush1.msra.mxu0 0.0
        %1108 = vmatprep.subr.mxu0 0.0
        %1109 = vmatpush1.msra.mxu0 0.0
        %1110 = vmatprep.subr.mxu0 0.0
        %1111 = vmatpush1.msra.mxu0 0.0
        %1112 = vmatprep.mubr.f32.mxu0 0.0
        %1113 = vmatmul.mubr.f32.gmra.mrb[0].mxu0 %v1043
        %v1114 = vpop.f32.mrb[0].mxu0
        %v1115 = vadd.f32 0.0, %v1114
        %v1116 = vpop.f32.mrb[0].mxu0
        %1117 = vmatprep.mubr.f32.mxu0 0.0
        %1118 = vmatmul.mubr.f32.gmra.mrb[0].mxu0 %v1046
        %v1119 = vpop.f32.mrb[0].mxu0
        %v1120 = vadd.f32 0.0, %v1119
        %v1121 = vpop.f32.mrb[0].mxu0
        %1122 = vdwg.mxu0
        %v1123 = vlaneseq
        %v1124 = vshrl.u32 %v1123, 7
        %v1125 = vsub.s32 6, %v1124
        %v1126 = vrot.slane %v446, %v1125
        %v1127 = vmul.f32 %v1115, %v1126
        %v1128 = vmul.f32 %v1120, %v1126
        %v1129 = vadd.f32 %v1032, %v1127
        %v1130 = vadd.f32 %v1033, %v1128
        %1131 = vadd.xlane.f32.xlu0 %v1129
        %v1132 = vpop.xlane.xlu0 %1131
        %1133 = vadd.xlane.f32.xlu0 %v1130
        %v1134 = vpop.xlane.xlu0 %1133
        %v1135 = vmul.f32 %v1132, 0.015625
        %v1136 = vmul.f32 %v1134, 0.015625
        %v1137 = vsub.f32 %v1129, %v1135
        %v1138 = vsub.f32 %v1130, %v1136
        %v1139 = vmul.f32 %v1137, %v1137
        %v1140 = vmul.f32 %v1138, %v1138
        %v1141 = vmul.f32 %v1139, %v442
        %v1142 = vmul.f32 %v1140, %v442
        %1143 = vadd.xlane.f32.xlu0 %v1141
        %v1144 = vpop.xlane.xlu0 %1143
        %1145 = vadd.xlane.f32.xlu0 %v1142
        %v1146 = vpop.xlane.xlu0 %1145
        %v1147 = vmul.f32 %v1144, 0.015625
        %v1148 = vmul.f32 %v1146, 0.015625
        %v1149 = vadd.f32 %v1147, 1e-06
        %v1150 = vadd.f32 %v1148, 1e-06
        %v1151 = vrsqrt.pop %v1149
        %v1152 = vrsqrt.pop %v1150
        %v1153 = vmul.f32 %v1137, %v1151
        %v1154 = vmul.f32 %v1138, %v1152
        %v1155 = vlaneseq
        %v1156 = vshrl.u32 %v1155, 7
        %v1157 = vsub.s32 1, %v1156
        %v1158 = vrot.slane %v447, %v1157
        %v1159 = vmul.f32 %v1153, %v1158
        %v1160 = vmul.f32 %v1154, %v1158
        %v1161 = vlaneseq
        %v1162 = vshrl.u32 %v1161, 7
        %v1163 = vsub.s32 2, %v1162
        %v1164 = vrot.slane %v447, %v1163
        %v1165 = vadd.f32 %v1159, %v1164
        %v1166 = vadd.f32 %v1160, %v1164
        %v1167 = vpack.c.bf16 %v1166, %v1165
        %v1168 = vld [vmem:[#allocation2] sm:$0xf]
        %v1169 = vld [vmem:[#allocation2 + $0x4] sm:$0xf]
        %v1170 = vld [vmem:[#allocation2 + $0x8] sm:$0xf]
        %v1171 = vld [vmem:[#allocation2 + $0xc] sm:$0xf]
        %v1172 = vld [vmem:[#allocation2 + $0x10] sm:$0xf]
        %v1173 = vld [vmem:[#allocation2 + $0x14] sm:$0xf]
        %v1174 = vld [vmem:[#allocation2 + $0x18] sm:$0xf]
        %v1175 = vld [vmem:[#allocation2 + $0x1c] sm:$0xf]
        %v1176 = vld [vmem:[#allocation2 + $0x20] sm:$0xf]
        %v1177 = vld [vmem:[#allocation2 + $0x24] sm:$0xf]
        %v1178 = vld [vmem:[#allocation2 + $0x28] sm:$0xf]
        %v1179 = vld [vmem:[#allocation2 + $0x2c] sm:$0xf]
        %v1180 = vld [vmem:[#allocation2 + $0x30] sm:$0xf]
        %v1181 = vld [vmem:[#allocation2 + $0x34] sm:$0xf]
        %v1182 = vld [vmem:[#allocation2 + $0x38] sm:$0xf]
        %v1183 = vld [vmem:[#allocation2 + $0x3c] sm:$0xf]
        %v1184 = vlaneseq
        %v1185 = vshrl.u32 %v1184, 7
        %v1186 = vsub.s32 0, %v1185
        %v1187 = vrot.slane %v448, %v1186
        %v1204 = vunpack.c.l.b16 %v1168
        %v1205 = vunpack.c.l.b16 %v1169
        %v1206 = vunpack.c.l.b16 %v1170
        %v1207 = vunpack.c.l.b16 %v1171
        %v1208 = vunpack.c.l.b16 %v1172
        %v1209 = vunpack.c.l.b16 %v1173
        %v1210 = vunpack.c.l.b16 %v1174
        %v1211 = vunpack.c.l.b16 %v1175
        %v1212 = vunpack.c.l.b16 %v1176
        %v1213 = vunpack.c.l.b16 %v1177
        %v1214 = vunpack.c.l.b16 %v1178
        %v1215 = vunpack.c.l.b16 %v1179
        %v1216 = vunpack.c.l.b16 %v1180
        %v1217 = vunpack.c.l.b16 %v1181
        %v1218 = vunpack.c.l.b16 %v1182
        %v1219 = vunpack.c.l.b16 %v1183
        %v1220 = vpack.c.b16 %v1205, %v1204
        %v1221 = vpack.c.b16 %v1207, %v1206
        %v1222 = vpack.c.b16 %v1209, %v1208
        %v1223 = vpack.c.b16 %v1211, %v1210
        %v1224 = vpack.c.b16 %v1213, %v1212
        %v1225 = vpack.c.b16 %v1215, %v1214
        %v1226 = vpack.c.b16 %v1217, %v1216
        %v1227 = vpack.c.b16 %v1219, %v1218
        %1236 = vmatprep.subr.bf16.mxu0 0
        %1237 = vmatpush1.bf16.msra.mxu0 %v1220
        %1238 = vmatprep.subr.bf16.mxu0 0
        %1239 = vmatpush1.bf16.msra.mxu0 %v1221
        %1240 = vmatprep.subr.bf16.mxu0 0
        %1241 = vmatpush1.bf16.msra.mxu0 %v1222
        %1242 = vmatprep.subr.bf16.mxu0 0
        %1243 = vmatpush1.bf16.msra.mxu0 %v1223
        %1244 = vmatprep.subr.bf16.mxu0 0
        %1245 = vmatpush1.bf16.msra.mxu0 %v1224
        %1246 = vmatprep.subr.bf16.mxu0 0
        %1247 = vmatpush1.bf16.msra.mxu0 %v1225
        %1248 = vmatprep.subr.bf16.mxu0 0
        %1249 = vmatpush1.bf16.msra.mxu0 %v1226
        %1250 = vmatprep.subr.bf16.mxu0 0
        %1251 = vmatpush1.bf16.msra.mxu0 %v1227
        %1252 = vmatprep.subr.bf16.mxu0 0
        %1253 = vmatpush1.bf16.msra.mxu0 0
        %1254 = vmatprep.subr.bf16.mxu0 0
        %1255 = vmatpush1.bf16.msra.mxu0 0
        %1256 = vmatprep.subr.bf16.mxu0 0
        %1257 = vmatpush1.bf16.msra.mxu0 0
        %1258 = vmatprep.subr.bf16.mxu0 0
        %1259 = vmatpush1.bf16.msra.mxu0 0
        %1260 = vmatprep.subr.bf16.mxu0 0
        %1261 = vmatpush1.bf16.msra.mxu0 0
        %1262 = vmatprep.subr.bf16.mxu0 0
        %1263 = vmatpush1.bf16.msra.mxu0 0
        %1264 = vmatprep.subr.bf16.mxu0 0
        %1265 = vmatpush1.bf16.msra.mxu0 0
        %1266 = vmatprep.subr.bf16.mxu0 0
        %1267 = vmatpush1.bf16.msra.mxu0 0
        %1268 = vmatprep.mubr.bf16.mxu0 0
        %1269 = vmatmul.mubr.bf16.gmra.mrb[0].mxu0 %v1167
        %v1270 = vpop.f32.mrb[0].mxu0
        %v1271 = vadd.f32 %v1187, %v1270
        %v1272 = vpop.f32.mrb[0].mxu0
        %v1273 = vpop.f32.mrb[0].mxu0
        %v1274 = vadd.f32 %v1187, %v1273
        %v1275 = vpop.f32.mrb[0].mxu0
        %1276 = vdwg.mxu0
        %v1277 = vmul.f32 %v1271, 0.5
        %v1278 = vmul.f32 %v1274, 0.5
        %v1279 = vmul.f32 %v1271, 0.70710677
        %v1280 = vmul.f32 %v1274, 0.70710677
        %vm1281 = vcmp.ge.f32.partialorder %v1279, 0.0
        %vm1282 = vcmp.ge.f32.partialorder %v1280, 0.0
        %v1283 = vsel %vm1281, 1.0, -1.0
        %v1284 = vsel %vm1282, 1.0, -1.0
        %v1285 = vand.u32 2147483647, %v1279
        %v1286 = vand.u32 2147483647, %v1280
        %v1287 = vmul.f32 %v1285, 0.3275911
        %v1288 = vmul.f32 %v1286, 0.3275911
        %v1289 = vadd.f32 %v1287, 1.0
        %v1290 = vadd.f32 %v1288, 1.0
        %v1291 = vrcp.pop %v1289
        %v1292 = vrcp.pop %v1290
        %v1293 = vmul.f32 %v1291, 1.0614054
        %v1294 = vmul.f32 %v1292, 1.0614054
        %v1295 = vadd.f32 %v1293, -1.4531521
        %v1296 = vadd.f32 %v1294, -1.4531521
        %v1297 = vmul.f32 %v1295, %v1291
        %v1298 = vmul.f32 %v1296, %v1292
        %v1299 = vadd.f32 %v1297, 1.4214138
        %v1300 = vadd.f32 %v1298, 1.4214138
        %v1301 = vmul.f32 %v1299, %v1291
        %v1302 = vmul.f32 %v1300, %v1292
        %v1303 = vadd.f32 %v1301, -0.28449672
        %v1304 = vadd.f32 %v1302, -0.28449672
        %v1305 = vmul.f32 %v1303, %v1291
        %v1306 = vmul.f32 %v1304, %v1292
        %v1307 = vadd.f32 %v1305, 0.2548296
        %v1308 = vadd.f32 %v1306, 0.2548296
        %v1309 = vmul.f32 %v1307, %v1291
        %v1310 = vmul.f32 %v1308, %v1292
        %v1311 = vsub.f32 0.0, %v1285
        %v1312 = vsub.f32 0.0, %v1286
        %v1313 = vmul.f32 %v1311, %v1285
        %v1314 = vmul.f32 %v1312, %v1286
        %v1315 = vmul.f32 %v1313, 1.442695
        %v1316 = vpow.pop %v1315
        %v1317 = vmul.f32 %v1314, 1.442695
        %v1318 = vpow.pop %v1317
        %v1319 = vmul.f32 %v1309, %v1316
        %v1320 = vmul.f32 %v1310, %v1318
        %v1321 = vsub.f32 1.0, %v1319
        %v1322 = vsub.f32 1.0, %v1320
        %v1323 = vmul.f32 %v1283, %v1321
        %v1324 = vmul.f32 %v1284, %v1322
        %v1325 = vadd.f32 %v1323, 1.0
        %v1326 = vadd.f32 %v1324, 1.0
        %v1327 = vmul.f32 %v1277, %v1325
        %v1328 = vmul.f32 %v1278, %v1326
        %v1329 = vmul.f32 %v1327, %v1327
        %v1330 = vmul.f32 %v1328, %v1328
        %v1331 = vadd.f32 %v1329, %v1330
        %v1332 = vrot.slane %v1331, 4
        %v1333 = vadd.f32 %v1331, %v1332
        %v1334 = vrot.slane %v1333, 2
        %v1335 = vadd.f32 %v1333, %v1334
        %v1336 = vrot.slane %v1335, 1
        %v1337 = vadd.f32 %v1335, %v1336
        %v1338 = vrsqrt.pop %v1337
        %v1339 = vmul.f32 %v1337, %v1338
        %vm1340 = vcmp.eq.f32.partialorder %v1337, inf
        %v1341 = vsel %vm1340, %v1337, %v1339
        %vm1342 = vcmp.eq.f32.partialorder %v1337, 0.0
        %v1343 = vand.u32 %v1337, 2147483648
        %v1344 = vsel %vm1342, %v1343, %v1341
        %1345 = vadd.xlane.f32.xlu0 %v1344
        %v1346 = vpop.xlane.xlu0 %1345
        %v1347 = vrcp.pop 128.0
        %v1348 = vmul.f32 %v1346, %v1347
        %v1349 = vadd.f32 %v1348, 1e-06
        %v1350 = vrcp.pop %v1349
        %v1351 = vmul.f32 %v1344, %v1350
        %v1352 = vmul.f32 %v1327, %v1351
        %v1353 = vmul.f32 %v1328, %v1351
        %v1354 = vlaneseq
        %v1355 = vshrl.u32 %v1354, 7
        %v1356 = vsub.s32 1, %v1355
        %v1357 = vrot.slane %v448, %v1356
        %v1358 = vmul.f32 %v1357, %v1352
        %v1359 = vmul.f32 %v1357, %v1353
        %v1360 = vlaneseq
        %v1361 = vshrl.u32 %v1360, 7
        %v1362 = vsub.s32 2, %v1361
        %v1363 = vrot.slane %v448, %v1362
        %v1364 = vadd.f32 %v1358, %v1363
        %v1365 = vadd.f32 %v1359, %v1363
        %v1366 = vadd.f32 %v1364, %v1327
        %v1367 = vadd.f32 %v1365, %v1328
        %v1368 = vpack.c.bf16 %v1367, %v1366
        %v1369 = vld [vmem:[#allocation5] sm:$0xf]
        %v1370 = vld [vmem:[#allocation5 + $0x4] sm:$0xf]
        %v1371 = vld [vmem:[#allocation5 + $0x8] sm:$0xf]
        %v1372 = vld [vmem:[#allocation5 + $0xc] sm:$0xf]
        %v1373 = vld [vmem:[#allocation5 + $0x10] sm:$0xf]
        %v1374 = vld [vmem:[#allocation5 + $0x14] sm:$0xf]
        %v1375 = vld [vmem:[#allocation5 + $0x18] sm:$0xf]
        %v1376 = vld [vmem:[#allocation5 + $0x1c] sm:$0xf]
        %v1377 = vld [vmem:[#allocation5 + $0x20] sm:$0xf]
        %v1378 = vld [vmem:[#allocation5 + $0x24] sm:$0xf]
        %v1379 = vld [vmem:[#allocation5 + $0x28] sm:$0xf]
        %v1380 = vld [vmem:[#allocation5 + $0x2c] sm:$0xf]
        %v1381 = vld [vmem:[#allocation5 + $0x30] sm:$0xf]
        %v1382 = vld [vmem:[#allocation5 + $0x34] sm:$0xf]
        %v1383 = vld [vmem:[#allocation5 + $0x38] sm:$0xf]
        %v1384 = vld [vmem:[#allocation5 + $0x3c] sm:$0xf]
        %v1385 = vlaneseq
        %v1386 = vshrl.u32 %v1385, 7
        %v1387 = vsub.s32 3, %v1386
        %v1388 = vrot.slane %v447, %v1387
        %v1405 = vunpack.c.l.b16 %v1369
        %v1406 = vunpack.c.l.b16 %v1370
        %v1407 = vunpack.c.l.b16 %v1371
        %v1408 = vunpack.c.l.b16 %v1372
        %v1409 = vunpack.c.l.b16 %v1373
        %v1410 = vunpack.c.l.b16 %v1374
        %v1411 = vunpack.c.l.b16 %v1375
        %v1412 = vunpack.c.l.b16 %v1376
        %v1413 = vunpack.c.l.b16 %v1377
        %v1414 = vunpack.c.l.b16 %v1378
        %v1415 = vunpack.c.l.b16 %v1379
        %v1416 = vunpack.c.l.b16 %v1380
        %v1417 = vunpack.c.l.b16 %v1381
        %v1418 = vunpack.c.l.b16 %v1382
        %v1419 = vunpack.c.l.b16 %v1383
        %v1420 = vunpack.c.l.b16 %v1384
        %v1421 = vpack.c.b16 %v1406, %v1405
        %v1422 = vpack.c.b16 %v1408, %v1407
        %v1423 = vpack.c.b16 %v1410, %v1409
        %v1424 = vpack.c.b16 %v1412, %v1411
        %v1425 = vpack.c.b16 %v1414, %v1413
        %v1426 = vpack.c.b16 %v1416, %v1415
        %v1427 = vpack.c.b16 %v1418, %v1417
        %v1428 = vpack.c.b16 %v1420, %v1419
        %1437 = vmatprep.subr.bf16.mxu0 0
        %1438 = vmatpush1.bf16.msra.mxu0 %v1421
        %1439 = vmatprep.subr.bf16.mxu0 0
        %1440 = vmatpush1.bf16.msra.mxu0 %v1422
        %1441 = vmatprep.subr.bf16.mxu0 0
        %1442 = vmatpush1.bf16.msra.mxu0 %v1423
        %1443 = vmatprep.subr.bf16.mxu0 0
        %1444 = vmatpush1.bf16.msra.mxu0 %v1424
        %1445 = vmatprep.subr.bf16.mxu0 0
        %1446 = vmatpush1.bf16.msra.mxu0 %v1425
        %1447 = vmatprep.subr.bf16.mxu0 0
        %1448 = vmatpush1.bf16.msra.mxu0 %v1426
        %1449 = vmatprep.subr.bf16.mxu0 0
        %1450 = vmatpush1.bf16.msra.mxu0 %v1427
        %1451 = vmatprep.subr.bf16.mxu0 0
        %1452 = vmatpush1.bf16.msra.mxu0 %v1428
        %1453 = vmatprep.subr.bf16.mxu0 0
        %1454 = vmatpush1.bf16.msra.mxu0 0
        %1455 = vmatprep.subr.bf16.mxu0 0
        %1456 = vmatpush1.bf16.msra.mxu0 0
        %1457 = vmatprep.subr.bf16.mxu0 0
        %1458 = vmatpush1.bf16.msra.mxu0 0
        %1459 = vmatprep.subr.bf16.mxu0 0
        %1460 = vmatpush1.bf16.msra.mxu0 0
        %1461 = vmatprep.subr.bf16.mxu0 0
        %1462 = vmatpush1.bf16.msra.mxu0 0
        %1463 = vmatprep.subr.bf16.mxu0 0
        %1464 = vmatpush1.bf16.msra.mxu0 0
        %1465 = vmatprep.subr.bf16.mxu0 0
        %1466 = vmatpush1.bf16.msra.mxu0 0
        %1467 = vmatprep.subr.bf16.mxu0 0
        %1468 = vmatpush1.bf16.msra.mxu0 0
        %1469 = vmatprep.mubr.bf16.mxu0 0
        %1470 = vmatmul.mubr.bf16.gmra.mrb[0].mxu0 %v1368
        %v1471 = vpop.f32.mrb[0].mxu0
        %v1472 = vadd.f32 %v1388, %v1471
        %v1473 = vpop.f32.mrb[0].mxu0
        %v1474 = vpop.f32.mrb[0].mxu0
        %v1475 = vadd.f32 %v1388, %v1474
        %v1476 = vpop.f32.mrb[0].mxu0
        %1477 = vdwg.mxu0
        %v1478 = vadd.f32 %v432, %v1472
        %v1479 = vadd.f32 %v437, %v1475
        %s1480 = scalar_lea.vmem %s3, 8
        %v1481 = vld [vmem:[%s1480] sm:$0x7f]
        %s1482 = scalar_lea.vmem %s4, 4
        %v1483 = vld [vmem:[%s1482] sm:$0xf]
        %s1484 = scalar_lea.vmem %s6, 4
        %v1485 = vld [vmem:[%s1484] sm:$0x7]
        %v1486 = vlaneseq
        %v1487 = vshrl.u32 %v1486, 7
        %v1488 = vsub.s32 0, %v1487
        %v1489 = vrot.slane %v1483, %v1488
        %1490 = vmatprep.subr.mxu0 0.0
        %1491 = vmatpush1.msra.mxu0 %v1478
        %1492 = vmatprep.subr.mxu0 0.0
        %1493 = vmatpush1.msra.mxu0 %v1479
        %1494 = vmatprep.subr.mxu0 0.0
        %1495 = vmatpush1.msra.mxu0 0.0
        %1496 = vmatprep.subr.mxu0 0.0
        %1497 = vmatpush1.msra.mxu0 0.0
        %1498 = vmatprep.subr.mxu0 0.0
        %1499 = vmatpush1.msra.mxu0 0.0
        %1500 = vmatprep.subr.mxu0 0.0
        %1501 = vmatpush1.msra.mxu0 0.0
        %1502 = vmatprep.subr.mxu0 0.0
        %1503 = vmatpush1.msra.mxu0 0.0
        %1504 = vmatprep.subr.mxu0 0.0
        %1505 = vmatpush1.msra.mxu0 0.0
        %1506 = vmatprep.subr.mxu0 0.0
        %1507 = vmatpush1.msra.mxu0 0.0
        %1508 = vmatprep.subr.mxu0 0.0
        %1509 = vmatpush1.msra.mxu0 0.0
        %1510 = vmatprep.subr.mxu0 0.0
        %1511 = vmatpush1.msra.mxu0 0.0
        %1512 = vmatprep.subr.mxu0 0.0
        %1513 = vmatpush1.msra.mxu0 0.0
        %1514 = vmatprep.subr.mxu0 0.0
        %1515 = vmatpush1.msra.mxu0 0.0
        %1516 = vmatprep.subr.mxu0 0.0
        %1517 = vmatpush1.msra.mxu0 0.0
        %1518 = vmatprep.subr.mxu0 0.0
        %1519 = vmatpush1.msra.mxu0 0.0
        %1520 = vmatprep.subr.mxu0 0.0
        %1521 = vmatpush1.msra.mxu0 0.0
        %1522 = vmatprep.subr.mxu0 0.0
        %1523 = vmatpush1.msra.mxu0 0.0
        %1524 = vmatprep.subr.mxu0 0.0
        %1525 = vmatpush1.msra.mxu0 0.0
        %1526 = vmatprep.subr.mxu0 0.0
        %1527 = vmatpush1.msra.mxu0 0.0
        %1528 = vmatprep.subr.mxu0 0.0
        %1529 = vmatpush1.msra.mxu0 0.0
        %1530 = vmatprep.subr.mxu0 0.0
        %1531 = vmatpush1.msra.mxu0 0.0
        %1532 = vmatprep.subr.mxu0 0.0
        %1533 = vmatpush1.msra.mxu0 0.0
        %1534 = vmatprep.subr.mxu0 0.0
        %1535 = vmatpush1.msra.mxu0 0.0
        %1536 = vmatprep.subr.mxu0 0.0
        %1537 = vmatpush1.msra.mxu0 0.0
        %1538 = vmatprep.subr.mxu0 0.0
        %1539 = vmatpush1.msra.mxu0 0.0
        %1540 = vmatprep.subr.mxu0 0.0
        %1541 = vmatpush1.msra.mxu0 0.0
        %1542 = vmatprep.subr.mxu0 0.0
        %1543 = vmatpush1.msra.mxu0 0.0
        %1544 = vmatprep.subr.mxu0 0.0
        %1545 = vmatpush1.msra.mxu0 0.0
        %1546 = vmatprep.subr.mxu0 0.0
        %1547 = vmatpush1.msra.mxu0 0.0
        %1548 = vmatprep.subr.mxu0 0.0
        %1549 = vmatpush1.msra.mxu0 0.0
        %1550 = vmatprep.subr.mxu0 0.0
        %1551 = vmatpush1.msra.mxu0 0.0
        %1552 = vmatprep.subr.mxu0 0.0
        %1553 = vmatpush1.msra.mxu0 0.0
        %1554 = vmatprep.mubr.f32.mxu0 0.0
        %1555 = vmatmul.mubr.f32.gmra.mrb[0].mxu0 %v463
        %v1556 = vpop.f32.mrb[0].mxu0
        %v1557 = vadd.f32 0.0, %v1556
        %v1558 = vpop.f32.mrb[0].mxu0
        %1559 = vmatprep.mubr.f32.mxu0 0.0
        %1560 = vmatmul.mubr.f32.gmra.mrb[0].mxu0 %v466
        %v1561 = vpop.f32.mrb[0].mxu0
        %v1562 = vadd.f32 0.0, %v1561
        %v1563 = vpop.f32.mrb[0].mxu0
        %1564 = vdwg.mxu0
        %v1565 = vlaneseq
        %v1566 = vshrl.u32 %v1565, 7
        %v1567 = vsub.s32 0, %v1566
        %v1568 = vrot.slane %v1481, %v1567
        %v1569 = vmul.f32 %v1557, %v1568
        %v1570 = vmul.f32 %v1562, %v1568
        %v1571 = vadd.f32 %v1489, %v1569
        %v1572 = vadd.f32 %v1489, %v1570
        %1573 = vmatprep.subr.mxu0 0.0
        %1574 = vmatpush1.msra.mxu0 %v1478
        %1575 = vmatprep.subr.mxu0 0.0
        %1576 = vmatpush1.msra.mxu0 %v1479
        %1577 = vmatprep.subr.mxu0 0.0
        %1578 = vmatpush1.msra.mxu0 0.0
        %1579 = vmatprep.subr.mxu0 0.0
        %1580 = vmatpush1.msra.mxu0 0.0
        %1581 = vmatprep.subr.mxu0 0.0
        %1582 = vmatpush1.msra.mxu0 0.0
        %1583 = vmatprep.subr.mxu0 0.0
        %1584 = vmatpush1.msra.mxu0 0.0
        %1585 = vmatprep.subr.mxu0 0.0
        %1586 = vmatpush1.msra.mxu0 0.0
        %1587 = vmatprep.subr.mxu0 0.0
        %1588 = vmatpush1.msra.mxu0 0.0
        %1589 = vmatprep.subr.mxu0 0.0
        %1590 = vmatpush1.msra.mxu0 0.0
        %1591 = vmatprep.subr.mxu0 0.0
        %1592 = vmatpush1.msra.mxu0 0.0
        %1593 = vmatprep.subr.mxu0 0.0
        %1594 = vmatpush1.msra.mxu0 0.0
        %1595 = vmatprep.subr.mxu0 0.0
        %1596 = vmatpush1.msra.mxu0 0.0
        %1597 = vmatprep.subr.mxu0 0.0
        %1598 = vmatpush1.msra.mxu0 0.0
        %1599 = vmatprep.subr.mxu0 0.0
        %1600 = vmatpush1.msra.mxu0 0.0
        %1601 = vmatprep.subr.mxu0 0.0
        %1602 = vmatpush1.msra.mxu0 0.0
        %1603 = vmatprep.subr.mxu0 0.0
        %1604 = vmatpush1.msra.mxu0 0.0
        %1605 = vmatprep.subr.mxu0 0.0
        %1606 = vmatpush1.msra.mxu0 0.0
        %1607 = vmatprep.subr.mxu0 0.0
        %1608 = vmatpush1.msra.mxu0 0.0
        %1609 = vmatprep.subr.mxu0 0.0
        %1610 = vmatpush1.msra.mxu0 0.0
        %1611 = vmatprep.subr.mxu0 0.0
        %1612 = vmatpush1.msra.mxu0 0.0
        %1613 = vmatprep.subr.mxu0 0.0
        %1614 = vmatpush1.msra.mxu0 0.0
        %1615 = vmatprep.subr.mxu0 0.0
        %1616 = vmatpush1.msra.mxu0 0.0
        %1617 = vmatprep.subr.mxu0 0.0
        %1618 = vmatpush1.msra.mxu0 0.0
        %1619 = vmatprep.subr.mxu0 0.0
        %1620 = vmatpush1.msra.mxu0 0.0
        %1621 = vmatprep.subr.mxu0 0.0
        %1622 = vmatpush1.msra.mxu0 0.0
        %1623 = vmatprep.subr.mxu0 0.0
        %1624 = vmatpush1.msra.mxu0 0.0
        %1625 = vmatprep.subr.mxu0 0.0
        %1626 = vmatpush1.msra.mxu0 0.0
        %1627 = vmatprep.subr.mxu0 0.0
        %1628 = vmatpush1.msra.mxu0 0.0
        %1629 = vmatprep.subr.mxu0 0.0
        %1630 = vmatpush1.msra.mxu0 0.0
        %1631 = vmatprep.subr.mxu0 0.0
        %1632 = vmatpush1.msra.mxu0 0.0
        %1633 = vmatprep.subr.mxu0 0.0
        %1634 = vmatpush1.msra.mxu0 0.0
        %1635 = vmatprep.subr.mxu0 0.0
        %1636 = vmatpush1.msra.mxu0 0.0
        %1637 = vmatprep.mubr.f32.mxu0 0.0
        %1638 = vmatmul.mubr.f32.gmra.mrb[0].mxu0 %v560
        %v1639 = vpop.f32.mrb[0].mxu0
        %v1640 = vadd.f32 0.0, %v1639
        %v1641 = vpop.f32.mrb[0].mxu0
        %1642 = vmatprep.mubr.f32.mxu0 0.0
        %1643 = vmatmul.mubr.f32.gmra.mrb[0].mxu0 %v563
        %v1644 = vpop.f32.mrb[0].mxu0
        %v1645 = vadd.f32 0.0, %v1644
        %v1646 = vpop.f32.mrb[0].mxu0
        %1647 = vdwg.mxu0
        %v1648 = vlaneseq
        %v1649 = vshrl.u32 %v1648, 7
        %v1650 = vsub.s32 1, %v1649
        %v1651 = vrot.slane %v1481, %v1650
        %v1652 = vmul.f32 %v1640, %v1651
        %v1653 = vmul.f32 %v1645, %v1651
        %v1654 = vadd.f32 %v1571, %v1652
        %v1655 = vadd.f32 %v1572, %v1653
        %1656 = vmatprep.subr.mxu0 0.0
        %1657 = vmatpush1.msra.mxu0 %v1478
        %1658 = vmatprep.subr.mxu0 0.0
        %1659 = vmatpush1.msra.mxu0 %v1479
        %1660 = vmatprep.subr.mxu0 0.0
        %1661 = vmatpush1.msra.mxu0 0.0
        %1662 = vmatprep.subr.mxu0 0.0
        %1663 = vmatpush1.msra.mxu0 0.0
        %1664 = vmatprep.subr.mxu0 0.0
        %1665 = vmatpush1.msra.mxu0 0.0
        %1666 = vmatprep.subr.mxu0 0.0
        %1667 = vmatpush1.msra.mxu0 0.0
        %1668 = vmatprep.subr.mxu0 0.0
        %1669 = vmatpush1.msra.mxu0 0.0
        %1670 = vmatprep.subr.mxu0 0.0
        %1671 = vmatpush1.msra.mxu0 0.0
        %1672 = vmatprep.subr.mxu0 0.0
        %1673 = vmatpush1.msra.mxu0 0.0
        %1674 = vmatprep.subr.mxu0 0.0
        %1675 = vmatpush1.msra.mxu0 0.0
        %1676 = vmatprep.subr.mxu0 0.0
        %1677 = vmatpush1.msra.mxu0 0.0
        %1678 = vmatprep.subr.mxu0 0.0
        %1679 = vmatpush1.msra.mxu0 0.0
        %1680 = vmatprep.subr.mxu0 0.0
        %1681 = vmatpush1.msra.mxu0 0.0
        %1682 = vmatprep.subr.mxu0 0.0
        %1683 = vmatpush1.msra.mxu0 0.0
        %1684 = vmatprep.subr.mxu0 0.0
        %1685 = vmatpush1.msra.mxu0 0.0
        %1686 = vmatprep.subr.mxu0 0.0
        %1687 = vmatpush1.msra.mxu0 0.0
        %1688 = vmatprep.subr.mxu0 0.0
        %1689 = vmatpush1.msra.mxu0 0.0
        %1690 = vmatprep.subr.mxu0 0.0
        %1691 = vmatpush1.msra.mxu0 0.0
        %1692 = vmatprep.subr.mxu0 0.0
        %1693 = vmatpush1.msra.mxu0 0.0
        %1694 = vmatprep.subr.mxu0 0.0
        %1695 = vmatpush1.msra.mxu0 0.0
        %1696 = vmatprep.subr.mxu0 0.0
        %1697 = vmatpush1.msra.mxu0 0.0
        %1698 = vmatprep.subr.mxu0 0.0
        %1699 = vmatpush1.msra.mxu0 0.0
        %1700 = vmatprep.subr.mxu0 0.0
        %1701 = vmatpush1.msra.mxu0 0.0
        %1702 = vmatprep.subr.mxu0 0.0
        %1703 = vmatpush1.msra.mxu0 0.0
        %1704 = vmatprep.subr.mxu0 0.0
        %1705 = vmatpush1.msra.mxu0 0.0
        %1706 = vmatprep.subr.mxu0 0.0
        %1707 = vmatpush1.msra.mxu0 0.0
        %1708 = vmatprep.subr.mxu0 0.0
        %1709 = vmatpush1.msra.mxu0 0.0
        %1710 = vmatprep.subr.mxu0 0.0
        %1711 = vmatpush1.msra.mxu0 0.0
        %1712 = vmatprep.subr.mxu0 0.0
        %1713 = vmatpush1.msra.mxu0 0.0
        %1714 = vmatprep.subr.mxu0 0.0
        %1715 = vmatpush1.msra.mxu0 0.0
        %1716 = vmatprep.subr.mxu0 0.0
        %1717 = vmatpush1.msra.mxu0 0.0
        %1718 = vmatprep.subr.mxu0 0.0
        %1719 = vmatpush1.msra.mxu0 0.0
        %1720 = vmatprep.mubr.f32.mxu0 0.0
        %1721 = vmatmul.mubr.f32.gmra.mrb[0].mxu0 %v657
        %v1722 = vpop.f32.mrb[0].mxu0
        %v1723 = vadd.f32 0.0, %v1722
        %v1724 = vpop.f32.mrb[0].mxu0
        %1725 = vmatprep.mubr.f32.mxu0 0.0
        %1726 = vmatmul.mubr.f32.gmra.mrb[0].mxu0 %v660
        %v1727 = vpop.f32.mrb[0].mxu0
        %v1728 = vadd.f32 0.0, %v1727
        %v1729 = vpop.f32.mrb[0].mxu0
        %1730 = vdwg.mxu0
        %v1731 = vlaneseq
        %v1732 = vshrl.u32 %v1731, 7
        %v1733 = vsub.s32 2, %v1732
        %v1734 = vrot.slane %v1481, %v1733
        %v1735 = vmul.f32 %v1723, %v1734
        %v1736 = vmul.f32 %v1728, %v1734
        %v1737 = vadd.f32 %v1654, %v1735
        %v1738 = vadd.f32 %v1655, %v1736
        %1739 = vmatprep.subr.mxu0 0.0
        %1740 = vmatpush1.msra.mxu0 %v1478
        %1741 = vmatprep.subr.mxu0 0.0
        %1742 = vmatpush1.msra.mxu0 %v1479
        %1743 = vmatprep.subr.mxu0 0.0
        %1744 = vmatpush1.msra.mxu0 0.0
        %1745 = vmatprep.subr.mxu0 0.0
        %1746 = vmatpush1.msra.mxu0 0.0
        %1747 = vmatprep.subr.mxu0 0.0
        %1748 = vmatpush1.msra.mxu0 0.0
        %1749 = vmatprep.subr.mxu0 0.0
        %1750 = vmatpush1.msra.mxu0 0.0
        %1751 = vmatprep.subr.mxu0 0.0
        %1752 = vmatpush1.msra.mxu0 0.0
        %1753 = vmatprep.subr.mxu0 0.0
        %1754 = vmatpush1.msra.mxu0 0.0
        %1755 = vmatprep.subr.mxu0 0.0
        %1756 = vmatpush1.msra.mxu0 0.0
        %1757 = vmatprep.subr.mxu0 0.0
        %1758 = vmatpush1.msra.mxu0 0.0
        %1759 = vmatprep.subr.mxu0 0.0
        %1760 = vmatpush1.msra.mxu0 0.0
        %1761 = vmatprep.subr.mxu0 0.0
        %1762 = vmatpush1.msra.mxu0 0.0
        %1763 = vmatprep.subr.mxu0 0.0
        %1764 = vmatpush1.msra.mxu0 0.0
        %1765 = vmatprep.subr.mxu0 0.0
        %1766 = vmatpush1.msra.mxu0 0.0
        %1767 = vmatprep.subr.mxu0 0.0
        %1768 = vmatpush1.msra.mxu0 0.0
        %1769 = vmatprep.subr.mxu0 0.0
        %1770 = vmatpush1.msra.mxu0 0.0
        %1771 = vmatprep.subr.mxu0 0.0
        %1772 = vmatpush1.msra.mxu0 0.0
        %1773 = vmatprep.subr.mxu0 0.0
        %1774 = vmatpush1.msra.mxu0 0.0
        %1775 = vmatprep.subr.mxu0 0.0
        %1776 = vmatpush1.msra.mxu0 0.0
        %1777 = vmatprep.subr.mxu0 0.0
        %1778 = vmatpush1.msra.mxu0 0.0
        %1779 = vmatprep.subr.mxu0 0.0
        %1780 = vmatpush1.msra.mxu0 0.0
        %1781 = vmatprep.subr.mxu0 0.0
        %1782 = vmatpush1.msra.mxu0 0.0
        %1783 = vmatprep.subr.mxu0 0.0
        %1784 = vmatpush1.msra.mxu0 0.0
        %1785 = vmatprep.subr.mxu0 0.0
        %1786 = vmatpush1.msra.mxu0 0.0
        %1787 = vmatprep.subr.mxu0 0.0
        %1788 = vmatpush1.msra.mxu0 0.0
        %1789 = vmatprep.subr.mxu0 0.0
        %1790 = vmatpush1.msra.mxu0 0.0
        %1791 = vmatprep.subr.mxu0 0.0
        %1792 = vmatpush1.msra.mxu0 0.0
        %1793 = vmatprep.subr.mxu0 0.0
        %1794 = vmatpush1.msra.mxu0 0.0
        %1795 = vmatprep.subr.mxu0 0.0
        %1796 = vmatpush1.msra.mxu0 0.0
        %1797 = vmatprep.subr.mxu0 0.0
        %1798 = vmatpush1.msra.mxu0 0.0
        %1799 = vmatprep.subr.mxu0 0.0
        %1800 = vmatpush1.msra.mxu0 0.0
        %1801 = vmatprep.subr.mxu0 0.0
        %1802 = vmatpush1.msra.mxu0 0.0
        %1803 = vmatprep.mubr.f32.mxu0 0.0
        %1804 = vmatmul.mubr.f32.gmra.mrb[0].mxu0 %v752
        %v1805 = vpop.f32.mrb[0].mxu0
        %v1806 = vadd.f32 0.0, %v1805
        %v1807 = vpop.f32.mrb[0].mxu0
        %1808 = vmatprep.mubr.f32.mxu0 0.0
        %1809 = vmatmul.mubr.f32.gmra.mrb[0].mxu0 %v755
        %v1810 = vpop.f32.mrb[0].mxu0
        %v1811 = vadd.f32 0.0, %v1810
        %v1812 = vpop.f32.mrb[0].mxu0
        %1813 = vdwg.mxu0
        %v1814 = vlaneseq
        %v1815 = vshrl.u32 %v1814, 7
        %v1816 = vsub.s32 3, %v1815
        %v1817 = vrot.slane %v1481, %v1816
        %v1818 = vmul.f32 %v1806, %v1817
        %v1819 = vmul.f32 %v1811, %v1817
        %v1820 = vadd.f32 %v1737, %v1818
        %v1821 = vadd.f32 %v1738, %v1819
        %1822 = vmatprep.subr.mxu0 0.0
        %1823 = vmatpush1.msra.mxu0 %v1478
        %1824 = vmatprep.subr.mxu0 0.0
        %1825 = vmatpush1.msra.mxu0 %v1479
        %1826 = vmatprep.subr.mxu0 0.0
        %1827 = vmatpush1.msra.mxu0 0.0
        %1828 = vmatprep.subr.mxu0 0.0
        %1829 = vmatpush1.msra.mxu0 0.0
        %1830 = vmatprep.subr.mxu0 0.0
        %1831 = vmatpush1.msra.mxu0 0.0
        %1832 = vmatprep.subr.mxu0 0.0
        %1833 = vmatpush1.msra.mxu0 0.0
        %1834 = vmatprep.subr.mxu0 0.0
        %1835 = vmatpush1.msra.mxu0 0.0
        %1836 = vmatprep.subr.mxu0 0.0
        %1837 = vmatpush1.msra.mxu0 0.0
        %1838 = vmatprep.subr.mxu0 0.0
        %1839 = vmatpush1.msra.mxu0 0.0
        %1840 = vmatprep.subr.mxu0 0.0
        %1841 = vmatpush1.msra.mxu0 0.0
        %1842 = vmatprep.subr.mxu0 0.0
        %1843 = vmatpush1.msra.mxu0 0.0
        %1844 = vmatprep.subr.mxu0 0.0
        %1845 = vmatpush1.msra.mxu0 0.0
        %1846 = vmatprep.subr.mxu0 0.0
        %1847 = vmatpush1.msra.mxu0 0.0
        %1848 = vmatprep.subr.mxu0 0.0
        %1849 = vmatpush1.msra.mxu0 0.0
        %1850 = vmatprep.subr.mxu0 0.0
        %1851 = vmatpush1.msra.mxu0 0.0
        %1852 = vmatprep.subr.mxu0 0.0
        %1853 = vmatpush1.msra.mxu0 0.0
        %1854 = vmatprep.subr.mxu0 0.0
        %1855 = vmatpush1.msra.mxu0 0.0
        %1856 = vmatprep.subr.mxu0 0.0
        %1857 = vmatpush1.msra.mxu0 0.0
        %1858 = vmatprep.subr.mxu0 0.0
        %1859 = vmatpush1.msra.mxu0 0.0
        %1860 = vmatprep.subr.mxu0 0.0
        %1861 = vmatpush1.msra.mxu0 0.0
        %1862 = vmatprep.subr.mxu0 0.0
        %1863 = vmatpush1.msra.mxu0 0.0
        %1864 = vmatprep.subr.mxu0 0.0
        %1865 = vmatpush1.msra.mxu0 0.0
        %1866 = vmatprep.subr.mxu0 0.0
        %1867 = vmatpush1.msra.mxu0 0.0
        %1868 = vmatprep.subr.mxu0 0.0
        %1869 = vmatpush1.msra.mxu0 0.0
        %1870 = vmatprep.subr.mxu0 0.0
        %1871 = vmatpush1.msra.mxu0 0.0
        %1872 = vmatprep.subr.mxu0 0.0
        %1873 = vmatpush1.msra.mxu0 0.0
        %1874 = vmatprep.subr.mxu0 0.0
        %1875 = vmatpush1.msra.mxu0 0.0
        %1876 = vmatprep.subr.mxu0 0.0
        %1877 = vmatpush1.msra.mxu0 0.0
        %1878 = vmatprep.subr.mxu0 0.0
        %1879 = vmatpush1.msra.mxu0 0.0
        %1880 = vmatprep.subr.mxu0 0.0
        %1881 = vmatpush1.msra.mxu0 0.0
        %1882 = vmatprep.subr.mxu0 0.0
        %1883 = vmatpush1.msra.mxu0 0.0
        %1884 = vmatprep.subr.mxu0 0.0
        %1885 = vmatpush1.msra.mxu0 0.0
        %1886 = vmatprep.mubr.f32.mxu0 0.0
        %1887 = vmatmul.mubr.f32.gmra.mrb[0].mxu0 %v849
        %v1888 = vpop.f32.mrb[0].mxu0
        %v1889 = vadd.f32 0.0, %v1888
        %v1890 = vpop.f32.mrb[0].mxu0
        %1891 = vmatprep.mubr.f32.mxu0 0.0
        %1892 = vmatmul.mubr.f32.gmra.mrb[0].mxu0 %v852
        %v1893 = vpop.f32.mrb[0].mxu0
        %v1894 = vadd.f32 0.0, %v1893
        %v1895 = vpop.f32.mrb[0].mxu0
        %1896 = vdwg.mxu0
        %v1897 = vlaneseq
        %v1898 = vshrl.u32 %v1897, 7
        %v1899 = vsub.s32 4, %v1898
        %v1900 = vrot.slane %v1481, %v1899
        %v1901 = vmul.f32 %v1889, %v1900
        %v1902 = vmul.f32 %v1894, %v1900
        %v1903 = vadd.f32 %v1820, %v1901
        %v1904 = vadd.f32 %v1821, %v1902
        %1905 = vmatprep.subr.mxu0 0.0
        %1906 = vmatpush1.msra.mxu0 %v1478
        %1907 = vmatprep.subr.mxu0 0.0
        %1908 = vmatpush1.msra.mxu0 %v1479
        %1909 = vmatprep.subr.mxu0 0.0
        %1910 = vmatpush1.msra.mxu0 0.0
        %1911 = vmatprep.subr.mxu0 0.0
        %1912 = vmatpush1.msra.mxu0 0.0
        %1913 = vmatprep.subr.mxu0 0.0
        %1914 = vmatpush1.msra.mxu0 0.0
        %1915 = vmatprep.subr.mxu0 0.0
        %1916 = vmatpush1.msra.mxu0 0.0
        %1917 = vmatprep.subr.mxu0 0.0
        %1918 = vmatpush1.msra.mxu0 0.0
        %1919 = vmatprep.subr.mxu0 0.0
        %1920 = vmatpush1.msra.mxu0 0.0
        %1921 = vmatprep.subr.mxu0 0.0
        %1922 = vmatpush1.msra.mxu0 0.0
        %1923 = vmatprep.subr.mxu0 0.0
        %1924 = vmatpush1.msra.mxu0 0.0
        %1925 = vmatprep.subr.mxu0 0.0
        %1926 = vmatpush1.msra.mxu0 0.0
        %1927 = vmatprep.subr.mxu0 0.0
        %1928 = vmatpush1.msra.mxu0 0.0
        %1929 = vmatprep.subr.mxu0 0.0
        %1930 = vmatpush1.msra.mxu0 0.0
        %1931 = vmatprep.subr.mxu0 0.0
        %1932 = vmatpush1.msra.mxu0 0.0
        %1933 = vmatprep.subr.mxu0 0.0
        %1934 = vmatpush1.msra.mxu0 0.0
        %1935 = vmatprep.subr.mxu0 0.0
        %1936 = vmatpush1.msra.mxu0 0.0
        %1937 = vmatprep.subr.mxu0 0.0
        %1938 = vmatpush1.msra.mxu0 0.0
        %1939 = vmatprep.subr.mxu0 0.0
        %1940 = vmatpush1.msra.mxu0 0.0
        %1941 = vmatprep.subr.mxu0 0.0
        %1942 = vmatpush1.msra.mxu0 0.0
        %1943 = vmatprep.subr.mxu0 0.0
        %1944 = vmatpush1.msra.mxu0 0.0
        %1945 = vmatprep.subr.mxu0 0.0
        %1946 = vmatpush1.msra.mxu0 0.0
        %1947 = vmatprep.subr.mxu0 0.0
        %1948 = vmatpush1.msra.mxu0 0.0
        %1949 = vmatprep.subr.mxu0 0.0
        %1950 = vmatpush1.msra.mxu0 0.0
        %1951 = vmatprep.subr.mxu0 0.0
        %1952 = vmatpush1.msra.mxu0 0.0
        %1953 = vmatprep.subr.mxu0 0.0
        %1954 = vmatpush1.msra.mxu0 0.0
        %1955 = vmatprep.subr.mxu0 0.0
        %1956 = vmatpush1.msra.mxu0 0.0
        %1957 = vmatprep.subr.mxu0 0.0
        %1958 = vmatpush1.msra.mxu0 0.0
        %1959 = vmatprep.subr.mxu0 0.0
        %1960 = vmatpush1.msra.mxu0 0.0
        %1961 = vmatprep.subr.mxu0 0.0
        %1962 = vmatpush1.msra.mxu0 0.0
        %1963 = vmatprep.subr.mxu0 0.0
        %1964 = vmatpush1.msra.mxu0 0.0
        %1965 = vmatprep.subr.mxu0 0.0
        %1966 = vmatpush1.msra.mxu0 0.0
        %1967 = vmatprep.subr.mxu0 0.0
        %1968 = vmatpush1.msra.mxu0 0.0
        %1969 = vmatprep.mubr.f32.mxu0 0.0
        %1970 = vmatmul.mubr.f32.gmra.mrb[0].mxu0 %v946
        %v1971 = vpop.f32.mrb[0].mxu0
        %v1972 = vadd.f32 0.0, %v1971
        %v1973 = vpop.f32.mrb[0].mxu0
        %1974 = vmatprep.mubr.f32.mxu0 0.0
        %1975 = vmatmul.mubr.f32.gmra.mrb[0].mxu0 %v949
        %v1976 = vpop.f32.mrb[0].mxu0
        %v1977 = vadd.f32 0.0, %v1976
        %v1978 = vpop.f32.mrb[0].mxu0
        %1979 = vdwg.mxu0
        %v1980 = vlaneseq
        %v1981 = vshrl.u32 %v1980, 7
        %v1982 = vsub.s32 5, %v1981
        %v1983 = vrot.slane %v1481, %v1982
        %v1984 = vmul.f32 %v1972, %v1983
        %v1985 = vmul.f32 %v1977, %v1983
        %v1986 = vadd.f32 %v1903, %v1984
        %v1987 = vadd.f32 %v1904, %v1985
        %1988 = vmatprep.subr.mxu0 0.0
        %1989 = vmatpush1.msra.mxu0 %v1478
        %1990 = vmatprep.subr.mxu0 0.0
        %1991 = vmatpush1.msra.mxu0 %v1479
        %1992 = vmatprep.subr.mxu0 0.0
        %1993 = vmatpush1.msra.mxu0 0.0
        %1994 = vmatprep.subr.mxu0 0.0
        %1995 = vmatpush1.msra.mxu0 0.0
        %1996 = vmatprep.subr.mxu0 0.0
        %1997 = vmatpush1.msra.mxu0 0.0
        %1998 = vmatprep.subr.mxu0 0.0
        %1999 = vmatpush1.msra.mxu0 0.0
        %2000 = vmatprep.subr.mxu0 0.0
        %2001 = vmatpush1.msra.mxu0 0.0
        %2002 = vmatprep.subr.mxu0 0.0
        %2003 = vmatpush1.msra.mxu0 0.0
        %2004 = vmatprep.subr.mxu0 0.0
        %2005 = vmatpush1.msra.mxu0 0.0
        %2006 = vmatprep.subr.mxu0 0.0
        %2007 = vmatpush1.msra.mxu0 0.0
        %2008 = vmatprep.subr.mxu0 0.0
        %2009 = vmatpush1.msra.mxu0 0.0
        %2010 = vmatprep.subr.mxu0 0.0
        %2011 = vmatpush1.msra.mxu0 0.0
        %2012 = vmatprep.subr.mxu0 0.0
        %2013 = vmatpush1.msra.mxu0 0.0
        %2014 = vmatprep.subr.mxu0 0.0
        %2015 = vmatpush1.msra.mxu0 0.0
        %2016 = vmatprep.subr.mxu0 0.0
        %2017 = vmatpush1.msra.mxu0 0.0
        %2018 = vmatprep.subr.mxu0 0.0
        %2019 = vmatpush1.msra.mxu0 0.0
        %2020 = vmatprep.subr.mxu0 0.0
        %2021 = vmatpush1.msra.mxu0 0.0
        %2022 = vmatprep.subr.mxu0 0.0
        %2023 = vmatpush1.msra.mxu0 0.0
        %2024 = vmatprep.subr.mxu0 0.0
        %2025 = vmatpush1.msra.mxu0 0.0
        %2026 = vmatprep.subr.mxu0 0.0
        %2027 = vmatpush1.msra.mxu0 0.0
        %2028 = vmatprep.subr.mxu0 0.0
        %2029 = vmatpush1.msra.mxu0 0.0
        %2030 = vmatprep.subr.mxu0 0.0
        %2031 = vmatpush1.msra.mxu0 0.0
        %2032 = vmatprep.subr.mxu0 0.0
        %2033 = vmatpush1.msra.mxu0 0.0
        %2034 = vmatprep.subr.mxu0 0.0
        %2035 = vmatpush1.msra.mxu0 0.0
        %2036 = vmatprep.subr.mxu0 0.0
        %2037 = vmatpush1.msra.mxu0 0.0
        %2038 = vmatprep.subr.mxu0 0.0
        %2039 = vmatpush1.msra.mxu0 0.0
        %2040 = vmatprep.subr.mxu0 0.0
        %2041 = vmatpush1.msra.mxu0 0.0
        %2042 = vmatprep.subr.mxu0 0.0
        %2043 = vmatpush1.msra.mxu0 0.0
        %2044 = vmatprep.subr.mxu0 0.0
        %2045 = vmatpush1.msra.mxu0 0.0
        %2046 = vmatprep.subr.mxu0 0.0
        %2047 = vmatpush1.msra.mxu0 0.0
        %2048 = vmatprep.subr.mxu0 0.0
        %2049 = vmatpush1.msra.mxu0 0.0
        %2050 = vmatprep.subr.mxu0 0.0
        %2051 = vmatpush1.msra.mxu0 0.0
        %2052 = vmatprep.mubr.f32.mxu0 0.0
        %2053 = vmatmul.mubr.f32.gmra.mrb[0].mxu0 %v1043
        %v2054 = vpop.f32.mrb[0].mxu0
        %v2055 = vadd.f32 0.0, %v2054
        %v2056 = vpop.f32.mrb[0].mxu0
        %2057 = vmatprep.mubr.f32.mxu0 0.0
        %2058 = vmatmul.mubr.f32.gmra.mrb[0].mxu0 %v1046
        %v2059 = vpop.f32.mrb[0].mxu0
        %v2060 = vadd.f32 0.0, %v2059
        %v2061 = vpop.f32.mrb[0].mxu0
        %2062 = vdwg.mxu0
        %v2063 = vlaneseq
        %v2064 = vshrl.u32 %v2063, 7
        %v2065 = vsub.s32 6, %v2064
        %v2066 = vrot.slane %v1481, %v2065
        %v2067 = vmul.f32 %v2055, %v2066
        %v2068 = vmul.f32 %v2060, %v2066
        %v2069 = vadd.f32 %v1986, %v2067
        %v2070 = vadd.f32 %v1987, %v2068
        %2071 = vadd.xlane.f32.xlu0 %v2069
        %v2072 = vpop.xlane.xlu0 %2071
        %2073 = vadd.xlane.f32.xlu0 %v2070
        %v2074 = vpop.xlane.xlu0 %2073
        %v2075 = vmul.f32 %v2072, 0.015625
        %v2076 = vmul.f32 %v2074, 0.015625
        %v2077 = vsub.f32 %v2069, %v2075
        %v2078 = vsub.f32 %v2070, %v2076
        %v2079 = vmul.f32 %v2077, %v2077
        %v2080 = vmul.f32 %v2078, %v2078
        %v2081 = vmul.f32 %v2079, %v442
        %v2082 = vmul.f32 %v2080, %v442
        %2083 = vadd.xlane.f32.xlu0 %v2081
        %v2084 = vpop.xlane.xlu0 %2083
        %2085 = vadd.xlane.f32.xlu0 %v2082
        %v2086 = vpop.xlane.xlu0 %2085
        %v2087 = vmul.f32 %v2084, 0.015625
        %v2088 = vmul.f32 %v2086, 0.015625
        %v2089 = vadd.f32 %v2087, 1e-06
        %v2090 = vadd.f32 %v2088, 1e-06
        %v2091 = vrsqrt.pop %v2089
        %v2092 = vrsqrt.pop %v2090
        %v2093 = vmul.f32 %v2077, %v2091
        %v2094 = vmul.f32 %v2078, %v2092
        %v2095 = vlaneseq
        %v2096 = vshrl.u32 %v2095, 7
        %v2097 = vsub.s32 1, %v2096
        %v2098 = vrot.slane %v1483, %v2097
        %v2099 = vmul.f32 %v2093, %v2098
        %v2100 = vmul.f32 %v2094, %v2098
        %v2101 = vlaneseq
        %v2102 = vshrl.u32 %v2101, 7
        %v2103 = vsub.s32 2, %v2102
        %v2104 = vrot.slane %v1483, %v2103
        %v2105 = vadd.f32 %v2099, %v2104
        %v2106 = vadd.f32 %v2100, %v2104
        %v2107 = vpack.c.bf16 %v2106, %v2105
        %s2108 = scalar_lea.vmem [#allocation2], 64
        %v2109 = vld [vmem:[%s2108] sm:$0xf]
        %v2110 = vld [vmem:[%s2108 + $0x4] sm:$0xf]
        %v2111 = vld [vmem:[%s2108 + $0x8] sm:$0xf]
        %v2112 = vld [vmem:[%s2108 + $0xc] sm:$0xf]
        %v2113 = vld [vmem:[%s2108 + $0x10] sm:$0xf]
        %v2114 = vld [vmem:[%s2108 + $0x14] sm:$0xf]
        %v2115 = vld [vmem:[%s2108 + $0x18] sm:$0xf]
        %v2116 = vld [vmem:[%s2108 + $0x1c] sm:$0xf]
        %v2117 = vld [vmem:[%s2108 + $0x20] sm:$0xf]
        %v2118 = vld [vmem:[%s2108 + $0x24] sm:$0xf]
        %v2119 = vld [vmem:[%s2108 + $0x28] sm:$0xf]
        %v2120 = vld [vmem:[%s2108 + $0x2c] sm:$0xf]
        %v2121 = vld [vmem:[%s2108 + $0x30] sm:$0xf]
        %v2122 = vld [vmem:[%s2108 + $0x34] sm:$0xf]
        %v2123 = vld [vmem:[%s2108 + $0x38] sm:$0xf]
        %v2124 = vld [vmem:[%s2108 + $0x3c] sm:$0xf]
        %v2125 = vlaneseq
        %v2126 = vshrl.u32 %v2125, 7
        %v2127 = vsub.s32 0, %v2126
        %v2128 = vrot.slane %v1485, %v2127
        %v2145 = vunpack.c.l.b16 %v2109
        %v2146 = vunpack.c.l.b16 %v2110
        %v2147 = vunpack.c.l.b16 %v2111
        %v2148 = vunpack.c.l.b16 %v2112
        %v2149 = vunpack.c.l.b16 %v2113
        %v2150 = vunpack.c.l.b16 %v2114
        %v2151 = vunpack.c.l.b16 %v2115
        %v2152 = vunpack.c.l.b16 %v2116
        %v2153 = vunpack.c.l.b16 %v2117
        %v2154 = vunpack.c.l.b16 %v2118
        %v2155 = vunpack.c.l.b16 %v2119
        %v2156 = vunpack.c.l.b16 %v2120
        %v2157 = vunpack.c.l.b16 %v2121
        %v2158 = vunpack.c.l.b16 %v2122
        %v2159 = vunpack.c.l.b16 %v2123
        %v2160 = vunpack.c.l.b16 %v2124
        %v2161 = vpack.c.b16 %v2146, %v2145
        %v2162 = vpack.c.b16 %v2148, %v2147
        %v2163 = vpack.c.b16 %v2150, %v2149
        %v2164 = vpack.c.b16 %v2152, %v2151
        %v2165 = vpack.c.b16 %v2154, %v2153
        %v2166 = vpack.c.b16 %v2156, %v2155
        %v2167 = vpack.c.b16 %v2158, %v2157
        %v2168 = vpack.c.b16 %v2160, %v2159
        %2177 = vmatprep.subr.bf16.mxu0 0
        %2178 = vmatpush1.bf16.msra.mxu0 %v2161
        %2179 = vmatprep.subr.bf16.mxu0 0
        %2180 = vmatpush1.bf16.msra.mxu0 %v2162
        %2181 = vmatprep.subr.bf16.mxu0 0
        %2182 = vmatpush1.bf16.msra.mxu0 %v2163
        %2183 = vmatprep.subr.bf16.mxu0 0
        %2184 = vmatpush1.bf16.msra.mxu0 %v2164
        %2185 = vmatprep.subr.bf16.mxu0 0
        %2186 = vmatpush1.bf16.msra.mxu0 %v2165
        %2187 = vmatprep.subr.bf16.mxu0 0
        %2188 = vmatpush1.bf16.msra.mxu0 %v2166
        %2189 = vmatprep.subr.bf16.mxu0 0
        %2190 = vmatpush1.bf16.msra.mxu0 %v2167
        %2191 = vmatprep.subr.bf16.mxu0 0
        %2192 = vmatpush1.bf16.msra.mxu0 %v2168
        %2193 = vmatprep.subr.bf16.mxu0 0
        %2194 = vmatpush1.bf16.msra.mxu0 0
        %2195 = vmatprep.subr.bf16.mxu0 0
        %2196 = vmatpush1.bf16.msra.mxu0 0
        %2197 = vmatprep.subr.bf16.mxu0 0
        %2198 = vmatpush1.bf16.msra.mxu0 0
        %2199 = vmatprep.subr.bf16.mxu0 0
        %2200 = vmatpush1.bf16.msra.mxu0 0
        %2201 = vmatprep.subr.bf16.mxu0 0
        %2202 = vmatpush1.bf16.msra.mxu0 0
        %2203 = vmatprep.subr.bf16.mxu0 0
        %2204 = vmatpush1.bf16.msra.mxu0 0
        %2205 = vmatprep.subr.bf16.mxu0 0
        %2206 = vmatpush1.bf16.msra.mxu0 0
        %2207 = vmatprep.subr.bf16.mxu0 0
        %2208 = vmatpush1.bf16.msra.mxu0 0
        %2209 = vmatprep.mubr.bf16.mxu0 0
        %2210 = vmatmul.mubr.bf16.gmra.mrb[0].mxu0 %v2107
        %v2211 = vpop.f32.mrb[0].mxu0
        %v2212 = vadd.f32 %v2128, %v2211
        %v2213 = vpop.f32.mrb[0].mxu0
        %v2214 = vpop.f32.mrb[0].mxu0
        %v2215 = vadd.f32 %v2128, %v2214
        %v2216 = vpop.f32.mrb[0].mxu0
        %2217 = vdwg.mxu0
        %v2218 = vmul.f32 %v2212, 0.5
        %v2219 = vmul.f32 %v2215, 0.5
        %v2220 = vmul.f32 %v2212, 0.70710677
        %v2221 = vmul.f32 %v2215, 0.70710677
        %vm2222 = vcmp.ge.f32.partialorder %v2220, 0.0
        %vm2223 = vcmp.ge.f32.partialorder %v2221, 0.0
        %v2224 = vsel %vm2222, 1.0, -1.0
        %v2225 = vsel %vm2223, 1.0, -1.0
        %v2226 = vand.u32 2147483647, %v2220
        %v2227 = vand.u32 2147483647, %v2221
        %v2228 = vmul.f32 %v2226, 0.3275911
        %v2229 = vmul.f32 %v2227, 0.3275911
        %v2230 = vadd.f32 %v2228, 1.0
        %v2231 = vadd.f32 %v2229, 1.0
        %v2232 = vrcp.pop %v2230
        %v2233 = vrcp.pop %v2231
        %v2234 = vmul.f32 %v2232, 1.0614054
        %v2235 = vmul.f32 %v2233, 1.0614054
        %v2236 = vadd.f32 %v2234, -1.4531521
        %v2237 = vadd.f32 %v2235, -1.4531521
        %v2238 = vmul.f32 %v2236, %v2232
        %v2239 = vmul.f32 %v2237, %v2233
        %v2240 = vadd.f32 %v2238, 1.4214138
        %v2241 = vadd.f32 %v2239, 1.4214138
        %v2242 = vmul.f32 %v2240, %v2232
        %v2243 = vmul.f32 %v2241, %v2233
        %v2244 = vadd.f32 %v2242, -0.28449672
        %v2245 = vadd.f32 %v2243, -0.28449672
        %v2246 = vmul.f32 %v2244, %v2232
        %v2247 = vmul.f32 %v2245, %v2233
        %v2248 = vadd.f32 %v2246, 0.2548296
        %v2249 = vadd.f32 %v2247, 0.2548296
        %v2250 = vmul.f32 %v2248, %v2232
        %v2251 = vmul.f32 %v2249, %v2233
        %v2252 = vsub.f32 0.0, %v2226
        %v2253 = vsub.f32 0.0, %v2227
        %v2254 = vmul.f32 %v2252, %v2226
        %v2255 = vmul.f32 %v2253, %v2227
        %v2256 = vmul.f32 %v2254, 1.442695
        %v2257 = vpow.pop %v2256
        %v2258 = vmul.f32 %v2255, 1.442695
        %v2259 = vpow.pop %v2258
        %v2260 = vmul.f32 %v2250, %v2257
        %v2261 = vmul.f32 %v2251, %v2259
        %v2262 = vsub.f32 1.0, %v2260
        %v2263 = vsub.f32 1.0, %v2261
        %v2264 = vmul.f32 %v2224, %v2262
        %v2265 = vmul.f32 %v2225, %v2263
        %v2266 = vadd.f32 %v2264, 1.0
        %v2267 = vadd.f32 %v2265, 1.0
        %v2268 = vmul.f32 %v2218, %v2266
        %v2269 = vmul.f32 %v2219, %v2267
        %v2270 = vmul.f32 %v2268, %v2268
        %v2271 = vmul.f32 %v2269, %v2269
        %v2272 = vadd.f32 %v2270, %v2271
        %v2273 = vrot.slane %v2272, 4
        %v2274 = vadd.f32 %v2272, %v2273
        %v2275 = vrot.slane %v2274, 2
        %v2276 = vadd.f32 %v2274, %v2275
        %v2277 = vrot.slane %v2276, 1
        %v2278 = vadd.f32 %v2276, %v2277
        %v2279 = vrsqrt.pop %v2278
        %v2280 = vmul.f32 %v2278, %v2279
        %vm2281 = vcmp.eq.f32.partialorder %v2278, inf
        %v2282 = vsel %vm2281, %v2278, %v2280
        %vm2283 = vcmp.eq.f32.partialorder %v2278, 0.0
        %v2284 = vand.u32 %v2278, 2147483648
        %v2285 = vsel %vm2283, %v2284, %v2282
        %2286 = vadd.xlane.f32.xlu0 %v2285
        %v2287 = vpop.xlane.xlu0 %2286
        %v2288 = vmul.f32 %v2287, %v1347
        %v2289 = vadd.f32 %v2288, 1e-06
        %v2290 = vrcp.pop %v2289
        %v2291 = vmul.f32 %v2285, %v2290
        %v2292 = vmul.f32 %v2268, %v2291
        %v2293 = vmul.f32 %v2269, %v2291
        %v2294 = vlaneseq
        %v2295 = vshrl.u32 %v2294, 7
        %v2296 = vsub.s32 1, %v2295
        %v2297 = vrot.slane %v1485, %v2296
        %v2298 = vmul.f32 %v2297, %v2292
        %v2299 = vmul.f32 %v2297, %v2293
        %v2300 = vlaneseq
        %v2301 = vshrl.u32 %v2300, 7
        %v2302 = vsub.s32 2, %v2301
        %v2303 = vrot.slane %v1485, %v2302
        %v2304 = vadd.f32 %v2298, %v2303
        %v2305 = vadd.f32 %v2299, %v2303
        %v2306 = vadd.f32 %v2304, %v2268
        %v2307 = vadd.f32 %v2305, %v2269
        %v2308 = vpack.c.bf16 %v2307, %v2306
        %s2309 = scalar_lea.vmem [#allocation5], 64
        %v2310 = vld [vmem:[%s2309] sm:$0xf]
        %v2311 = vld [vmem:[%s2309 + $0x4] sm:$0xf]
        %v2312 = vld [vmem:[%s2309 + $0x8] sm:$0xf]
        %v2313 = vld [vmem:[%s2309 + $0xc] sm:$0xf]
        %v2314 = vld [vmem:[%s2309 + $0x10] sm:$0xf]
        %v2315 = vld [vmem:[%s2309 + $0x14] sm:$0xf]
        %v2316 = vld [vmem:[%s2309 + $0x18] sm:$0xf]
        %v2317 = vld [vmem:[%s2309 + $0x1c] sm:$0xf]
        %v2318 = vld [vmem:[%s2309 + $0x20] sm:$0xf]
        %v2319 = vld [vmem:[%s2309 + $0x24] sm:$0xf]
        %v2320 = vld [vmem:[%s2309 + $0x28] sm:$0xf]
        %v2321 = vld [vmem:[%s2309 + $0x2c] sm:$0xf]
        %v2322 = vld [vmem:[%s2309 + $0x30] sm:$0xf]
        %v2323 = vld [vmem:[%s2309 + $0x34] sm:$0xf]
        %v2324 = vld [vmem:[%s2309 + $0x38] sm:$0xf]
        %v2325 = vld [vmem:[%s2309 + $0x3c] sm:$0xf]
        %v2326 = vlaneseq
        %v2327 = vshrl.u32 %v2326, 7
        %v2328 = vsub.s32 3, %v2327
        %v2329 = vrot.slane %v1483, %v2328
        %v2346 = vunpack.c.l.b16 %v2310
        %v2347 = vunpack.c.l.b16 %v2311
        %v2348 = vunpack.c.l.b16 %v2312
        %v2349 = vunpack.c.l.b16 %v2313
        %v2350 = vunpack.c.l.b16 %v2314
        %v2351 = vunpack.c.l.b16 %v2315
        %v2352 = vunpack.c.l.b16 %v2316
        %v2353 = vunpack.c.l.b16 %v2317
        %v2354 = vunpack.c.l.b16 %v2318
        %v2355 = vunpack.c.l.b16 %v2319
        %v2356 = vunpack.c.l.b16 %v2320
        %v2357 = vunpack.c.l.b16 %v2321
        %v2358 = vunpack.c.l.b16 %v2322
        %v2359 = vunpack.c.l.b16 %v2323
        %v2360 = vunpack.c.l.b16 %v2324
        %v2361 = vunpack.c.l.b16 %v2325
        %v2362 = vpack.c.b16 %v2347, %v2346
        %v2363 = vpack.c.b16 %v2349, %v2348
        %v2364 = vpack.c.b16 %v2351, %v2350
        %v2365 = vpack.c.b16 %v2353, %v2352
        %v2366 = vpack.c.b16 %v2355, %v2354
        %v2367 = vpack.c.b16 %v2357, %v2356
        %v2368 = vpack.c.b16 %v2359, %v2358
        %v2369 = vpack.c.b16 %v2361, %v2360
        %2378 = vmatprep.subr.bf16.mxu0 0
        %2379 = vmatpush1.bf16.msra.mxu0 %v2362
        %2380 = vmatprep.subr.bf16.mxu0 0
        %2381 = vmatpush1.bf16.msra.mxu0 %v2363
        %2382 = vmatprep.subr.bf16.mxu0 0
        %2383 = vmatpush1.bf16.msra.mxu0 %v2364
        %2384 = vmatprep.subr.bf16.mxu0 0
        %2385 = vmatpush1.bf16.msra.mxu0 %v2365
        %2386 = vmatprep.subr.bf16.mxu0 0
        %2387 = vmatpush1.bf16.msra.mxu0 %v2366
        %2388 = vmatprep.subr.bf16.mxu0 0
        %2389 = vmatpush1.bf16.msra.mxu0 %v2367
        %2390 = vmatprep.subr.bf16.mxu0 0
        %2391 = vmatpush1.bf16.msra.mxu0 %v2368
        %2392 = vmatprep.subr.bf16.mxu0 0
        %2393 = vmatpush1.bf16.msra.mxu0 %v2369
        %2394 = vmatprep.subr.bf16.mxu0 0
        %2395 = vmatpush1.bf16.msra.mxu0 0
        %2396 = vmatprep.subr.bf16.mxu0 0
        %2397 = vmatpush1.bf16.msra.mxu0 0
        %2398 = vmatprep.subr.bf16.mxu0 0
        %2399 = vmatpush1.bf16.msra.mxu0 0
        %2400 = vmatprep.subr.bf16.mxu0 0
        %2401 = vmatpush1.bf16.msra.mxu0 0
        %2402 = vmatprep.subr.bf16.mxu0 0
        %2403 = vmatpush1.bf16.msra.mxu0 0
        %2404 = vmatprep.subr.bf16.mxu0 0
        %2405 = vmatpush1.bf16.msra.mxu0 0
        %2406 = vmatprep.subr.bf16.mxu0 0
        %2407 = vmatpush1.bf16.msra.mxu0 0
        %2408 = vmatprep.subr.bf16.mxu0 0
        %2409 = vmatpush1.bf16.msra.mxu0 0
        %2410 = vmatprep.mubr.bf16.mxu0 0
        %2411 = vmatmul.mubr.bf16.gmra.mrb[0].mxu0 %v2308
        %v2412 = vpop.f32.mrb[0].mxu0
        %v2413 = vadd.f32 %v2329, %v2412
        %v2414 = vpop.f32.mrb[0].mxu0
        %v2415 = vpop.f32.mrb[0].mxu0
        %v2416 = vadd.f32 %v2329, %v2415
        %v2417 = vpop.f32.mrb[0].mxu0
        %2418 = vdwg.mxu0
        %v2419 = vadd.f32 %v1478, %v2413
        %v2420 = vadd.f32 %v1479, %v2416
        %2421 = vst [vmem:[%s328] sm:$0xff] %v2419
        %2422 = vst [vmem:[%s328 + $0x8] sm:$0xff] %v2420
        %s2423 = sand.u32 %s205, 1
        %s2424 = scalar_lea.sflag [#allocation4], %s2423
        %s2425 = sand.u32 %s205, 1
        %s2426 = smul.addr %s2425, 16
        %s2427 = scalar_lea.vmem [#allocation7], %s2426
        // Predicated region
        $region61: #{tpu_custom_call.1} parent=51 // pred_check
          %p2428 = pneg %p215
        $region62: #{tpu_custom_call.1} parent=51 // pred_check_branch
          %2430 = sbr.rel (%p2428) target = $region64
        $region63: #{tpu_custom_call.1} parent=51 // pred_region
          %s2432 = ssub.s32 256, 256
          %2433 = vsyncadd %s2424, %s2432
          %s2434 = smul.addr %s24, 2
          %s2435 = smul.addr %s2434, 128
          %s2436 = scalar_lea.hbm %s8, %s2435
          %s2437 = sshll.u32 %s2427, 4
          %s2438 = int_to_ptr.vmem [resolvable:$true] %s2437
          %2443 = dma.vmem_to_hbm [thread:$0]  %s2438, 256, %s2436, %s2424, 128, 128, 8
        $region64: #{tpu_custom_call.1} parent=51 // pred_fallthru
          _
      $region52: #{tpu_custom_call.1} parent=5 // pred_fallthru
        _
      %p2444 = scmp.le.s32.totalorder 2, %s19
      // Predicated region
      $region65: #{tpu_custom_call.1} parent=5 // pred_check
        %p2445 = pneg %p2444
      $region66: #{tpu_custom_call.1} parent=5 // pred_check_branch
        %2447 = sbr.rel (%p2445) target = $region68
      $region67: #{tpu_custom_call.1} parent=5 // pred_region
        %s2448 = ssub.s32 %s19, 2
        // Predicated region
        $region69: #{tpu_custom_call.1} parent=67 // pred_check
          %p2449 = pneg %p221
        $region70: #{tpu_custom_call.1} parent=67 // pred_check_branch
          %2451 = sbr.rel (%p2449) target = $region72
        $region71: #{tpu_custom_call.1} parent=67 // pred_region
          %s2452 = sand.u32 %s206, 1
          %s2453 = scalar_lea.sflag [#allocation4], %s2452
          %s2454 = sand.u32 %s206, 1
          %s2455 = smul.addr %s2454, 16
          %s2456 = scalar_lea.vmem [#allocation7], %s2455
          %2457 = dma.done %s2453, 256
        $region72: #{tpu_custom_call.1} parent=67 // pred_fallthru
          _
      $region68: #{tpu_custom_call.1} parent=5 // pred_fallthru
        _
    $region6: #{tpu_custom_call.1} parent=1 // loop_footer
      %s23 = sadd.s32 1, %s19
    $region7: #{tpu_custom_call.1} parent=1 // loop_footer_branch
      %18 = sbr.rel target = $region3
    $region8: #{tpu_custom_call.1} parent=1 // loop_exit
      _
    %2458 = vsyncpa [#allocation3], 1
    %s2459 = scalar_lea.sflag [#allocation3], 1
    %2460 = vsyncpa %s2459, 1
    %2461 = vsyncpa [#allocation6], 1
    %2462 = vsyncpa [#allocation4], 1
    %s2463 = scalar_lea.sflag [#allocation4], 1
    %2464 = vsyncpa %s2463, 1

</llo_original>
